<compile_context>
chip_gen: v5e
topology: v5e:2x2
jax: 0.10.0
libtpu: 0.0.40
codegen_flags: <defaults>
</compile_context>

<pallas_src>
import jax
import jax.numpy as jnp
from jax import lax
from jax.experimental import pallas as pl
from jax.experimental.pallas import tpu as pltpu

VMEM = pltpu.MemorySpace.VMEM


# --------------------------------------------------------------------------
# Fused kernel factory (static shape parameters are closed over).
# --------------------------------------------------------------------------
def _make_fused_kernel(B, S, H, Lw, NP):
    def kernel(emb_ref, x1f_ref, x2_ref, x5_ref,
               rep_ref, colmask_ref, sel_ref,
               wih_ref, whh_ref, blstm_ref,
               w1_ref, u1_ref, w2_ref, u2_ref,
               wl_ref, bl_ref, gl_ref, betal_ref,
               wn1a_ref, wn1b_ref, wn1c_ref, bn1_ref, gn1_ref, betan1_ref,
               wn2a_ref, wn2b_ref, wn2c_ref, bn2_ref, gn2_ref, betan2_ref,
               wn3_ref, bn3_ref, wo_ref, bo_ref,
               out_ref):
        f32 = jnp.float32
        eps = 1e-5
        slope = 0.01

        def bn_train(y, gamma, beta):
            mean = jnp.mean(y, axis=0, keepdims=True)
            var = jnp.mean(jnp.square(y - mean), axis=0, keepdims=True)
            return (y - mean) * lax.rsqrt(var + eps) * gamma + beta

        def lrelu(y):
            return jnp.where(y >= 0, y, slope * y)

        # ------------------ LSTM (final hidden state only) -------------------
        wih = wih_ref[...]          # (E, 4H)
        whh = whh_ref[...]          # (H, 4H)
        b_l = blstm_ref[...]        # (1, 4H)  == b_ih + b_hh

        # Hoisted input projection: one matmul for every timestep at once.
        # emb_ref is time-major: row t*NP + n  (n = b*S + s, rows >= N padded).
        gx_all = jnp.dot(emb_ref[...], wih,
                         preferred_element_type=f32) + b_l          # (Lw*NP, 4H)

        h = jnp.zeros((NP, H), f32)
        c = jnp.zeros((NP, H), f32)
        for t in range(Lw):                     # static trip count -> unrolled
            gates = gx_all[t * NP:(t + 1) * NP, :] + jnp.dot(
                h, whh, preferred_element_type=f32)                 # (NP, 4H)
            sg = jax.nn.sigmoid(gates)          # one EUP pass over full width
            i_g = sg[:, 0:H]
            f_g = sg[:, H:2 * H]
            o_g = sg[:, 3 * H:4 * H]
            g_g = jnp.tanh(gates[:, 2 * H:3 * H])
            c = f_g * c + i_g * g_g
            h = o_g * jnp.tanh(c)
        # h: (NP, H); row n = b*S + s is PyTorch's h_n[b, s, :].

        # -------- sentence attention: softmax over S within each batch -------
        u1t = jnp.tanh(jnp.dot(h, w1_ref[...], preferred_element_type=f32))
        scores = jnp.dot(u1t, u1_ref[...], preferred_element_type=f32)  # (NP,1)
        m = jnp.max(scores, axis=0, keepdims=True)      # global shift (safe)
        e = jnp.exp(scores - m)
        row_ids = lax.broadcasted_iota(jnp.int32, (NP, 1), 0)
        denom = jnp.ones_like(e)                        # pad rows keep denom=1
        for b in range(B):                              # B is tiny & static
            mask_b = jnp.logical_and(row_ids >= b * S, row_ids < (b + 1) * S)
            s_b = jnp.sum(jnp.where(mask_b, e, 0.0), axis=0, keepdims=True)
            denom = jnp.where(mask_b, s_b, denom)
        a1 = e / denom                                  # (NP, 1) = a_1_s

        # -------- flatten (NP,H) -> (B, S*H) via constant selection matmuls --
        rep = jnp.dot(h, rep_ref[...], preferred_element_type=f32)   # (NP, S*H)
        xsel = rep * colmask_ref[...]                                # mask cols
        sel = sel_ref[...]                                           # (B, NP)
        hn_flat = jnp.dot(sel, xsel, preferred_element_type=f32)     # pre-attn
        hw_flat = jnp.dot(sel, xsel * a1, preferred_element_type=f32)  # post-attn

        # ------------------ x_5 attention ------------------------------------
        x5 = x5_ref[...]                                             # (B, 28)
        u2t = jnp.tanh(jnp.dot(x5, w2_ref[...], preferred_element_type=f32))
        a2 = jnp.dot(u2t, u2_ref[...], preferred_element_type=f32)   # (B, 1)
        a2s = jax.nn.softmax(a2, axis=1)   # size-1 axis -> 1.0 (kept for fidelity)
        x5w = x5 * a2s

        # ------------------ self.line: Linear(288,28)+BN+LeakyReLU, * x_5 ----
        hline = jnp.dot(hn_flat, wl_ref[...],
                        preferred_element_type=f32) + bl_ref[...]
        hline = lrelu(bn_train(hline, gl_ref[...], betal_ref[...]))
        hline = hline * x5w                                          # (B, 28)

        # ------------------ NN_1 (torch.cat folded into split matmuls) -------
        x = (jnp.dot(x1f_ref[...], wn1a_ref[...], preferred_element_type=f32)
             + jnp.dot(x2_ref[...], wn1b_ref[...], preferred_element_type=f32)
             + jnp.dot(hw_flat, wn1c_ref[...], preferred_element_type=f32)
             + bn1_ref[...])
        x = lrelu(bn_train(x, gn1_ref[...], betan1_ref[...]))        # (B, 32)

        # ------------------ NN_2 (concat folded) -----------------------------
        y = (jnp.dot(x, wn2a_ref[...], preferred_element_type=f32)
             + jnp.dot(x5w, wn2b_ref[...], preferred_element_type=f32)
             + jnp.dot(hline, wn2c_ref[...], preferred_element_type=f32)
             + bn2_ref[...])
        y = lrelu(bn_train(y, gn2_ref[...], betan2_ref[...]))        # (B, 16)

        # ------------------ NN_3 + out_layer ----------------------------------
        z = lrelu(jnp.dot(y, wn3_ref[...],
                          preferred_element_type=f32) + bn3_ref[...])
        out_ref[...] = (jnp.dot(z, wo_ref[...],
                                preferred_element_type=f32) + bo_ref[...])

    return kernel


# --------------------------------------------------------------------------
# Full forward: embedding gather + tiny constant prep in JAX, one pallas_call.
# --------------------------------------------------------------------------
def raal_forward(params, x_1, x_2, x_3, x_5):
    B, S, Lw = x_3.shape
    F1 = x_1.shape[-1]
    H = params['whh'].shape[0]
    N = B * S
    NP = ((N + 7) // 8) * 8          # pad LSTM batch to a sublane multiple of 8

    # TODO(synk): the embedding-table gather stays in plain JAX (dynamic row
    # gather has no clean single-op Pallas TPU equivalent at this size).
    idx = x_3.reshape(N, Lw).astype(jnp.int32)
    idx_tm = jnp.transpose(idx)                         # (Lw, N)  time-major
    idx_tm = jnp.pad(idx_tm, ((0, 0), (0, NP - N)))     # (Lw, NP)
    emb_flat = params['embedding'][idx_tm.reshape(-1)]  # (Lw*NP, E)

    x1f = x_1.reshape(B, S * F1)                        # (B, S*F1)

    # Constant matrices that implement h_n.view(B, S*H) inside the kernel as
    # matmuls (no in-kernel reshape/relayout).  Constant-folded under jit.
    rep = jnp.tile(jnp.eye(H, dtype=jnp.float32), (1, S))           # (H, S*H)
    rows = jnp.arange(NP)
    row_valid = rows < N
    col_s = jnp.arange(S * H) // H
    colmask = ((rows % S)[:, None] == col_s[None, :]) & row_valid[:, None]
    colmask = colmask.astype(jnp.float32)                           # (NP, S*H)
    sel = ((rows[None, :] // S) == jnp.arange(B)[:, None]) & row_valid[None, :]
    sel = sel.astype(jnp.float32)                                   # (B, NP)

    kernel = _make_fused_kernel(B, S, H, Lw, NP)
    args = (emb_flat, x1f, x_2, x_5, rep, colmask, sel,
            params['wih'], params['whh'], params['b_lstm'],
            params['w_1'], params['u_1'], params['w_2'], params['u_2'],
            params['line_w'], params['line_b'], params['line_g'], params['line_beta'],
            params['nn1_w_a'], params['nn1_w_b'], params['nn1_w_c'],
            params['nn1_b'], params['nn1_g'], params['nn1_beta'],
            params['nn2_w_a'], params['nn2_w_b'], params['nn2_w_c'],
            params['nn2_b'], params['nn2_g'], params['nn2_beta'],
            params['nn3_w'], params['nn3_b'],
            params['out_w'], params['out_b'])

    return pl.pallas_call(
        kernel,
        out_shape=jax.ShapeDtypeStruct((B, 1), jnp.float32),
        in_specs=[pl.BlockSpec(memory_space=VMEM)] * len(args),
        out_specs=pl.BlockSpec(memory_space=VMEM),
    )(*args)


# --------------------------------------------------------------------------
# Deterministic parameter init (synthetic; PyTorch init not replicated).
# NN_1 / NN_2 weights are generated dense and permuted/split once here so the
# kernel can fold the torch.cat operations into partial matmuls.
# --------------------------------------------------------------------------
def init_params(key, vocab, E, H=16, S=18, F1=3, nn1_out=32, nn2_out=16):
    per_sent = F1 + 1 + H                  # 20 features per sentence in the cat
    nn1_hidden = S * per_sent              # 360
    ks = jax.random.split(key, 18)

    def nrm(k, shape, scale=0.1):
        return (scale * jax.random.normal(k, shape)).astype(jnp.float32)

    p = {}
    p['embedding'] = nrm(ks[0], (vocab, E), 1.0)
    p['wih'] = nrm(ks[1], (E, 4 * H))
    p['whh'] = nrm(ks[2], (H, 4 * H))
    p['b_lstm'] = nrm(ks[3], (1, 4 * H))          # = b_ih + b_hh pre-summed
    p['w_1'] = nrm(ks[4], (H, H))
    p['u_1'] = nrm(ks[5], (H, 1))
    p['w_2'] = nrm(ks[6], (28, 28))
    p['u_2'] = nrm(ks[7], (28, 1))
    p['line_w'] = nrm(ks[8], (S * H, 28))
    p['line_b'] = nrm(ks[9], (1, 28))
    p['line_g'] = jnp.ones((1, 28), jnp.float32)
    p['line_beta'] = jnp.zeros((1, 28), jnp.float32)

    nn1_w = nrm(ks[10], (nn1_hidden, nn1_out))
    base = jnp.arange(S) * per_sent
    idx_a = (base[:, None] + jnp.arange(F1)[None, :]).reshape(-1)         # x_1 rows
    idx_b = base + F1                                                      # x_2 rows
    idx_c = (base[:, None] + F1 + 1 + jnp.arange(H)[None, :]).reshape(-1)  # h_w rows
    p['nn1_w_a'] = nn1_w[idx_a]            # (S*F1, 32)
    p['nn1_w_b'] = nn1_w[idx_b]            # (S, 32)
    p['nn1_w_c'] = nn1_w[idx_c]            # (S*H, 32)
    p['nn1_b'] = nrm(ks[11], (1, nn1_out))
    p['nn1_g'] = jnp.ones((1, nn1_out), jnp.float32)
    p['nn1_beta'] = jnp.zeros((1, nn1_out), jnp.float32)

    nn2_w = nrm(ks[12], (nn1_out + 28 + 28, nn2_out))
    p['nn2_w_a'] = nn2_w[:nn1_out]
    p['nn2_w_b'] = nn2_w[nn1_out:nn1_out + 28]
    p['nn2_w_c'] = nn2_w[nn1_out + 28:]
    p['nn2_b'] = nrm(ks[13], (1, nn2_out))
    p['nn2_g'] = jnp.ones((1, nn2_out), jnp.float32)
    p['nn2_beta'] = jnp.zeros((1, nn2_out), jnp.float32)
    p['nn3_w'] = nrm(ks[14], (nn2_out, 16))
    p['nn3_b'] = nrm(ks[15], (1, 16))
    p['out_w'] = nrm(ks[16], (16, 1))
    p['out_b'] = nrm(ks[17], (1, 1))
    return p


if __name__ == "__main__":
    key = jax.random.PRNGKey(0)
    B, S, Lw, E, H, V, F1 = 2, 18, 8, 32, 16, 100, 3
    k_p, k1, k2, k3, k5 = jax.random.split(key, 5)

    params = init_params(k_p, V, E, H=H, S=S, F1=F1)
    x_1 = jax.random.normal(k1, (B, S, F1), jnp.float32)
    x_2 = jax.random.normal(k2, (B, S), jnp.float32)
    x_3 = jax.random.randint(k3, (B, S, Lw), 0, V, jnp.int32)
    x_5 = jax.random.normal(k5, (B, 28), jnp.float32)

    fwd = jax.jit(raal_forward)
    out = fwd(params, x_1, x_2, x_3, x_5)
    jax.block_until_ready(out)
    assert out.shape == (B, 1) and out.dtype == jnp.float32
    assert bool(jnp.all(jnp.isfinite(out)))
    print("KERNEL_OK")
</pallas_src>

<mosaic_0001>
module attributes {stable_mosaic.version = 11 : i64} {
  func.func @kernel(%arg0: memref<320x32xf32, #tpu.memory_space<vmem>>, %arg1: memref<2x54xf32, #tpu.memory_space<vmem>>, %arg2: memref<2x18xf32, #tpu.memory_space<vmem>>, %arg3: memref<2x28xf32, #tpu.memory_space<vmem>>, %arg4: memref<16x288xf32, #tpu.memory_space<vmem>>, %arg5: memref<40x288xf32, #tpu.memory_space<vmem>>, %arg6: memref<2x40xf32, #tpu.memory_space<vmem>>, %arg7: memref<32x64xf32, #tpu.memory_space<vmem>>, %arg8: memref<16x64xf32, #tpu.memory_space<vmem>>, %arg9: memref<1x64xf32, #tpu.memory_space<vmem>>, %arg10: memref<16x16xf32, #tpu.memory_space<vmem>>, %arg11: memref<16x1xf32, #tpu.memory_space<vmem>>, %arg12: memref<28x28xf32, #tpu.memory_space<vmem>>, %arg13: memref<28x1xf32, #tpu.memory_space<vmem>>, %arg14: memref<288x28xf32, #tpu.memory_space<vmem>>, %arg15: memref<1x28xf32, #tpu.memory_space<vmem>>, %arg16: memref<1x28xf32, #tpu.memory_space<vmem>>, %arg17: memref<1x28xf32, #tpu.memory_space<vmem>>, %arg18: memref<54x32xf32, #tpu.memory_space<vmem>>, %arg19: memref<18x32xf32, #tpu.memory_space<vmem>>, %arg20: memref<288x32xf32, #tpu.memory_space<vmem>>, %arg21: memref<1x32xf32, #tpu.memory_space<vmem>>, %arg22: memref<1x32xf32, #tpu.memory_space<vmem>>, %arg23: memref<1x32xf32, #tpu.memory_space<vmem>>, %arg24: memref<32x16xf32, #tpu.memory_space<vmem>>, %arg25: memref<28x16xf32, #tpu.memory_space<vmem>>, %arg26: memref<28x16xf32, #tpu.memory_space<vmem>>, %arg27: memref<1x16xf32, #tpu.memory_space<vmem>>, %arg28: memref<1x16xf32, #tpu.memory_space<vmem>>, %arg29: memref<1x16xf32, #tpu.memory_space<vmem>>, %arg30: memref<16x16xf32, #tpu.memory_space<vmem>>, %arg31: memref<1x16xf32, #tpu.memory_space<vmem>>, %arg32: memref<16x1xf32, #tpu.memory_space<vmem>>, %arg33: memref<1x1xf32, #tpu.memory_space<vmem>>, %arg34: memref<2x1xf32, #tpu.memory_space<vmem>>) attributes {dimension_semantics = [], scalar_prefetch = 0 : i64, scratch_operands = 0 : i64, tpu.core_type = #tpu.core_type<tc>} {
    %c0 = arith.constant 0 : index
    %c0_0 = arith.constant 0 : index
    %0 = vector.load %arg7[%c0, %c0_0] : memref<32x64xf32, #tpu.memory_space<vmem>>, vector<32x64xf32>
    %c0_1 = arith.constant 0 : index
    %c0_2 = arith.constant 0 : index
    %1 = vector.load %arg8[%c0_1, %c0_2] : memref<16x64xf32, #tpu.memory_space<vmem>>, vector<16x64xf32>
    %c0_3 = arith.constant 0 : index
    %c0_4 = arith.constant 0 : index
    %2 = vector.load %arg9[%c0_3, %c0_4] : memref<1x64xf32, #tpu.memory_space<vmem>>, vector<1x64xf32>
    %c0_5 = arith.constant 0 : index
    %c0_6 = arith.constant 0 : index
    %3 = vector.load %arg0[%c0_5, %c0_6] : memref<320x32xf32, #tpu.memory_space<vmem>>, vector<320x32xf32>
    %cst = arith.constant dense<0.000000e+00> : vector<320x64xf32>
    %4 = tpu.matmul %3, %0, %cst {dimension_numbers = #tpu.dot_dimension_numbers<[1], [0], [0], [1], [0, 0, 1, 1], [], []>} : vector<320x32xf32>, vector<32x64xf32>, vector<320x64xf32> -> vector<320x64xf32>
    %5 = vector.broadcast %2 : vector<1x64xf32> to vector<320x64xf32>
    %6 = arith.addf %4, %5 : vector<320x64xf32>
    %cst_7 = arith.constant 0.000000e+00 : f32
    %7 = vector.broadcast %cst_7 : f32 to vector<40x16xf32>
    %cst_8 = arith.constant 0.000000e+00 : f32
    %8 = vector.broadcast %cst_8 : f32 to vector<40x16xf32>
    %9 = vector.extract_strided_slice %6 {offsets = [0, 0], sizes = [40, 64], strides = [1, 1]} : vector<320x64xf32> to vector<40x64xf32>
    %cst_9 = arith.constant dense<0.000000e+00> : vector<40x64xf32>
    %10 = tpu.matmul %7, %1, %cst_9 {dimension_numbers = #tpu.dot_dimension_numbers<[1], [0], [0], [1], [0, 0, 1, 1], [], []>} : vector<40x16xf32>, vector<16x64xf32>, vector<40x64xf32> -> vector<40x64xf32>
    %11 = arith.addf %9, %10 : vector<40x64xf32>
    %12 = arith.negf %11 : vector<40x64xf32>
    %13 = math.exp %12 : vector<40x64xf32>
    %cst_10 = arith.constant 1.000000e+00 : f32
    %14 = vector.broadcast %cst_10 : f32 to vector<40x64xf32>
    %15 = arith.addf %14, %13 : vector<40x64xf32>
    %16 = arith.divf %14, %15 : vector<40x64xf32>
    %17 = vector.extract_strided_slice %16 {offsets = [0, 0], sizes = [40, 16], strides = [1, 1]} : vector<40x64xf32> to vector<40x16xf32>
    %18 = vector.extract_strided_slice %16 {offsets = [0, 16], sizes = [40, 16], strides = [1, 1]} : vector<40x64xf32> to vector<40x16xf32>
    %19 = vector.extract_strided_slice %16 {offsets = [0, 48], sizes = [40, 16], strides = [1, 1]} : vector<40x64xf32> to vector<40x16xf32>
    %20 = vector.extract_strided_slice %11 {offsets = [0, 32], sizes = [40, 16], strides = [1, 1]} : vector<40x64xf32> to vector<40x16xf32>
    %21 = math.tanh %20 : vector<40x16xf32>
    %22 = arith.mulf %18, %8 : vector<40x16xf32>
    %23 = arith.mulf %17, %21 : vector<40x16xf32>
    %24 = arith.addf %22, %23 : vector<40x16xf32>
    %25 = math.tanh %24 : vector<40x16xf32>
    %26 = arith.mulf %19, %25 : vector<40x16xf32>
    %27 = vector.extract_strided_slice %6 {offsets = [40, 0], sizes = [40, 64], strides = [1, 1]} : vector<320x64xf32> to vector<40x64xf32>
    %cst_11 = arith.constant dense<0.000000e+00> : vector<40x64xf32>
    %28 = tpu.matmul %26, %1, %cst_11 {dimension_numbers = #tpu.dot_dimension_numbers<[1], [0], [0], [1], [0, 0, 1, 1], [], []>} : vector<40x16xf32>, vector<16x64xf32>, vector<40x64xf32> -> vector<40x64xf32>
    %29 = arith.addf %27, %28 : vector<40x64xf32>
    %30 = arith.negf %29 : vector<40x64xf32>
    %31 = math.exp %30 : vector<40x64xf32>
    %cst_12 = arith.constant 1.000000e+00 : f32
    %32 = vector.broadcast %cst_12 : f32 to vector<40x64xf32>
    %33 = arith.addf %32, %31 : vector<40x64xf32>
    %34 = arith.divf %32, %33 : vector<40x64xf32>
    %35 = vector.extract_strided_slice %34 {offsets = [0, 0], sizes = [40, 16], strides = [1, 1]} : vector<40x64xf32> to vector<40x16xf32>
    %36 = vector.extract_strided_slice %34 {offsets = [0, 16], sizes = [40, 16], strides = [1, 1]} : vector<40x64xf32> to vector<40x16xf32>
    %37 = vector.extract_strided_slice %34 {offsets = [0, 48], sizes = [40, 16], strides = [1, 1]} : vector<40x64xf32> to vector<40x16xf32>
    %38 = vector.extract_strided_slice %29 {offsets = [0, 32], sizes = [40, 16], strides = [1, 1]} : vector<40x64xf32> to vector<40x16xf32>
    %39 = math.tanh %38 : vector<40x16xf32>
    %40 = arith.mulf %36, %24 : vector<40x16xf32>
    %41 = arith.mulf %35, %39 : vector<40x16xf32>
    %42 = arith.addf %40, %41 : vector<40x16xf32>
    %43 = math.tanh %42 : vector<40x16xf32>
    %44 = arith.mulf %37, %43 : vector<40x16xf32>
    %45 = vector.extract_strided_slice %6 {offsets = [80, 0], sizes = [40, 64], strides = [1, 1]} : vector<320x64xf32> to vector<40x64xf32>
    %cst_13 = arith.constant dense<0.000000e+00> : vector<40x64xf32>
    %46 = tpu.matmul %44, %1, %cst_13 {dimension_numbers = #tpu.dot_dimension_numbers<[1], [0], [0], [1], [0, 0, 1, 1], [], []>} : vector<40x16xf32>, vector<16x64xf32>, vector<40x64xf32> -> vector<40x64xf32>
    %47 = arith.addf %45, %46 : vector<40x64xf32>
    %48 = arith.negf %47 : vector<40x64xf32>
    %49 = math.exp %48 : vector<40x64xf32>
    %cst_14 = arith.constant 1.000000e+00 : f32
    %50 = vector.broadcast %cst_14 : f32 to vector<40x64xf32>
    %51 = arith.addf %50, %49 : vector<40x64xf32>
    %52 = arith.divf %50, %51 : vector<40x64xf32>
    %53 = vector.extract_strided_slice %52 {offsets = [0, 0], sizes = [40, 16], strides = [1, 1]} : vector<40x64xf32> to vector<40x16xf32>
    %54 = vector.extract_strided_slice %52 {offsets = [0, 16], sizes = [40, 16], strides = [1, 1]} : vector<40x64xf32> to vector<40x16xf32>
    %55 = vector.extract_strided_slice %52 {offsets = [0, 48], sizes = [40, 16], strides = [1, 1]} : vector<40x64xf32> to vector<40x16xf32>
    %56 = vector.extract_strided_slice %47 {offsets = [0, 32], sizes = [40, 16], strides = [1, 1]} : vector<40x64xf32> to vector<40x16xf32>
    %57 = math.tanh %56 : vector<40x16xf32>
    %58 = arith.mulf %54, %42 : vector<40x16xf32>
    %59 = arith.mulf %53, %57 : vector<40x16xf32>
    %60 = arith.addf %58, %59 : vector<40x16xf32>
    %61 = math.tanh %60 : vector<40x16xf32>
    %62 = arith.mulf %55, %61 : vector<40x16xf32>
    %63 = vector.extract_strided_slice %6 {offsets = [120, 0], sizes = [40, 64], strides = [1, 1]} : vector<320x64xf32> to vector<40x64xf32>
    %cst_15 = arith.constant dense<0.000000e+00> : vector<40x64xf32>
    %64 = tpu.matmul %62, %1, %cst_15 {dimension_numbers = #tpu.dot_dimension_numbers<[1], [0], [0], [1], [0, 0, 1, 1], [], []>} : vector<40x16xf32>, vector<16x64xf32>, vector<40x64xf32> -> vector<40x64xf32>
    %65 = arith.addf %63, %64 : vector<40x64xf32>
    %66 = arith.negf %65 : vector<40x64xf32>
    %67 = math.exp %66 : vector<40x64xf32>
    %cst_16 = arith.constant 1.000000e+00 : f32
    %68 = vector.broadcast %cst_16 : f32 to vector<40x64xf32>
    %69 = arith.addf %68, %67 : vector<40x64xf32>
    %70 = arith.divf %68, %69 : vector<40x64xf32>
    %71 = vector.extract_strided_slice %70 {offsets = [0, 0], sizes = [40, 16], strides = [1, 1]} : vector<40x64xf32> to vector<40x16xf32>
    %72 = vector.extract_strided_slice %70 {offsets = [0, 16], sizes = [40, 16], strides = [1, 1]} : vector<40x64xf32> to vector<40x16xf32>
    %73 = vector.extract_strided_slice %70 {offsets = [0, 48], sizes = [40, 16], strides = [1, 1]} : vector<40x64xf32> to vector<40x16xf32>
    %74 = vector.extract_strided_slice %65 {offsets = [0, 32], sizes = [40, 16], strides = [1, 1]} : vector<40x64xf32> to vector<40x16xf32>
    %75 = math.tanh %74 : vector<40x16xf32>
    %76 = arith.mulf %72, %60 : vector<40x16xf32>
    %77 = arith.mulf %71, %75 : vector<40x16xf32>
    %78 = arith.addf %76, %77 : vector<40x16xf32>
    %79 = math.tanh %78 : vector<40x16xf32>
    %80 = arith.mulf %73, %79 : vector<40x16xf32>
    %81 = vector.extract_strided_slice %6 {offsets = [160, 0], sizes = [40, 64], strides = [1, 1]} : vector<320x64xf32> to vector<40x64xf32>
    %cst_17 = arith.constant dense<0.000000e+00> : vector<40x64xf32>
    %82 = tpu.matmul %80, %1, %cst_17 {dimension_numbers = #tpu.dot_dimension_numbers<[1], [0], [0], [1], [0, 0, 1, 1], [], []>} : vector<40x16xf32>, vector<16x64xf32>, vector<40x64xf32> -> vector<40x64xf32>
    %83 = arith.addf %81, %82 : vector<40x64xf32>
    %84 = arith.negf %83 : vector<40x64xf32>
    %85 = math.exp %84 : vector<40x64xf32>
    %cst_18 = arith.constant 1.000000e+00 : f32
    %86 = vector.broadcast %cst_18 : f32 to vector<40x64xf32>
    %87 = arith.addf %86, %85 : vector<40x64xf32>
    %88 = arith.divf %86, %87 : vector<40x64xf32>
    %89 = vector.extract_strided_slice %88 {offsets = [0, 0], sizes = [40, 16], strides = [1, 1]} : vector<40x64xf32> to vector<40x16xf32>
    %90 = vector.extract_strided_slice %88 {offsets = [0, 16], sizes = [40, 16], strides = [1, 1]} : vector<40x64xf32> to vector<40x16xf32>
    %91 = vector.extract_strided_slice %88 {offsets = [0, 48], sizes = [40, 16], strides = [1, 1]} : vector<40x64xf32> to vector<40x16xf32>
    %92 = vector.extract_strided_slice %83 {offsets = [0, 32], sizes = [40, 16], strides = [1, 1]} : vector<40x64xf32> to vector<40x16xf32>
    %93 = math.tanh %92 : vector<40x16xf32>
    %94 = arith.mulf %90, %78 : vector<40x16xf32>
    %95 = arith.mulf %89, %93 : vector<40x16xf32>
    %96 = arith.addf %94, %95 : vector<40x16xf32>
    %97 = math.tanh %96 : vector<40x16xf32>
    %98 = arith.mulf %91, %97 : vector<40x16xf32>
    %99 = vector.extract_strided_slice %6 {offsets = [200, 0], sizes = [40, 64], strides = [1, 1]} : vector<320x64xf32> to vector<40x64xf32>
    %cst_19 = arith.constant dense<0.000000e+00> : vector<40x64xf32>
    %100 = tpu.matmul %98, %1, %cst_19 {dimension_numbers = #tpu.dot_dimension_numbers<[1], [0], [0], [1], [0, 0, 1, 1], [], []>} : vector<40x16xf32>, vector<16x64xf32>, vector<40x64xf32> -> vector<40x64xf32>
    %101 = arith.addf %99, %100 : vector<40x64xf32>
    %102 = arith.negf %101 : vector<40x64xf32>
    %103 = math.exp %102 : vector<40x64xf32>
    %cst_20 = arith.constant 1.000000e+00 : f32
    %104 = vector.broadcast %cst_20 : f32 to vector<40x64xf32>
    %105 = arith.addf %104, %103 : vector<40x64xf32>
    %106 = arith.divf %104, %105 : vector<40x64xf32>
    %107 = vector.extract_strided_slice %106 {offsets = [0, 0], sizes = [40, 16], strides = [1, 1]} : vector<40x64xf32> to vector<40x16xf32>
    %108 = vector.extract_strided_slice %106 {offsets = [0, 16], sizes = [40, 16], strides = [1, 1]} : vector<40x64xf32> to vector<40x16xf32>
    %109 = vector.extract_strided_slice %106 {offsets = [0, 48], sizes = [40, 16], strides = [1, 1]} : vector<40x64xf32> to vector<40x16xf32>
    %110 = vector.extract_strided_slice %101 {offsets = [0, 32], sizes = [40, 16], strides = [1, 1]} : vector<40x64xf32> to vector<40x16xf32>
    %111 = math.tanh %110 : vector<40x16xf32>
    %112 = arith.mulf %108, %96 : vector<40x16xf32>
    %113 = arith.mulf %107, %111 : vector<40x16xf32>
    %114 = arith.addf %112, %113 : vector<40x16xf32>
    %115 = math.tanh %114 : vector<40x16xf32>
    %116 = arith.mulf %109, %115 : vector<40x16xf32>
    %117 = vector.extract_strided_slice %6 {offsets = [240, 0], sizes = [40, 64], strides = [1, 1]} : vector<320x64xf32> to vector<40x64xf32>
    %cst_21 = arith.constant dense<0.000000e+00> : vector<40x64xf32>
    %118 = tpu.matmul %116, %1, %cst_21 {dimension_numbers = #tpu.dot_dimension_numbers<[1], [0], [0], [1], [0, 0, 1, 1], [], []>} : vector<40x16xf32>, vector<16x64xf32>, vector<40x64xf32> -> vector<40x64xf32>
    %119 = arith.addf %117, %118 : vector<40x64xf32>
    %120 = arith.negf %119 : vector<40x64xf32>
    %121 = math.exp %120 : vector<40x64xf32>
    %cst_22 = arith.constant 1.000000e+00 : f32
    %122 = vector.broadcast %cst_22 : f32 to vector<40x64xf32>
    %123 = arith.addf %122, %121 : vector<40x64xf32>
    %124 = arith.divf %122, %123 : vector<40x64xf32>
    %125 = vector.extract_strided_slice %124 {offsets = [0, 0], sizes = [40, 16], strides = [1, 1]} : vector<40x64xf32> to vector<40x16xf32>
    %126 = vector.extract_strided_slice %124 {offsets = [0, 16], sizes = [40, 16], strides = [1, 1]} : vector<40x64xf32> to vector<40x16xf32>
    %127 = vector.extract_strided_slice %124 {offsets = [0, 48], sizes = [40, 16], strides = [1, 1]} : vector<40x64xf32> to vector<40x16xf32>
    %128 = vector.extract_strided_slice %119 {offsets = [0, 32], sizes = [40, 16], strides = [1, 1]} : vector<40x64xf32> to vector<40x16xf32>
    %129 = math.tanh %128 : vector<40x16xf32>
    %130 = arith.mulf %126, %114 : vector<40x16xf32>
    %131 = arith.mulf %125, %129 : vector<40x16xf32>
    %132 = arith.addf %130, %131 : vector<40x16xf32>
    %133 = math.tanh %132 : vector<40x16xf32>
    %134 = arith.mulf %127, %133 : vector<40x16xf32>
    %135 = vector.extract_strided_slice %6 {offsets = [280, 0], sizes = [40, 64], strides = [1, 1]} : vector<320x64xf32> to vector<40x64xf32>
    %cst_23 = arith.constant dense<0.000000e+00> : vector<40x64xf32>
    %136 = tpu.matmul %134, %1, %cst_23 {dimension_numbers = #tpu.dot_dimension_numbers<[1], [0], [0], [1], [0, 0, 1, 1], [], []>} : vector<40x16xf32>, vector<16x64xf32>, vector<40x64xf32> -> vector<40x64xf32>
    %137 = arith.addf %135, %136 : vector<40x64xf32>
    %138 = arith.negf %137 : vector<40x64xf32>
    %139 = math.exp %138 : vector<40x64xf32>
    %cst_24 = arith.constant 1.000000e+00 : f32
    %140 = vector.broadcast %cst_24 : f32 to vector<40x64xf32>
    %141 = arith.addf %140, %139 : vector<40x64xf32>
    %142 = arith.divf %140, %141 : vector<40x64xf32>
    %143 = vector.extract_strided_slice %142 {offsets = [0, 0], sizes = [40, 16], strides = [1, 1]} : vector<40x64xf32> to vector<40x16xf32>
    %144 = vector.extract_strided_slice %142 {offsets = [0, 16], sizes = [40, 16], strides = [1, 1]} : vector<40x64xf32> to vector<40x16xf32>
    %145 = vector.extract_strided_slice %142 {offsets = [0, 48], sizes = [40, 16], strides = [1, 1]} : vector<40x64xf32> to vector<40x16xf32>
    %146 = vector.extract_strided_slice %137 {offsets = [0, 32], sizes = [40, 16], strides = [1, 1]} : vector<40x64xf32> to vector<40x16xf32>
    %147 = math.tanh %146 : vector<40x16xf32>
    %148 = arith.mulf %144, %132 : vector<40x16xf32>
    %149 = arith.mulf %143, %147 : vector<40x16xf32>
    %150 = arith.addf %148, %149 : vector<40x16xf32>
    %151 = math.tanh %150 : vector<40x16xf32>
    %152 = arith.mulf %145, %151 : vector<40x16xf32>
    %c0_25 = arith.constant 0 : index
    %c0_26 = arith.constant 0 : index
    %153 = vector.load %arg10[%c0_25, %c0_26] : memref<16x16xf32, #tpu.memory_space<vmem>>, vector<16x16xf32>
    %cst_27 = arith.constant dense<0.000000e+00> : vector<40x16xf32>
    %154 = tpu.matmul %152, %153, %cst_27 {dimension_numbers = #tpu.dot_dimension_numbers<[1], [0], [0], [1], [0, 0, 1, 1], [], []>} : vector<40x16xf32>, vector<16x16xf32>, vector<40x16xf32> -> vector<40x16xf32>
    %155 = math.tanh %154 : vector<40x16xf32>
    %c0_28 = arith.constant 0 : index
    %c0_29 = arith.constant 0 : index
    %156 = vector.load %arg11[%c0_28, %c0_29] : memref<16x1xf32, #tpu.memory_space<vmem>>, vector<16x1xf32>
    %cst_30 = arith.constant dense<0.000000e+00> : vector<40x1xf32>
    %157 = tpu.matmul %155, %156, %cst_30 {dimension_numbers = #tpu.dot_dimension_numbers<[1], [0], [0], [1], [0, 0, 1, 1], [], []>} : vector<40x16xf32>, vector<16x1xf32>, vector<40x1xf32> -> vector<40x1xf32>
    %cst_31 = arith.constant dense<0xFF800000> : vector<1xf32>
    %158 = vector.multi_reduction <maximumf>, %157, %cst_31 [0] : vector<40x1xf32> to vector<1xf32>
    %159 = vector.shape_cast %158 : vector<1xf32> to vector<1x1xf32>
    %160 = vector.broadcast %159 : vector<1x1xf32> to vector<40x1xf32>
    %161 = arith.subf %157, %160 : vector<40x1xf32>
    %162 = math.exp %161 : vector<40x1xf32>
    %163 = tpu.iota {dimensions = array<i32: 0>} : vector<40x1xi32>
    %cst_32 = arith.constant 1.000000e+00 : f32
    %164 = vector.broadcast %cst_32 : f32 to vector<40x1xf32>
    %c0_i32 = arith.constant 0 : i32
    %165 = vector.broadcast %c0_i32 : i32 to vector<40x1xi32>
    %166 = arith.cmpi sge, %163, %165 : vector<40x1xi32>
    %c18_i32 = arith.constant 18 : i32
    %167 = vector.broadcast %c18_i32 : i32 to vector<40x1xi32>
    %168 = arith.cmpi slt, %163, %167 : vector<40x1xi32>
    %169 = arith.andi %166, %168 : vector<40x1xi1>
    %cst_33 = arith.constant 0.000000e+00 : f32
    %170 = vector.broadcast %cst_33 : f32 to vector<40x1xf32>
    %171 = arith.select %169, %162, %170 : vector<40x1xi1>, vector<40x1xf32>
    %cst_34 = arith.constant dense<0.000000e+00> : vector<1xf32>
    %172 = vector.multi_reduction <add>, %171, %cst_34 [0] : vector<40x1xf32> to vector<1xf32>
    %173 = vector.shape_cast %172 : vector<1xf32> to vector<1x1xf32>
    %174 = vector.shape_cast %173 : vector<1x1xf32> to vector<1x1xf32>
    %175 = vector.broadcast %174 : vector<1x1xf32> to vector<40x1xf32>
    %176 = arith.select %169, %175, %164 : vector<40x1xi1>, vector<40x1xf32>
    %c18_i32_35 = arith.constant 18 : i32
    %177 = vector.broadcast %c18_i32_35 : i32 to vector<40x1xi32>
    %178 = arith.cmpi sge, %163, %177 : vector<40x1xi32>
    %c36_i32 = arith.constant 36 : i32
    %179 = vector.broadcast %c36_i32 : i32 to vector<40x1xi32>
    %180 = arith.cmpi slt, %163, %179 : vector<40x1xi32>
    %181 = arith.andi %178, %180 : vector<40x1xi1>
    %cst_36 = arith.constant 0.000000e+00 : f32
    %182 = vector.broadcast %cst_36 : f32 to vector<40x1xf32>
    %183 = arith.select %181, %162, %182 : vector<40x1xi1>, vector<40x1xf32>
    %cst_37 = arith.constant dense<0.000000e+00> : vector<1xf32>
    %184 = vector.multi_reduction <add>, %183, %cst_37 [0] : vector<40x1xf32> to vector<1xf32>
    %185 = vector.shape_cast %184 : vector<1xf32> to vector<1x1xf32>
    %186 = vector.shape_cast %185 : vector<1x1xf32> to vector<1x1xf32>
    %187 = vector.broadcast %186 : vector<1x1xf32> to vector<40x1xf32>
    %188 = arith.select %181, %187, %176 : vector<40x1xi1>, vector<40x1xf32>
    %189 = arith.divf %162, %188 : vector<40x1xf32>
    %c0_38 = arith.constant 0 : index
    %c0_39 = arith.constant 0 : index
    %190 = vector.load %arg4[%c0_38, %c0_39] : memref<16x288xf32, #tpu.memory_space<vmem>>, vector<16x288xf32>
    %cst_40 = arith.constant dense<0.000000e+00> : vector<40x288xf32>
    %191 = tpu.matmul %152, %190, %cst_40 {dimension_numbers = #tpu.dot_dimension_numbers<[1], [0], [0], [1], [0, 0, 1, 1], [], []>} : vector<40x16xf32>, vector<16x288xf32>, vector<40x288xf32> -> vector<40x288xf32>
    %c0_41 = arith.constant 0 : index
    %c0_42 = arith.constant 0 : index
    %192 = vector.load %arg5[%c0_41, %c0_42] : memref<40x288xf32, #tpu.memory_space<vmem>>, vector<40x288xf32>
    %193 = arith.mulf %191, %192 : vector<40x288xf32>
    %c0_43 = arith.constant 0 : index
    %c0_44 = arith.constant 0 : index
    %194 = vector.load %arg6[%c0_43, %c0_44] : memref<2x40xf32, #tpu.memory_space<vmem>>, vector<2x40xf32>
    %cst_45 = arith.constant dense<0.000000e+00> : vector<2x288xf32>
    %195 = tpu.matmul %194, %193, %cst_45 {dimension_numbers = #tpu.dot_dimension_numbers<[1], [0], [0], [1], [0, 0, 1, 1], [], []>} : vector<2x40xf32>, vector<40x288xf32>, vector<2x288xf32> -> vector<2x288xf32>
    %196 = vector.broadcast %189 : vector<40x1xf32> to vector<40x288xf32>
    %197 = arith.mulf %193, %196 : vector<40x288xf32>
    %cst_46 = arith.constant dense<0.000000e+00> : vector<2x288xf32>
    %198 = tpu.matmul %194, %197, %cst_46 {dimension_numbers = #tpu.dot_dimension_numbers<[1], [0], [0], [1], [0, 0, 1, 1], [], []>} : vector<2x40xf32>, vector<40x288xf32>, vector<2x288xf32> -> vector<2x288xf32>
    %c0_47 = arith.constant 0 : index
    %c0_48 = arith.constant 0 : index
    %199 = vector.load %arg3[%c0_47, %c0_48] : memref<2x28xf32, #tpu.memory_space<vmem>>, vector<2x28xf32>
    %c0_49 = arith.constant 0 : index
    %c0_50 = arith.constant 0 : index
    %200 = vector.load %arg12[%c0_49, %c0_50] : memref<28x28xf32, #tpu.memory_space<vmem>>, vector<28x28xf32>
    %cst_51 = arith.constant dense<0.000000e+00> : vector<2x28xf32>
    %201 = tpu.matmul %199, %200, %cst_51 {dimension_numbers = #tpu.dot_dimension_numbers<[1], [0], [0], [1], [0, 0, 1, 1], [], []>} : vector<2x28xf32>, vector<28x28xf32>, vector<2x28xf32> -> vector<2x28xf32>
    %202 = math.tanh %201 : vector<2x28xf32>
    %c0_52 = arith.constant 0 : index
    %c0_53 = arith.constant 0 : index
    %203 = vector.load %arg13[%c0_52, %c0_53] : memref<28x1xf32, #tpu.memory_space<vmem>>, vector<28x1xf32>
    %cst_54 = arith.constant dense<0.000000e+00> : vector<2x1xf32>
    %204 = tpu.matmul %202, %203, %cst_54 {dimension_numbers = #tpu.dot_dimension_numbers<[1], [0], [0], [1], [0, 0, 1, 1], [], []>} : vector<2x28xf32>, vector<28x1xf32>, vector<2x1xf32> -> vector<2x1xf32>
    %cst_55 = arith.constant dense<0xFF800000> : vector<2xf32>
    %205 = vector.multi_reduction <maximumf>, %204, %cst_55 [1] : vector<2x1xf32> to vector<2xf32>
    %cst_56 = arith.constant 0xFF800000 : f32
    %206 = vector.broadcast %cst_56 : f32 to vector<2xf32>
    %207 = arith.maximumf %206, %205 : vector<2xf32>
    %208 = vector.shape_cast %207 : vector<2xf32> to vector<2x1xf32>
    %209 = arith.subf %204, %208 : vector<2x1xf32>
    %210 = math.exp %209 : vector<2x1xf32>
    %cst_57 = arith.constant dense<0.000000e+00> : vector<2xf32>
    %211 = vector.multi_reduction <add>, %210, %cst_57 [1] : vector<2x1xf32> to vector<2xf32>
    %212 = vector.shape_cast %211 : vector<2xf32> to vector<2x1xf32>
    %213 = arith.divf %210, %212 : vector<2x1xf32>
    %214 = vector.broadcast %213 : vector<2x1xf32> to vector<2x28xf32>
    %215 = arith.mulf %199, %214 : vector<2x28xf32>
    %c0_58 = arith.constant 0 : index
    %c0_59 = arith.constant 0 : index
    %216 = vector.load %arg14[%c0_58, %c0_59] : memref<288x28xf32, #tpu.memory_space<vmem>>, vector<288x28xf32>
    %cst_60 = arith.constant dense<0.000000e+00> : vector<2x28xf32>
    %217 = tpu.matmul %195, %216, %cst_60 {dimension_numbers = #tpu.dot_dimension_numbers<[1], [0], [0], [1], [0, 0, 1, 1], [], []>} : vector<2x288xf32>, vector<288x28xf32>, vector<2x28xf32> -> vector<2x28xf32>
    %c0_61 = arith.constant 0 : index
    %c0_62 = arith.constant 0 : index
    %218 = vector.load %arg15[%c0_61, %c0_62] : memref<1x28xf32, #tpu.memory_space<vmem>>, vector<1x28xf32>
    %219 = vector.broadcast %218 : vector<1x28xf32> to vector<2x28xf32>
    %220 = arith.addf %217, %219 : vector<2x28xf32>
    %c0_63 = arith.constant 0 : index
    %c0_64 = arith.constant 0 : index
    %221 = vector.load %arg16[%c0_63, %c0_64] : memref<1x28xf32, #tpu.memory_space<vmem>>, vector<1x28xf32>
    %c0_65 = arith.constant 0 : index
    %c0_66 = arith.constant 0 : index
    %222 = vector.load %arg17[%c0_65, %c0_66] : memref<1x28xf32, #tpu.memory_space<vmem>>, vector<1x28xf32>
    %cst_67 = arith.constant dense<0.000000e+00> : vector<28xf32>
    %223 = vector.multi_reduction <add>, %220, %cst_67 [0] : vector<2x28xf32> to vector<28xf32>
    %224 = vector.shape_cast %223 : vector<28xf32> to vector<1x28xf32>
    %cst_68 = arith.constant 2.000000e+00 : f32
    %225 = vector.broadcast %cst_68 : f32 to vector<1x28xf32>
    %226 = arith.divf %224, %225 : vector<1x28xf32>
    %227 = vector.broadcast %226 : vector<1x28xf32> to vector<2x28xf32>
    %228 = arith.subf %220, %227 : vector<2x28xf32>
    %229 = arith.mulf %228, %228 : vector<2x28xf32>
    %cst_69 = arith.constant dense<0.000000e+00> : vector<28xf32>
    %230 = vector.multi_reduction <add>, %229, %cst_69 [0] : vector<2x28xf32> to vector<28xf32>
    %231 = vector.shape_cast %230 : vector<28xf32> to vector<1x28xf32>
    %cst_70 = arith.constant 2.000000e+00 : f32
    %232 = vector.broadcast %cst_70 : f32 to vector<1x28xf32>
    %233 = arith.divf %231, %232 : vector<1x28xf32>
    %234 = vector.broadcast %226 : vector<1x28xf32> to vector<2x28xf32>
    %235 = arith.subf %220, %234 : vector<2x28xf32>
    %cst_71 = arith.constant 9.99999974E-6 : f32
    %236 = vector.broadcast %cst_71 : f32 to vector<1x28xf32>
    %237 = arith.addf %233, %236 : vector<1x28xf32>
    %238 = math.rsqrt %237 : vector<1x28xf32>
    %239 = vector.broadcast %238 : vector<1x28xf32> to vector<2x28xf32>
    %240 = arith.mulf %235, %239 : vector<2x28xf32>
    %241 = vector.broadcast %221 : vector<1x28xf32> to vector<2x28xf32>
    %242 = arith.mulf %240, %241 : vector<2x28xf32>
    %243 = vector.broadcast %222 : vector<1x28xf32> to vector<2x28xf32>
    %244 = arith.addf %242, %243 : vector<2x28xf32>
    %cst_72 = arith.constant 0.000000e+00 : f32
    %245 = vector.broadcast %cst_72 : f32 to vector<2x28xf32>
    %246 = arith.cmpf oge, %244, %245 : vector<2x28xf32>
    %cst_73 = arith.constant 0.00999999977 : f32
    %247 = vector.broadcast %cst_73 : f32 to vector<2x28xf32>
    %248 = arith.mulf %247, %244 : vector<2x28xf32>
    %249 = arith.select %246, %244, %248 : vector<2x28xi1>, vector<2x28xf32>
    %250 = arith.mulf %249, %215 : vector<2x28xf32>
    %c0_74 = arith.constant 0 : index
    %c0_75 = arith.constant 0 : index
    %251 = vector.load %arg1[%c0_74, %c0_75] : memref<2x54xf32, #tpu.memory_space<vmem>>, vector<2x54xf32>
    %c0_76 = arith.constant 0 : index
    %c0_77 = arith.constant 0 : index
    %252 = vector.load %arg18[%c0_76, %c0_77] : memref<54x32xf32, #tpu.memory_space<vmem>>, vector<54x32xf32>
    %cst_78 = arith.constant dense<0.000000e+00> : vector<2x32xf32>
    %253 = tpu.matmul %251, %252, %cst_78 {dimension_numbers = #tpu.dot_dimension_numbers<[1], [0], [0], [1], [0, 0, 1, 1], [], []>} : vector<2x54xf32>, vector<54x32xf32>, vector<2x32xf32> -> vector<2x32xf32>
    %c0_79 = arith.constant 0 : index
    %c0_80 = arith.constant 0 : index
    %254 = vector.load %arg2[%c0_79, %c0_80] : memref<2x18xf32, #tpu.memory_space<vmem>>, vector<2x18xf32>
    %c0_81 = arith.constant 0 : index
    %c0_82 = arith.constant 0 : index
    %255 = vector.load %arg19[%c0_81, %c0_82] : memref<18x32xf32, #tpu.memory_space<vmem>>, vector<18x32xf32>
    %cst_83 = arith.constant dense<0.000000e+00> : vector<2x32xf32>
    %256 = tpu.matmul %254, %255, %cst_83 {dimension_numbers = #tpu.dot_dimension_numbers<[1], [0], [0], [1], [0, 0, 1, 1], [], []>} : vector<2x18xf32>, vector<18x32xf32>, vector<2x32xf32> -> vector<2x32xf32>
    %257 = arith.addf %253, %256 : vector<2x32xf32>
    %c0_84 = arith.constant 0 : index
    %c0_85 = arith.constant 0 : index
    %258 = vector.load %arg20[%c0_84, %c0_85] : memref<288x32xf32, #tpu.memory_space<vmem>>, vector<288x32xf32>
    %cst_86 = arith.constant dense<0.000000e+00> : vector<2x32xf32>
    %259 = tpu.matmul %198, %258, %cst_86 {dimension_numbers = #tpu.dot_dimension_numbers<[1], [0], [0], [1], [0, 0, 1, 1], [], []>} : vector<2x288xf32>, vector<288x32xf32>, vector<2x32xf32> -> vector<2x32xf32>
    %260 = arith.addf %257, %259 : vector<2x32xf32>
    %c0_87 = arith.constant 0 : index
    %c0_88 = arith.constant 0 : index
    %261 = vector.load %arg21[%c0_87, %c0_88] : memref<1x32xf32, #tpu.memory_space<vmem>>, vector<1x32xf32>
    %262 = vector.broadcast %261 : vector<1x32xf32> to vector<2x32xf32>
    %263 = arith.addf %260, %262 : vector<2x32xf32>
    %c0_89 = arith.constant 0 : index
    %c0_90 = arith.constant 0 : index
    %264 = vector.load %arg22[%c0_89, %c0_90] : memref<1x32xf32, #tpu.memory_space<vmem>>, vector<1x32xf32>
    %c0_91 = arith.constant 0 : index
    %c0_92 = arith.constant 0 : index
    %265 = vector.load %arg23[%c0_91, %c0_92] : memref<1x32xf32, #tpu.memory_space<vmem>>, vector<1x32xf32>
    %cst_93 = arith.constant dense<0.000000e+00> : vector<32xf32>
    %266 = vector.multi_reduction <add>, %263, %cst_93 [0] : vector<2x32xf32> to vector<32xf32>
    %267 = vector.shape_cast %266 : vector<32xf32> to vector<1x32xf32>
    %cst_94 = arith.constant 2.000000e+00 : f32
    %268 = vector.broadcast %cst_94 : f32 to vector<1x32xf32>
    %269 = arith.divf %267, %268 : vector<1x32xf32>
    %270 = vector.broadcast %269 : vector<1x32xf32> to vector<2x32xf32>
    %271 = arith.subf %263, %270 : vector<2x32xf32>
    %272 = arith.mulf %271, %271 : vector<2x32xf32>
    %cst_95 = arith.constant dense<0.000000e+00> : vector<32xf32>
    %273 = vector.multi_reduction <add>, %272, %cst_95 [0] : vector<2x32xf32> to vector<32xf32>
    %274 = vector.shape_cast %273 : vector<32xf32> to vector<1x32xf32>
    %cst_96 = arith.constant 2.000000e+00 : f32
    %275 = vector.broadcast %cst_96 : f32 to vector<1x32xf32>
    %276 = arith.divf %274, %275 : vector<1x32xf32>
    %277 = vector.broadcast %269 : vector<1x32xf32> to vector<2x32xf32>
    %278 = arith.subf %263, %277 : vector<2x32xf32>
    %cst_97 = arith.constant 9.99999974E-6 : f32
    %279 = vector.broadcast %cst_97 : f32 to vector<1x32xf32>
    %280 = arith.addf %276, %279 : vector<1x32xf32>
    %281 = math.rsqrt %280 : vector<1x32xf32>
    %282 = vector.broadcast %281 : vector<1x32xf32> to vector<2x32xf32>
    %283 = arith.mulf %278, %282 : vector<2x32xf32>
    %284 = vector.broadcast %264 : vector<1x32xf32> to vector<2x32xf32>
    %285 = arith.mulf %283, %284 : vector<2x32xf32>
    %286 = vector.broadcast %265 : vector<1x32xf32> to vector<2x32xf32>
    %287 = arith.addf %285, %286 : vector<2x32xf32>
    %cst_98 = arith.constant 0.000000e+00 : f32
    %288 = vector.broadcast %cst_98 : f32 to vector<2x32xf32>
    %289 = arith.cmpf oge, %287, %288 : vector<2x32xf32>
    %cst_99 = arith.constant 0.00999999977 : f32
    %290 = vector.broadcast %cst_99 : f32 to vector<2x32xf32>
    %291 = arith.mulf %290, %287 : vector<2x32xf32>
    %292 = arith.select %289, %287, %291 : vector<2x32xi1>, vector<2x32xf32>
    %c0_100 = arith.constant 0 : index
    %c0_101 = arith.constant 0 : index
    %293 = vector.load %arg24[%c0_100, %c0_101] : memref<32x16xf32, #tpu.memory_space<vmem>>, vector<32x16xf32>
    %cst_102 = arith.constant dense<0.000000e+00> : vector<2x16xf32>
    %294 = tpu.matmul %292, %293, %cst_102 {dimension_numbers = #tpu.dot_dimension_numbers<[1], [0], [0], [1], [0, 0, 1, 1], [], []>} : vector<2x32xf32>, vector<32x16xf32>, vector<2x16xf32> -> vector<2x16xf32>
    %c0_103 = arith.constant 0 : index
    %c0_104 = arith.constant 0 : index
    %295 = vector.load %arg25[%c0_103, %c0_104] : memref<28x16xf32, #tpu.memory_space<vmem>>, vector<28x16xf32>
    %cst_105 = arith.constant dense<0.000000e+00> : vector<2x16xf32>
    %296 = tpu.matmul %215, %295, %cst_105 {dimension_numbers = #tpu.dot_dimension_numbers<[1], [0], [0], [1], [0, 0, 1, 1], [], []>} : vector<2x28xf32>, vector<28x16xf32>, vector<2x16xf32> -> vector<2x16xf32>
    %297 = arith.addf %294, %296 : vector<2x16xf32>
    %c0_106 = arith.constant 0 : index
    %c0_107 = arith.constant 0 : index
    %298 = vector.load %arg26[%c0_106, %c0_107] : memref<28x16xf32, #tpu.memory_space<vmem>>, vector<28x16xf32>
    %cst_108 = arith.constant dense<0.000000e+00> : vector<2x16xf32>
    %299 = tpu.matmul %250, %298, %cst_108 {dimension_numbers = #tpu.dot_dimension_numbers<[1], [0], [0], [1], [0, 0, 1, 1], [], []>} : vector<2x28xf32>, vector<28x16xf32>, vector<2x16xf32> -> vector<2x16xf32>
    %300 = arith.addf %297, %299 : vector<2x16xf32>
    %c0_109 = arith.constant 0 : index
    %c0_110 = arith.constant 0 : index
    %301 = vector.load %arg27[%c0_109, %c0_110] : memref<1x16xf32, #tpu.memory_space<vmem>>, vector<1x16xf32>
    %302 = vector.broadcast %301 : vector<1x16xf32> to vector<2x16xf32>
    %303 = arith.addf %300, %302 : vector<2x16xf32>
    %c0_111 = arith.constant 0 : index
    %c0_112 = arith.constant 0 : index
    %304 = vector.load %arg28[%c0_111, %c0_112] : memref<1x16xf32, #tpu.memory_space<vmem>>, vector<1x16xf32>
    %c0_113 = arith.constant 0 : index
    %c0_114 = arith.constant 0 : index
    %305 = vector.load %arg29[%c0_113, %c0_114] : memref<1x16xf32, #tpu.memory_space<vmem>>, vector<1x16xf32>
    %cst_115 = arith.constant dense<0.000000e+00> : vector<16xf32>
    %306 = vector.multi_reduction <add>, %303, %cst_115 [0] : vector<2x16xf32> to vector<16xf32>
    %307 = vector.shape_cast %306 : vector<16xf32> to vector<1x16xf32>
    %cst_116 = arith.constant 2.000000e+00 : f32
    %308 = vector.broadcast %cst_116 : f32 to vector<1x16xf32>
    %309 = arith.divf %307, %308 : vector<1x16xf32>
    %310 = vector.broadcast %309 : vector<1x16xf32> to vector<2x16xf32>
    %311 = arith.subf %303, %310 : vector<2x16xf32>
    %312 = arith.mulf %311, %311 : vector<2x16xf32>
    %cst_117 = arith.constant dense<0.000000e+00> : vector<16xf32>
    %313 = vector.multi_reduction <add>, %312, %cst_117 [0] : vector<2x16xf32> to vector<16xf32>
    %314 = vector.shape_cast %313 : vector<16xf32> to vector<1x16xf32>
    %cst_118 = arith.constant 2.000000e+00 : f32
    %315 = vector.broadcast %cst_118 : f32 to vector<1x16xf32>
    %316 = arith.divf %314, %315 : vector<1x16xf32>
    %317 = vector.broadcast %309 : vector<1x16xf32> to vector<2x16xf32>
    %318 = arith.subf %303, %317 : vector<2x16xf32>
    %cst_119 = arith.constant 9.99999974E-6 : f32
    %319 = vector.broadcast %cst_119 : f32 to vector<1x16xf32>
    %320 = arith.addf %316, %319 : vector<1x16xf32>
    %321 = math.rsqrt %320 : vector<1x16xf32>
    %322 = vector.broadcast %321 : vector<1x16xf32> to vector<2x16xf32>
    %323 = arith.mulf %318, %322 : vector<2x16xf32>
    %324 = vector.broadcast %304 : vector<1x16xf32> to vector<2x16xf32>
    %325 = arith.mulf %323, %324 : vector<2x16xf32>
    %326 = vector.broadcast %305 : vector<1x16xf32> to vector<2x16xf32>
    %327 = arith.addf %325, %326 : vector<2x16xf32>
    %cst_120 = arith.constant 0.000000e+00 : f32
    %328 = vector.broadcast %cst_120 : f32 to vector<2x16xf32>
    %329 = arith.cmpf oge, %327, %328 : vector<2x16xf32>
    %cst_121 = arith.constant 0.00999999977 : f32
    %330 = vector.broadcast %cst_121 : f32 to vector<2x16xf32>
    %331 = arith.mulf %330, %327 : vector<2x16xf32>
    %332 = arith.select %329, %327, %331 : vector<2x16xi1>, vector<2x16xf32>
    %c0_122 = arith.constant 0 : index
    %c0_123 = arith.constant 0 : index
    %333 = vector.load %arg30[%c0_122, %c0_123] : memref<16x16xf32, #tpu.memory_space<vmem>>, vector<16x16xf32>
    %cst_124 = arith.constant dense<0.000000e+00> : vector<2x16xf32>
    %334 = tpu.matmul %332, %333, %cst_124 {dimension_numbers = #tpu.dot_dimension_numbers<[1], [0], [0], [1], [0, 0, 1, 1], [], []>} : vector<2x16xf32>, vector<16x16xf32>, vector<2x16xf32> -> vector<2x16xf32>
    %c0_125 = arith.constant 0 : index
    %c0_126 = arith.constant 0 : index
    %335 = vector.load %arg31[%c0_125, %c0_126] : memref<1x16xf32, #tpu.memory_space<vmem>>, vector<1x16xf32>
    %336 = vector.broadcast %335 : vector<1x16xf32> to vector<2x16xf32>
    %337 = arith.addf %334, %336 : vector<2x16xf32>
    %cst_127 = arith.constant 0.000000e+00 : f32
    %338 = vector.broadcast %cst_127 : f32 to vector<2x16xf32>
    %339 = arith.cmpf oge, %337, %338 : vector<2x16xf32>
    %cst_128 = arith.constant 0.00999999977 : f32
    %340 = vector.broadcast %cst_128 : f32 to vector<2x16xf32>
    %341 = arith.mulf %340, %337 : vector<2x16xf32>
    %342 = arith.select %339, %337, %341 : vector<2x16xi1>, vector<2x16xf32>
    %c0_129 = arith.constant 0 : index
    %c0_130 = arith.constant 0 : index
    %343 = vector.load %arg32[%c0_129, %c0_130] : memref<16x1xf32, #tpu.memory_space<vmem>>, vector<16x1xf32>
    %cst_131 = arith.constant dense<0.000000e+00> : vector<2x1xf32>
    %344 = tpu.matmul %342, %343, %cst_131 {dimension_numbers = #tpu.dot_dimension_numbers<[1], [0], [0], [1], [0, 0, 1, 1], [], []>} : vector<2x16xf32>, vector<16x1xf32>, vector<2x1xf32> -> vector<2x1xf32>
    %c0_132 = arith.constant 0 : index
    %c0_133 = arith.constant 0 : index
    %345 = vector.load %arg33[%c0_132, %c0_133] : memref<1x1xf32, #tpu.memory_space<vmem>>, vector<1x1xf32>
    %346 = vector.broadcast %345 : vector<1x1xf32> to vector<2x1xf32>
    %347 = arith.addf %344, %346 : vector<2x1xf32>
    %c0_134 = arith.constant 0 : index
    %c0_135 = arith.constant 0 : index
    %348 = vector.load %arg34[%c0_134, %c0_135] : memref<2x1xf32, #tpu.memory_space<vmem>>, vector<2x1xf32>
    tpu.vector_store %arg34[%c0_134, %c0_135], %347 {strides = array<i32>} : memref<2x1xf32, #tpu.memory_space<vmem>>, vector<2x1xf32>,
    return
  }
}

</mosaic_0001>

<llo_original>
// kernel: tile.9
$region0: #{tile.9}
  %s0 = inlined_call_operand.vmem [shape: f32[16,18,16], index: 0, kind: input, shape index: {}]
  %s1 = inlined_call_operand.vmem [shape: f32[16,288], index: 1, kind: output, shape index: {}]
  %v2 = vld [vmem:[%s0] ss:$8 sm:$0xf]
  %v3 = vld [vmem:[%s0] ss:$8 sm:$0xf0]
  %vm4 = vcmask 1047556
  %v5 = vsel %vm4, %v3, %v2
  %vm6 = vcmask 130048
  %7 = vst.msk [vmem:[%s1] ss:$8 sm:$0x7] %vm6, %v5
  %s8 = scalar_lea.vmem %s1, 4294967273
  %9 = vst.msk [vmem:[%s8] ss:$8 sm:$0x38] %vm6, %v5
  %s10 = scalar_lea.vmem %s1, 4294967250
  %11 = vst.msk [vmem:[%s10] ss:$8 sm:$0xc0] %vm6, %v5
  %s12 = scalar_lea.vmem %s0, 64
  %v13 = vld [vmem:[%s12] ss:$8 sm:$0xf]
  %s14 = scalar_lea.vmem %s0, 64
  %v15 = vld [vmem:[%s14] ss:$8 sm:$0xf0]
  %vm16 = vcmask 1047556
  %v17 = vsel %vm16, %v15, %v13
  %vm18 = vcmask 130048
  %s19 = scalar_lea.vmem %s1, 18
  %20 = vst.msk [vmem:[%s19] ss:$-15 sm:$0x3] %vm18, %v17
  %s21 = scalar_lea.vmem %s1, 4294967291
  %22 = vst.msk [vmem:[%s21] ss:$8 sm:$0xc] %vm18, %v17
  %s23 = scalar_lea.vmem %s1, 4294967268
  %24 = vst.msk [vmem:[%s23] ss:$8 sm:$0x70] %vm18, %v17
  %s25 = scalar_lea.vmem %s1, 4294967294
  %26 = vst.msk [vmem:[%s25] sm:$0x80] %vm18, %v17
  %s27 = scalar_lea.vmem %s0, 128
  %v28 = vld [vmem:[%s27] ss:$8 sm:$0xf]
  %s29 = scalar_lea.vmem %s0, 128
  %v30 = vld [vmem:[%s29] ss:$8 sm:$0xf0]
  %vm31 = vcmask 1047556
  %v32 = vsel %vm31, %v30, %v28
  %vm33 = vcmask 130048
  %s34 = scalar_lea.vmem %s1, 13
  %35 = vst.msk [vmem:[%s34] ss:$8 sm:$0x3] %vm33, %v32
  %s36 = scalar_lea.vmem %s1, 4294967286
  %37 = vst.msk [vmem:[%s36] ss:$8 sm:$0x1c] %vm33, %v32
  %s38 = scalar_lea.vmem %s1, 4294967263
  %39 = vst.msk [vmem:[%s38] ss:$8 sm:$0xe0] %vm33, %v32
  %s40 = scalar_lea.vmem %s0, 192
  %v41 = vld [vmem:[%s40] ss:$8 sm:$0xf]
  %s42 = scalar_lea.vmem %s0, 192
  %v43 = vld [vmem:[%s42] ss:$8 sm:$0xf0]
  %vm44 = vcmask 1047556
  %v45 = vsel %vm44, %v43, %v41
  %vm46 = vcmask 130048
  %s47 = scalar_lea.vmem %s1, 24
  %48 = vst.msk [vmem:[%s47] ss:$8 sm:$0x7] %vm46, %v45
  %s49 = scalar_lea.vmem %s1, 1
  %50 = vst.msk [vmem:[%s49] ss:$8 sm:$0x38] %vm46, %v45
  %s51 = scalar_lea.vmem %s1, 4294967274
  %52 = vst.msk [vmem:[%s51] ss:$8 sm:$0xc0] %vm46, %v45
  %s53 = scalar_lea.vmem %s0, 256
  %v54 = vld [vmem:[%s53] ss:$8 sm:$0xf]
  %s55 = scalar_lea.vmem %s0, 256
  %v56 = vld [vmem:[%s55] ss:$8 sm:$0xf0]
  %vm57 = vcmask 1047556
  %v58 = vsel %vm57, %v56, %v54
  %vm59 = vcmask 130048
  %s60 = scalar_lea.vmem %s1, 42
  %61 = vst.msk [vmem:[%s60] ss:$-15 sm:$0x3] %vm59, %v58
  %s62 = scalar_lea.vmem %s1, 19
  %63 = vst.msk [vmem:[%s62] ss:$8 sm:$0xc] %vm59, %v58
  %s64 = scalar_lea.vmem %s1, 4294967292
  %65 = vst.msk [vmem:[%s64] ss:$8 sm:$0x70] %vm59, %v58
  %s66 = scalar_lea.vmem %s1, 22
  %67 = vst.msk [vmem:[%s66] sm:$0x80] %vm59, %v58
  %s68 = scalar_lea.vmem %s0, 320
  %v69 = vld [vmem:[%s68] ss:$8 sm:$0xf]
  %s70 = scalar_lea.vmem %s0, 320
  %v71 = vld [vmem:[%s70] ss:$8 sm:$0xf0]
  %vm72 = vcmask 1047556
  %v73 = vsel %vm72, %v71, %v69
  %vm74 = vcmask 130048
  %s75 = scalar_lea.vmem %s1, 37
  %76 = vst.msk [vmem:[%s75] ss:$8 sm:$0x3] %vm74, %v73
  %s77 = scalar_lea.vmem %s1, 14
  %78 = vst.msk [vmem:[%s77] ss:$8 sm:$0x1c] %vm74, %v73
  %s79 = scalar_lea.vmem %s1, 4294967287
  %80 = vst.msk [vmem:[%s79] ss:$8 sm:$0xe0] %vm74, %v73
  %s81 = scalar_lea.vmem %s0, 7
  %v82 = vld [vmem:[%s81] ss:$24 sm:$0xf]
  %s83 = scalar_lea.vmem %s0, 7
  %v84 = vld [vmem:[%s83] ss:$24 sm:$0xf0]
  %vm85 = vcmask 1047556
  %v86 = vsel %vm85, %v84, %v82
  %87 = vrot.lane.b32.xlu0 %v86, 112
  %v88 = vpop.permute.xlu0 %87
  %vm89 = vcmask 1048448
  %90 = vst.msk [vmem:[%s1] sm:$0xff] %vm89, %v88
  %s91 = scalar_lea.vmem %s0, 207
  %v92 = vld [vmem:[%s91] ss:$24 sm:$0xf]
  %s93 = scalar_lea.vmem %s0, 207
  %v94 = vld [vmem:[%s93] ss:$24 sm:$0xf0]
  %vm95 = vcmask 1047556
  %v96 = vsel %vm95, %v94, %v92
  %97 = vrot.lane.b32.xlu0 %v96, 112
  %v98 = vpop.permute.xlu0 %97
  %vm99 = vcmask 1048448
  %s100 = scalar_lea.vmem %s1, 32
  %101 = vst.msk [vmem:[%s100] sm:$0xff] %vm99, %v98
  %s102 = scalar_lea.vmem %s0, 15
  %v103 = vld [vmem:[%s102] ss:$24 sm:$0xf]
  %s104 = scalar_lea.vmem %s0, 15
  %v105 = vld [vmem:[%s104] ss:$24 sm:$0xf0]
  %vm106 = vcmask 1047556
  %v107 = vsel %vm106, %v105, %v103
  %108 = vrot.lane.b32.xlu0 %v107, 112
  %v109 = vpop.permute.xlu0 %108
  %vm110 = vcmask 1048448
  %s111 = scalar_lea.vmem %s1, 8
  %112 = vst.msk [vmem:[%s111] sm:$0xff] %vm110, %v109
  %s113 = scalar_lea.vmem %s0, 199
  %v114 = vld [vmem:[%s113] ss:$24 sm:$0xf]
  %s115 = scalar_lea.vmem %s0, 199
  %v116 = vld [vmem:[%s115] ss:$24 sm:$0xf0]
  %vm117 = vcmask 1047556
  %v118 = vsel %vm117, %v116, %v114
  %119 = vrot.lane.b32.xlu0 %v118, 112
  %v120 = vpop.permute.xlu0 %119
  %vm121 = vcmask 1048448
  %s122 = scalar_lea.vmem %s1, 24
  %123 = vst.msk [vmem:[%s122] sm:$0xff] %vm121, %v120
  %s124 = scalar_lea.vmem %s0, 6
  %v125 = vld [vmem:[%s124] ss:$24 sm:$0xf]
  %s126 = scalar_lea.vmem %s0, 6
  %v127 = vld [vmem:[%s126] ss:$24 sm:$0xf0]
  %vm128 = vcmask 1047556
  %v129 = vsel %vm128, %v127, %v125
  %130 = vrot.lane.b32.xlu0 %v129, 96
  %v131 = vpop.permute.xlu0 %130
  %vm132 = vcmask 917248
  %133 = vst.msk [vmem:[%s1] sm:$0xff] %vm132, %v131
  %s134 = scalar_lea.vmem %s0, 206
  %v135 = vld [vmem:[%s134] ss:$24 sm:$0xf]
  %s136 = scalar_lea.vmem %s0, 206
  %v137 = vld [vmem:[%s136] ss:$24 sm:$0xf0]
  %vm138 = vcmask 1047556
  %v139 = vsel %vm138, %v137, %v135
  %140 = vrot.lane.b32.xlu0 %v139, 96
  %v141 = vpop.permute.xlu0 %140
  %vm142 = vcmask 917248
  %s143 = scalar_lea.vmem %s1, 32
  %144 = vst.msk [vmem:[%s143] sm:$0xff] %vm142, %v141
  %s145 = scalar_lea.vmem %s0, 14
  %v146 = vld [vmem:[%s145] ss:$24 sm:$0xf]
  %s147 = scalar_lea.vmem %s0, 14
  %v148 = vld [vmem:[%s147] ss:$24 sm:$0xf0]
  %vm149 = vcmask 1047556
  %v150 = vsel %vm149, %v148, %v146
  %151 = vrot.lane.b32.xlu0 %v150, 96
  %v152 = vpop.permute.xlu0 %151
  %vm153 = vcmask 917248
  %s154 = scalar_lea.vmem %s1, 8
  %155 = vst.msk [vmem:[%s154] sm:$0xff] %vm153, %v152
  %s156 = scalar_lea.vmem %s0, 198
  %v157 = vld [vmem:[%s156] ss:$24 sm:$0xf]
  %s158 = scalar_lea.vmem %s0, 198
  %v159 = vld [vmem:[%s158] ss:$24 sm:$0xf0]
  %vm160 = vcmask 1047556
  %v161 = vsel %vm160, %v159, %v157
  %162 = vrot.lane.b32.xlu0 %v161, 96
  %v163 = vpop.permute.xlu0 %162
  %vm164 = vcmask 917248
  %s165 = scalar_lea.vmem %s1, 24
  %166 = vst.msk [vmem:[%s165] sm:$0xff] %vm164, %v163
  %s167 = scalar_lea.vmem %s0, 5
  %v168 = vld [vmem:[%s167] ss:$24 sm:$0xf]
  %s169 = scalar_lea.vmem %s0, 5
  %v170 = vld [vmem:[%s169] ss:$24 sm:$0xf0]
  %vm171 = vcmask 1047556
  %v172 = vsel %vm171, %v170, %v168
  %173 = vrot.lane.b32.xlu0 %v172, 80
  %v174 = vpop.permute.xlu0 %173
  %vm175 = vcmask 786048
  %176 = vst.msk [vmem:[%s1] sm:$0xff] %vm175, %v174
  %s177 = scalar_lea.vmem %s0, 205
  %v178 = vld [vmem:[%s177] ss:$24 sm:$0xf]
  %s179 = scalar_lea.vmem %s0, 205
  %v180 = vld [vmem:[%s179] ss:$24 sm:$0xf0]
  %vm181 = vcmask 1047556
  %v182 = vsel %vm181, %v180, %v178
  %183 = vrot.lane.b32.xlu0 %v182, 80
  %v184 = vpop.permute.xlu0 %183
  %vm185 = vcmask 786048
  %s186 = scalar_lea.vmem %s1, 32
  %187 = vst.msk [vmem:[%s186] sm:$0xff] %vm185, %v184
  %s188 = scalar_lea.vmem %s0, 13
  %v189 = vld [vmem:[%s188] ss:$24 sm:$0xf]
  %s190 = scalar_lea.vmem %s0, 13
  %v191 = vld [vmem:[%s190] ss:$24 sm:$0xf0]
  %vm192 = vcmask 1047556
  %v193 = vsel %vm192, %v191, %v189
  %194 = vrot.lane.b32.xlu0 %v193, 80
  %v195 = vpop.permute.xlu0 %194
  %vm196 = vcmask 786048
  %s197 = scalar_lea.vmem %s1, 8
  %198 = vst.msk [vmem:[%s197] sm:$0xff] %vm196, %v195
  %s199 = scalar_lea.vmem %s0, 197
  %v200 = vld [vmem:[%s199] ss:$24 sm:$0xf]
  %s201 = scalar_lea.vmem %s0, 197
  %v202 = vld [vmem:[%s201] ss:$24 sm:$0xf0]
  %vm203 = vcmask 1047556
  %v204 = vsel %vm203, %v202, %v200
  %205 = vrot.lane.b32.xlu0 %v204, 80
  %v206 = vpop.permute.xlu0 %205
  %vm207 = vcmask 786048
  %s208 = scalar_lea.vmem %s1, 24
  %209 = vst.msk [vmem:[%s208] sm:$0xff] %vm207, %v206
  %s210 = scalar_lea.vmem %s0, 4
  %v211 = vld [vmem:[%s210] ss:$24 sm:$0xf]
  %s212 = scalar_lea.vmem %s0, 4
  %v213 = vld [vmem:[%s212] ss:$24 sm:$0xf0]
  %vm214 = vcmask 1047556
  %v215 = vsel %vm214, %v213, %v211
  %216 = vrot.lane.b32.xlu0 %v215, 64
  %v217 = vpop.permute.xlu0 %216
  %vm218 = vcmask 654848
  %219 = vst.msk [vmem:[%s1] sm:$0xff] %vm218, %v217
  %s220 = scalar_lea.vmem %s0, 204
  %v221 = vld [vmem:[%s220] ss:$24 sm:$0xf]
  %s222 = scalar_lea.vmem %s0, 204
  %v223 = vld [vmem:[%s222] ss:$24 sm:$0xf0]
  %vm224 = vcmask 1047556
  %v225 = vsel %vm224, %v223, %v221
  %226 = vrot.lane.b32.xlu0 %v225, 64
  %v227 = vpop.permute.xlu0 %226
  %vm228 = vcmask 654848
  %s229 = scalar_lea.vmem %s1, 32
  %230 = vst.msk [vmem:[%s229] sm:$0xff] %vm228, %v227
  %s231 = scalar_lea.vmem %s0, 12
  %v232 = vld [vmem:[%s231] ss:$24 sm:$0xf]
  %s233 = scalar_lea.vmem %s0, 12
  %v234 = vld [vmem:[%s233] ss:$24 sm:$0xf0]
  %vm235 = vcmask 1047556
  %v236 = vsel %vm235, %v234, %v232
  %237 = vrot.lane.b32.xlu0 %v236, 64
  %v238 = vpop.permute.xlu0 %237
  %vm239 = vcmask 654848
  %s240 = scalar_lea.vmem %s1, 8
  %241 = vst.msk [vmem:[%s240] sm:$0xff] %vm239, %v238
  %s242 = scalar_lea.vmem %s0, 196
  %v243 = vld [vmem:[%s242] ss:$24 sm:$0xf]
  %s244 = scalar_lea.vmem %s0, 196
  %v245 = vld [vmem:[%s244] ss:$24 sm:$0xf0]
  %vm246 = vcmask 1047556
  %v247 = vsel %vm246, %v245, %v243
  %248 = vrot.lane.b32.xlu0 %v247, 64
  %v249 = vpop.permute.xlu0 %248
  %vm250 = vcmask 654848
  %s251 = scalar_lea.vmem %s1, 24
  %252 = vst.msk [vmem:[%s251] sm:$0xff] %vm250, %v249
  %s253 = scalar_lea.vmem %s0, 3
  %v254 = vld [vmem:[%s253] ss:$24 sm:$0xf]
  %s255 = scalar_lea.vmem %s0, 3
  %v256 = vld [vmem:[%s255] ss:$24 sm:$0xf0]
  %vm257 = vcmask 1047556
  %v258 = vsel %vm257, %v256, %v254
  %259 = vrot.lane.b32.xlu0 %v258, 48
  %v260 = vpop.permute.xlu0 %259
  %vm261 = vcmask 523648
  %262 = vst.msk [vmem:[%s1] sm:$0xff] %vm261, %v260
  %s263 = scalar_lea.vmem %s0, 203
  %v264 = vld [vmem:[%s263] ss:$24 sm:$0xf]
  %s265 = scalar_lea.vmem %s0, 203
  %v266 = vld [vmem:[%s265] ss:$24 sm:$0xf0]
  %vm267 = vcmask 1047556
  %v268 = vsel %vm267, %v266, %v264
  %269 = vrot.lane.b32.xlu0 %v268, 48
  %v270 = vpop.permute.xlu0 %269
  %vm271 = vcmask 523648
  %s272 = scalar_lea.vmem %s1, 32
  %273 = vst.msk [vmem:[%s272] sm:$0xff] %vm271, %v270
  %s274 = scalar_lea.vmem %s0, 11
  %v275 = vld [vmem:[%s274] ss:$24 sm:$0xf]
  %s276 = scalar_lea.vmem %s0, 11
  %v277 = vld [vmem:[%s276] ss:$24 sm:$0xf0]
  %vm278 = vcmask 1047556
  %v279 = vsel %vm278, %v277, %v275
  %280 = vrot.lane.b32.xlu0 %v279, 48
  %v281 = vpop.permute.xlu0 %280
  %vm282 = vcmask 523648
  %s283 = scalar_lea.vmem %s1, 8
  %284 = vst.msk [vmem:[%s283] sm:$0xff] %vm282, %v281
  %s285 = scalar_lea.vmem %s0, 195
  %v286 = vld [vmem:[%s285] ss:$24 sm:$0xf]
  %s287 = scalar_lea.vmem %s0, 195
  %v288 = vld [vmem:[%s287] ss:$24 sm:$0xf0]
  %vm289 = vcmask 1047556
  %v290 = vsel %vm289, %v288, %v286
  %291 = vrot.lane.b32.xlu0 %v290, 48
  %v292 = vpop.permute.xlu0 %291
  %vm293 = vcmask 523648
  %s294 = scalar_lea.vmem %s1, 24
  %295 = vst.msk [vmem:[%s294] sm:$0xff] %vm293, %v292
  %s296 = scalar_lea.vmem %s0, 2
  %v297 = vld [vmem:[%s296] ss:$24 sm:$0xf]
  %s298 = scalar_lea.vmem %s0, 2
  %v299 = vld [vmem:[%s298] ss:$24 sm:$0xf0]
  %vm300 = vcmask 1047556
  %v301 = vsel %vm300, %v299, %v297
  %302 = vrot.lane.b32.xlu0 %v301, 32
  %v303 = vpop.permute.xlu0 %302
  %vm304 = vcmask 392448
  %305 = vst.msk [vmem:[%s1] sm:$0xff] %vm304, %v303
  %s306 = scalar_lea.vmem %s0, 202
  %v307 = vld [vmem:[%s306] ss:$24 sm:$0xf]
  %s308 = scalar_lea.vmem %s0, 202
  %v309 = vld [vmem:[%s308] ss:$24 sm:$0xf0]
  %vm310 = vcmask 1047556
  %v311 = vsel %vm310, %v309, %v307
  %312 = vrot.lane.b32.xlu0 %v311, 32
  %v313 = vpop.permute.xlu0 %312
  %vm314 = vcmask 392448
  %s315 = scalar_lea.vmem %s1, 32
  %316 = vst.msk [vmem:[%s315] sm:$0xff] %vm314, %v313
  %s317 = scalar_lea.vmem %s0, 10
  %v318 = vld [vmem:[%s317] ss:$24 sm:$0xf]
  %s319 = scalar_lea.vmem %s0, 10
  %v320 = vld [vmem:[%s319] ss:$24 sm:$0xf0]
  %vm321 = vcmask 1047556
  %v322 = vsel %vm321, %v320, %v318
  %323 = vrot.lane.b32.xlu0 %v322, 32
  %v324 = vpop.permute.xlu0 %323
  %vm325 = vcmask 392448
  %s326 = scalar_lea.vmem %s1, 8
  %327 = vst.msk [vmem:[%s326] sm:$0xff] %vm325, %v324
  %s328 = scalar_lea.vmem %s0, 194
  %v329 = vld [vmem:[%s328] ss:$24 sm:$0xf]
  %s330 = scalar_lea.vmem %s0, 194
  %v331 = vld [vmem:[%s330] ss:$24 sm:$0xf0]
  %vm332 = vcmask 1047556
  %v333 = vsel %vm332, %v331, %v329
  %334 = vrot.lane.b32.xlu0 %v333, 32
  %v335 = vpop.permute.xlu0 %334
  %vm336 = vcmask 392448
  %s337 = scalar_lea.vmem %s1, 24
  %338 = vst.msk [vmem:[%s337] sm:$0xff] %vm336, %v335
  %s339 = scalar_lea.vmem %s0, 1
  %v340 = vld [vmem:[%s339] ss:$24 sm:$0xf]
  %s341 = scalar_lea.vmem %s0, 1
  %v342 = vld [vmem:[%s341] ss:$24 sm:$0xf0]
  %vm343 = vcmask 1047556
  %v344 = vsel %vm343, %v342, %v340
  %345 = vrot.lane.b32.xlu0 %v344, 16
  %v346 = vpop.permute.xlu0 %345
  %vm347 = vcmask 261248
  %348 = vst.msk [vmem:[%s1] sm:$0xff] %vm347, %v346
  %s349 = scalar_lea.vmem %s0, 201
  %v350 = vld [vmem:[%s349] ss:$24 sm:$0xf]
  %s351 = scalar_lea.vmem %s0, 201
  %v352 = vld [vmem:[%s351] ss:$24 sm:$0xf0]
  %vm353 = vcmask 1047556
  %v354 = vsel %vm353, %v352, %v350
  %355 = vrot.lane.b32.xlu0 %v354, 16
  %v356 = vpop.permute.xlu0 %355
  %vm357 = vcmask 261248
  %s358 = scalar_lea.vmem %s1, 32
  %359 = vst.msk [vmem:[%s358] sm:$0xff] %vm357, %v356
  %s360 = scalar_lea.vmem %s0, 9
  %v361 = vld [vmem:[%s360] ss:$24 sm:$0xf]
  %s362 = scalar_lea.vmem %s0, 9
  %v363 = vld [vmem:[%s362] ss:$24 sm:$0xf0]
  %vm364 = vcmask 1047556
  %v365 = vsel %vm364, %v363, %v361
  %366 = vrot.lane.b32.xlu0 %v365, 16
  %v367 = vpop.permute.xlu0 %366
  %vm368 = vcmask 261248
  %s369 = scalar_lea.vmem %s1, 8
  %370 = vst.msk [vmem:[%s369] sm:$0xff] %vm368, %v367
  %s371 = scalar_lea.vmem %s0, 209
  %v372 = vld [vmem:[%s371] ss:$24 sm:$0xf]
  %s373 = scalar_lea.vmem %s0, 209
  %v374 = vld [vmem:[%s373] ss:$24 sm:$0xf0]
  %vm375 = vcmask 1047556
  %v376 = vsel %vm375, %v374, %v372
  %377 = vrot.lane.b32.xlu0 %v376, 16
  %v378 = vpop.permute.xlu0 %377
  %vm379 = vcmask 261248
  %s380 = scalar_lea.vmem %s1, 40
  %381 = vst.msk [vmem:[%s380] sm:$0xff] %vm379, %v378
  %s382 = scalar_lea.vmem %s0, 17
  %v383 = vld [vmem:[%s382] ss:$24 sm:$0xf]
  %s384 = scalar_lea.vmem %s0, 17
  %v385 = vld [vmem:[%s384] ss:$24 sm:$0xf0]
  %vm386 = vcmask 1047556
  %v387 = vsel %vm386, %v385, %v383
  %388 = vrot.lane.b32.xlu0 %v387, 16
  %v389 = vpop.permute.xlu0 %388
  %vm390 = vcmask 261248
  %s391 = scalar_lea.vmem %s1, 16
  %392 = vst.msk [vmem:[%s391] sm:$0xff] %vm390, %v389
  %s393 = scalar_lea.vmem %s0, 193
  %v394 = vld [vmem:[%s393] ss:$24 sm:$0xf]
  %s395 = scalar_lea.vmem %s0, 193
  %v396 = vld [vmem:[%s395] ss:$24 sm:$0xf0]
  %vm397 = vcmask 1047556
  %v398 = vsel %vm397, %v396, %v394
  %399 = vrot.lane.b32.xlu0 %v398, 16
  %v400 = vpop.permute.xlu0 %399
  %vm401 = vcmask 261248
  %s402 = scalar_lea.vmem %s1, 24
  %403 = vst.msk [vmem:[%s402] sm:$0xff] %vm401, %v400

// kernel: raal_forward.1
$region0: #{raal_forward.1}
  #allocation0 [shape = 'u32[]', space=smem, size = 0x4, offset = 0x4, fixed_abs, tag = 'smem constant byte address 0x4 - core index']
  #allocation1 [shape = 'u32[72,128]{1,0:T(1,128)}', space=vmem, size = 0x9000, scoped, tag = 'internal scratch']
  #allocation2 [shape = 'f32[1,1]{1,0:T(1,128)S(1)}', space=vmem, size = 0x200, scoped, tag = 'scoped memory for raal_forward.1']
  %s0 = inlined_call_operand.smem [shape: u32[35], index: -1, kind: input, shape index: {}]
  %s1 = sld [smem:[%s0]]
  %s2 = scalar_lea.smem %s0, 1
  %s3 = sld [smem:[%s2]]
  %s4 = scalar_lea.smem %s0, 2
  %s5 = sld [smem:[%s4]]
  %s6 = scalar_lea.smem %s0, 3
  %s7 = sld [smem:[%s6]]
  %s8 = scalar_lea.smem %s0, 4
  %s9 = sld [smem:[%s8]]
  %s10 = scalar_lea.smem %s0, 5
  %s11 = sld [smem:[%s10]]
  %s12 = scalar_lea.smem %s0, 6
  %s13 = sld [smem:[%s12]]
  %s14 = scalar_lea.smem %s0, 7
  %s15 = sld [smem:[%s14]]
  %s16 = scalar_lea.smem %s0, 8
  %s17 = sld [smem:[%s16]]
  %s18 = scalar_lea.smem %s0, 9
  %s19 = sld [smem:[%s18]]
  %s20 = scalar_lea.smem %s0, 10
  %s21 = sld [smem:[%s20]]
  %s22 = scalar_lea.smem %s0, 11
  %s23 = sld [smem:[%s22]]
  %s24 = scalar_lea.smem %s0, 12
  %s25 = sld [smem:[%s24]]
  %s26 = scalar_lea.smem %s0, 13
  %s27 = sld [smem:[%s26]]
  %s28 = scalar_lea.smem %s0, 14
  %s29 = sld [smem:[%s28]]
  %s30 = scalar_lea.smem %s0, 15
  %s31 = sld [smem:[%s30]]
  %s32 = scalar_lea.smem %s0, 16
  %s33 = sld [smem:[%s32]]
  %s34 = scalar_lea.smem %s0, 17
  %s35 = sld [smem:[%s34]]
  %s36 = scalar_lea.smem %s0, 18
  %s37 = sld [smem:[%s36]]
  %s38 = scalar_lea.smem %s0, 19
  %s39 = sld [smem:[%s38]]
  %s40 = scalar_lea.smem %s0, 20
  %s41 = sld [smem:[%s40]]
  %s42 = scalar_lea.smem %s0, 21
  %s43 = sld [smem:[%s42]]
  %s44 = scalar_lea.smem %s0, 22
  %s45 = sld [smem:[%s44]]
  %s46 = scalar_lea.smem %s0, 23
  %s47 = sld [smem:[%s46]]
  %s48 = scalar_lea.smem %s0, 24
  %s49 = sld [smem:[%s48]]
  %s50 = scalar_lea.smem %s0, 25
  %s51 = sld [smem:[%s50]]
  %s52 = scalar_lea.smem %s0, 26
  %s53 = sld [smem:[%s52]]
  %s54 = scalar_lea.smem %s0, 27
  %s55 = sld [smem:[%s54]]
  %s56 = scalar_lea.smem %s0, 28
  %s57 = sld [smem:[%s56]]
  %s58 = scalar_lea.smem %s0, 29
  %s59 = sld [smem:[%s58]]
  %s60 = scalar_lea.smem %s0, 30
  %s61 = sld [smem:[%s60]]
  %s62 = scalar_lea.smem %s0, 31
  %s63 = sld [smem:[%s62]]
  %s64 = scalar_lea.smem %s0, 32
  %s65 = sld [smem:[%s64]]
  %s66 = scalar_lea.smem %s0, 33
  %s67 = sld [smem:[%s66]]
  %s68 = scalar_lea.smem %s0, 34
  %s69 = sld [smem:[%s68]]
  %s70 = sld [smem:[#allocation0]]
  $region146: #{raal_forward.1} parent=0
    _
  %s72 = ssub.s32 1, %s70
  %s73 = scalar_select 0, %s72, %s70
  %v74 = vstv %s67
  %75 = vst [vmem:[#allocation2] sm:$0x1] %v74
  // Predicated region
  $region2: #{raal_forward.1} parent=0 // pred_check
    _
  $region3: #{raal_forward.1} parent=0 // pred_check_branch
    %77 = sbr.rel (0) target = $region5
  $region4: #{raal_forward.1} parent=0 // pred_region
    _
  $region5: #{raal_forward.1} parent=0 // pred_fallthru
    _
  // Predicated region
  $region6: #{raal_forward.1} parent=0 // pred_check
    _
  $region7: #{raal_forward.1} parent=0 // pred_check_branch
    %79 = sbr.rel (0) target = $region9
  $region8: #{raal_forward.1} parent=0 // pred_region
    _
  $region9: #{raal_forward.1} parent=0 // pred_fallthru
    _
  // Predicated region
  $region10: #{raal_forward.1} parent=0 // pred_check
    _
  $region11: #{raal_forward.1} parent=0 // pred_check_branch
    %81 = sbr.rel (0) target = $region13
  $region12: #{raal_forward.1} parent=0 // pred_region
    _
  $region13: #{raal_forward.1} parent=0 // pred_fallthru
    _
  // Predicated region
  $region14: #{raal_forward.1} parent=0 // pred_check
    _
  $region15: #{raal_forward.1} parent=0 // pred_check_branch
    %83 = sbr.rel (0) target = $region17
  $region16: #{raal_forward.1} parent=0 // pred_region
    _
  $region17: #{raal_forward.1} parent=0 // pred_fallthru
    _
  // Predicated region
  $region18: #{raal_forward.1} parent=0 // pred_check
    _
  $region19: #{raal_forward.1} parent=0 // pred_check_branch
    %85 = sbr.rel (0) target = $region21
  $region20: #{raal_forward.1} parent=0 // pred_region
    _
  $region21: #{raal_forward.1} parent=0 // pred_fallthru
    _
  // Predicated region
  $region22: #{raal_forward.1} parent=0 // pred_check
    _
  $region23: #{raal_forward.1} parent=0 // pred_check_branch
    %87 = sbr.rel (0) target = $region25
  $region24: #{raal_forward.1} parent=0 // pred_region
    _
  $region25: #{raal_forward.1} parent=0 // pred_fallthru
    _
  // Predicated region
  $region26: #{raal_forward.1} parent=0 // pred_check
    _
  $region27: #{raal_forward.1} parent=0 // pred_check_branch
    %89 = sbr.rel (0) target = $region29
  $region28: #{raal_forward.1} parent=0 // pred_region
    _
  $region29: #{raal_forward.1} parent=0 // pred_fallthru
    _
  // Predicated region
  $region30: #{raal_forward.1} parent=0 // pred_check
    _
  $region31: #{raal_forward.1} parent=0 // pred_check_branch
    %91 = sbr.rel (0) target = $region33
  $region32: #{raal_forward.1} parent=0 // pred_region
    _
  $region33: #{raal_forward.1} parent=0 // pred_fallthru
    _
  // Predicated region
  $region34: #{raal_forward.1} parent=0 // pred_check
    _
  $region35: #{raal_forward.1} parent=0 // pred_check_branch
    %93 = sbr.rel (0) target = $region37
  $region36: #{raal_forward.1} parent=0 // pred_region
    _
  $region37: #{raal_forward.1} parent=0 // pred_fallthru
    _
  // Predicated region
  $region38: #{raal_forward.1} parent=0 // pred_check
    _
  $region39: #{raal_forward.1} parent=0 // pred_check_branch
    %95 = sbr.rel (0) target = $region41
  $region40: #{raal_forward.1} parent=0 // pred_region
    _
  $region41: #{raal_forward.1} parent=0 // pred_fallthru
    _
  // Predicated region
  $region42: #{raal_forward.1} parent=0 // pred_check
    _
  $region43: #{raal_forward.1} parent=0 // pred_check_branch
    %97 = sbr.rel (0) target = $region45
  $region44: #{raal_forward.1} parent=0 // pred_region
    _
  $region45: #{raal_forward.1} parent=0 // pred_fallthru
    _
  // Predicated region
  $region46: #{raal_forward.1} parent=0 // pred_check
    _
  $region47: #{raal_forward.1} parent=0 // pred_check_branch
    %99 = sbr.rel (0) target = $region49
  $region48: #{raal_forward.1} parent=0 // pred_region
    _
  $region49: #{raal_forward.1} parent=0 // pred_fallthru
    _
  // Predicated region
  $region50: #{raal_forward.1} parent=0 // pred_check
    _
  $region51: #{raal_forward.1} parent=0 // pred_check_branch
    %101 = sbr.rel (0) target = $region53
  $region52: #{raal_forward.1} parent=0 // pred_region
    _
  $region53: #{raal_forward.1} parent=0 // pred_fallthru
    _
  // Predicated region
  $region54: #{raal_forward.1} parent=0 // pred_check
    _
  $region55: #{raal_forward.1} parent=0 // pred_check_branch
    %103 = sbr.rel (0) target = $region57
  $region56: #{raal_forward.1} parent=0 // pred_region
    _
  $region57: #{raal_forward.1} parent=0 // pred_fallthru
    _
  // Predicated region
  $region58: #{raal_forward.1} parent=0 // pred_check
    _
  $region59: #{raal_forward.1} parent=0 // pred_check_branch
    %105 = sbr.rel (0) target = $region61
  $region60: #{raal_forward.1} parent=0 // pred_region
    _
  $region61: #{raal_forward.1} parent=0 // pred_fallthru
    _
  // Predicated region
  $region62: #{raal_forward.1} parent=0 // pred_check
    _
  $region63: #{raal_forward.1} parent=0 // pred_check_branch
    %107 = sbr.rel (0) target = $region65
  $region64: #{raal_forward.1} parent=0 // pred_region
    _
  $region65: #{raal_forward.1} parent=0 // pred_fallthru
    _
  // Predicated region
  $region66: #{raal_forward.1} parent=0 // pred_check
    _
  $region67: #{raal_forward.1} parent=0 // pred_check_branch
    %109 = sbr.rel (0) target = $region69
  $region68: #{raal_forward.1} parent=0 // pred_region
    _
  $region69: #{raal_forward.1} parent=0 // pred_fallthru
    _
  // Predicated region
  $region70: #{raal_forward.1} parent=0 // pred_check
    _
  $region71: #{raal_forward.1} parent=0 // pred_check_branch
    %111 = sbr.rel (0) target = $region73
  $region72: #{raal_forward.1} parent=0 // pred_region
    _
  $region73: #{raal_forward.1} parent=0 // pred_fallthru
    _
  // Predicated region
  $region74: #{raal_forward.1} parent=0 // pred_check
    _
  $region75: #{raal_forward.1} parent=0 // pred_check_branch
    %113 = sbr.rel (0) target = $region77
  $region76: #{raal_forward.1} parent=0 // pred_region
    _
  $region77: #{raal_forward.1} parent=0 // pred_fallthru
    _
  // Predicated region
  $region78: #{raal_forward.1} parent=0 // pred_check
    _
  $region79: #{raal_forward.1} parent=0 // pred_check_branch
    %115 = sbr.rel (0) target = $region81
  $region80: #{raal_forward.1} parent=0 // pred_region
    _
  $region81: #{raal_forward.1} parent=0 // pred_fallthru
    _
  // Predicated region
  $region82: #{raal_forward.1} parent=0 // pred_check
    _
  $region83: #{raal_forward.1} parent=0 // pred_check_branch
    %117 = sbr.rel (0) target = $region85
  $region84: #{raal_forward.1} parent=0 // pred_region
    _
  $region85: #{raal_forward.1} parent=0 // pred_fallthru
    _
  // Predicated region
  $region86: #{raal_forward.1} parent=0 // pred_check
    _
  $region87: #{raal_forward.1} parent=0 // pred_check_branch
    %119 = sbr.rel (0) target = $region89
  $region88: #{raal_forward.1} parent=0 // pred_region
    _
  $region89: #{raal_forward.1} parent=0 // pred_fallthru
    _
  // Predicated region
  $region90: #{raal_forward.1} parent=0 // pred_check
    _
  $region91: #{raal_forward.1} parent=0 // pred_check_branch
    %121 = sbr.rel (0) target = $region93
  $region92: #{raal_forward.1} parent=0 // pred_region
    _
  $region93: #{raal_forward.1} parent=0 // pred_fallthru
    _
  // Predicated region
  $region94: #{raal_forward.1} parent=0 // pred_check
    _
  $region95: #{raal_forward.1} parent=0 // pred_check_branch
    %123 = sbr.rel (0) target = $region97
  $region96: #{raal_forward.1} parent=0 // pred_region
    _
  $region97: #{raal_forward.1} parent=0 // pred_fallthru
    _
  // Predicated region
  $region98: #{raal_forward.1} parent=0 // pred_check
    _
  $region99: #{raal_forward.1} parent=0 // pred_check_branch
    %125 = sbr.rel (0) target = $region101
  $region100: #{raal_forward.1} parent=0 // pred_region
    _
  $region101: #{raal_forward.1} parent=0 // pred_fallthru
    _
  // Predicated region
  $region102: #{raal_forward.1} parent=0 // pred_check
    _
  $region103: #{raal_forward.1} parent=0 // pred_check_branch
    %127 = sbr.rel (0) target = $region105
  $region104: #{raal_forward.1} parent=0 // pred_region
    _
  $region105: #{raal_forward.1} parent=0 // pred_fallthru
    _
  // Predicated region
  $region106: #{raal_forward.1} parent=0 // pred_check
    _
  $region107: #{raal_forward.1} parent=0 // pred_check_branch
    %129 = sbr.rel (0) target = $region109
  $region108: #{raal_forward.1} parent=0 // pred_region
    _
  $region109: #{raal_forward.1} parent=0 // pred_fallthru
    _
  // Predicated region
  $region110: #{raal_forward.1} parent=0 // pred_check
    _
  $region111: #{raal_forward.1} parent=0 // pred_check_branch
    %131 = sbr.rel (0) target = $region113
  $region112: #{raal_forward.1} parent=0 // pred_region
    _
  $region113: #{raal_forward.1} parent=0 // pred_fallthru
    _
  // Predicated region
  $region114: #{raal_forward.1} parent=0 // pred_check
    _
  $region115: #{raal_forward.1} parent=0 // pred_check_branch
    %133 = sbr.rel (0) target = $region117
  $region116: #{raal_forward.1} parent=0 // pred_region
    _
  $region117: #{raal_forward.1} parent=0 // pred_fallthru
    _
  // Predicated region
  $region118: #{raal_forward.1} parent=0 // pred_check
    _
  $region119: #{raal_forward.1} parent=0 // pred_check_branch
    %135 = sbr.rel (0) target = $region121
  $region120: #{raal_forward.1} parent=0 // pred_region
    _
  $region121: #{raal_forward.1} parent=0 // pred_fallthru
    _
  // Predicated region
  $region122: #{raal_forward.1} parent=0 // pred_check
    _
  $region123: #{raal_forward.1} parent=0 // pred_check_branch
    %137 = sbr.rel (0) target = $region125
  $region124: #{raal_forward.1} parent=0 // pred_region
    _
  $region125: #{raal_forward.1} parent=0 // pred_fallthru
    _
  // Predicated region
  $region126: #{raal_forward.1} parent=0 // pred_check
    _
  $region127: #{raal_forward.1} parent=0 // pred_check_branch
    %139 = sbr.rel (0) target = $region129
  $region128: #{raal_forward.1} parent=0 // pred_region
    _
  $region129: #{raal_forward.1} parent=0 // pred_fallthru
    _
  // Predicated region
  $region130: #{raal_forward.1} parent=0 // pred_check
    _
  $region131: #{raal_forward.1} parent=0 // pred_check_branch
    %141 = sbr.rel (0) target = $region133
  $region132: #{raal_forward.1} parent=0 // pred_region
    _
  $region133: #{raal_forward.1} parent=0 // pred_fallthru
    _
  // Predicated region
  $region134: #{raal_forward.1} parent=0 // pred_check
    _
  $region135: #{raal_forward.1} parent=0 // pred_check_branch
    %143 = sbr.rel (0) target = $region137
  $region136: #{raal_forward.1} parent=0 // pred_region
    _
  $region137: #{raal_forward.1} parent=0 // pred_fallthru
    _
  %v144 = vld [vmem:[%s15] sm:$0xff]
  %v145 = vld [vmem:[%s15 + $0x8] sm:$0xff]
  %v146 = vld [vmem:[%s15 + $0x10] sm:$0xff]
  %v147 = vld [vmem:[%s15 + $0x18] sm:$0xff]
  %v148 = vld [vmem:[%s17] sm:$0xff]
  %v149 = vld [vmem:[%s17 + $0x8] sm:$0xff]
  %v150 = vld [vmem:[%s19] sm:$0x1]
  %v151 = vld [vmem:[%s1] sm:$0xff]
  %v152 = vld [vmem:[%s1 + $0x8] sm:$0xff]
  %v153 = vld [vmem:[%s1 + $0x10] sm:$0xff]
  %v154 = vld [vmem:[%s1 + $0x18] sm:$0xff]
  %v155 = vld [vmem:[%s1 + $0x20] sm:$0xff]
  %v156 = vld [vmem:[%s1 + $0x28] sm:$0xff]
  %v157 = vld [vmem:[%s1 + $0x30] sm:$0xff]
  %v158 = vld [vmem:[%s1 + $0x38] sm:$0xff]
  %v159 = vld [vmem:[%s1 + $0x40] sm:$0xff]
  %v160 = vld [vmem:[%s1 + $0x48] sm:$0xff]
  %v161 = vld [vmem:[%s1 + $0x50] sm:$0xff]
  %v162 = vld [vmem:[%s1 + $0x58] sm:$0xff]
  %v163 = vld [vmem:[%s1 + $0x60] sm:$0xff]
  %v164 = vld [vmem:[%s1 + $0x68] sm:$0xff]
  %v165 = vld [vmem:[%s1 + $0x70] sm:$0xff]
  %v166 = vld [vmem:[%s1 + $0x78] sm:$0xff]
  %v167 = vld [vmem:[%s1 + $0x80] sm:$0xff]
  %v168 = vld [vmem:[%s1 + $0x88] sm:$0xff]
  %v169 = vld [vmem:[%s1 + $0x90] sm:$0xff]
  %v170 = vld [vmem:[%s1 + $0x98] sm:$0xff]
  %v171 = vld [vmem:[%s1 + $0xa0] sm:$0xff]
  %v172 = vld [vmem:[%s1 + $0xa8] sm:$0xff]
  %v173 = vld [vmem:[%s1 + $0xb0] sm:$0xff]
  %v174 = vld [vmem:[%s1 + $0xb8] sm:$0xff]
  %v175 = vld [vmem:[%s1 + $0xc0] sm:$0xff]
  %v176 = vld [vmem:[%s1 + $0xc8] sm:$0xff]
  %v177 = vld [vmem:[%s1 + $0xd0] sm:$0xff]
  %v178 = vld [vmem:[%s1 + $0xd8] sm:$0xff]
  %v179 = vld [vmem:[%s1 + $0xe0] sm:$0xff]
  %v180 = vld [vmem:[%s1 + $0xe8] sm:$0xff]
  %v181 = vld [vmem:[%s1 + $0xf0] sm:$0xff]
  %v182 = vld [vmem:[%s1 + $0xf8] sm:$0xff]
  %v183 = vld [vmem:[%s1 + $0x100] sm:$0xff]
  %v184 = vld [vmem:[%s1 + $0x108] sm:$0xff]
  %v185 = vld [vmem:[%s1 + $0x110] sm:$0xff]
  %v186 = vld [vmem:[%s1 + $0x118] sm:$0xff]
  %v187 = vld [vmem:[%s1 + $0x120] sm:$0xff]
  %v188 = vld [vmem:[%s1 + $0x128] sm:$0xff]
  %v189 = vld [vmem:[%s1 + $0x130] sm:$0xff]
  %v190 = vld [vmem:[%s1 + $0x138] sm:$0xff]
  %v192 = vperm.slane %v150, 0
  %vm194 = vcmask 261120
  %v196 = vsel %vm194, %v151, 0
  %v199 = vsel %vm194, %v152, 0
  %v202 = vsel %vm194, %v153, 0
  %v205 = vsel %vm194, %v154, 0
  %v208 = vsel %vm194, %v155, 0
  %v211 = vsel %vm194, %v156, 0
  %v214 = vsel %vm194, %v157, 0
  %v217 = vsel %vm194, %v158, 0
  %v220 = vsel %vm194, %v159, 0
  %v223 = vsel %vm194, %v160, 0
  %v226 = vsel %vm194, %v161, 0
  %v229 = vsel %vm194, %v162, 0
  %v232 = vsel %vm194, %v163, 0
  %v235 = vsel %vm194, %v164, 0
  %v238 = vsel %vm194, %v165, 0
  %v241 = vsel %vm194, %v166, 0
  %v244 = vsel %vm194, %v167, 0
  %v247 = vsel %vm194, %v168, 0
  %v250 = vsel %vm194, %v169, 0
  %v253 = vsel %vm194, %v170, 0
  %v256 = vsel %vm194, %v171, 0
  %v259 = vsel %vm194, %v172, 0
  %v262 = vsel %vm194, %v173, 0
  %v265 = vsel %vm194, %v174, 0
  %v268 = vsel %vm194, %v175, 0
  %v271 = vsel %vm194, %v176, 0
  %v274 = vsel %vm194, %v177, 0
  %v277 = vsel %vm194, %v178, 0
  %v280 = vsel %vm194, %v179, 0
  %v283 = vsel %vm194, %v180, 0
  %v286 = vsel %vm194, %v181, 0
  %v289 = vsel %vm194, %v182, 0
  %v292 = vsel %vm194, %v183, 0
  %v295 = vsel %vm194, %v184, 0
  %v298 = vsel %vm194, %v185, 0
  %v301 = vsel %vm194, %v186, 0
  %v304 = vsel %vm194, %v187, 0
  %v307 = vsel %vm194, %v188, 0
  %v310 = vsel %vm194, %v189, 0
  %v313 = vsel %vm194, %v190, 0
  %315 = vmatpush.msra.mxu0 0.0
  %316 = vmatpush.msra.mxu0 0.0
  %317 = vmatpush.msra.mxu0 0.0
  %318 = vmatpush.msra.mxu0 0.0
  %319 = vmatpush.msra.mxu0 0.0
  %320 = vmatpush.msra.mxu0 0.0
  %321 = vmatpush.msra.mxu0 0.0
  %322 = vmatpush.msra.mxu0 0.0
  %323 = vmatpush.msra.mxu0 0.0
  %324 = vmatpush.msra.mxu0 0.0
  %325 = vmatpush.msra.mxu0 0.0
  %326 = vmatpush.msra.mxu0 0.0
  %327 = vmatpush.msra.mxu0 %v147
  %328 = vmatpush.msra.mxu0 %v146
  %329 = vmatpush.msra.mxu0 %v145
  %330 = vmatpush.msra.mxu0 %v144
  %331 = vmatmul.f32.gmra.mxu0 %v196
  %v332 = vpop.f32.mrf.mxu0
  %v333 = vadd.f32 %v192, %v332
  %334 = vmatmul.f32.gmra.mxu0 %v199
  %v335 = vpop.f32.mrf.mxu0
  %v336 = vadd.f32 %v192, %v335
  %337 = vmatmul.f32.gmra.mxu0 %v202
  %v338 = vpop.f32.mrf.mxu0
  %v339 = vadd.f32 %v192, %v338
  %340 = vmatmul.f32.gmra.mxu0 %v205
  %v341 = vpop.f32.mrf.mxu0
  %v342 = vadd.f32 %v192, %v341
  %343 = vmatmul.f32.gmra.mxu0 %v208
  %v344 = vpop.f32.mrf.mxu0
  %v345 = vadd.f32 %v192, %v344
  %346 = vmatmul.f32.gmra.mxu0 %v211
  %v347 = vpop.f32.mrf.mxu0
  %v348 = vadd.f32 %v192, %v347
  %349 = vmatmul.f32.gmra.mxu0 %v214
  %v350 = vpop.f32.mrf.mxu0
  %v351 = vadd.f32 %v192, %v350
  %352 = vmatmul.f32.gmra.mxu0 %v217
  %v353 = vpop.f32.mrf.mxu0
  %v354 = vadd.f32 %v192, %v353
  %355 = vmatmul.f32.gmra.mxu0 %v220
  %v356 = vpop.f32.mrf.mxu0
  %v357 = vadd.f32 %v192, %v356
  %358 = vmatmul.f32.gmra.mxu0 %v223
  %v359 = vpop.f32.mrf.mxu0
  %v360 = vadd.f32 %v192, %v359
  %361 = vmatmul.f32.gmra.mxu0 %v226
  %v362 = vpop.f32.mrf.mxu0
  %v363 = vadd.f32 %v192, %v362
  %364 = vmatmul.f32.gmra.mxu0 %v229
  %v365 = vpop.f32.mrf.mxu0
  %v366 = vadd.f32 %v192, %v365
  %367 = vmatmul.f32.gmra.mxu0 %v232
  %v368 = vpop.f32.mrf.mxu0
  %v369 = vadd.f32 %v192, %v368
  %370 = vmatmul.f32.gmra.mxu0 %v235
  %v371 = vpop.f32.mrf.mxu0
  %v372 = vadd.f32 %v192, %v371
  %373 = vmatmul.f32.gmra.mxu0 %v238
  %v374 = vpop.f32.mrf.mxu0
  %v375 = vadd.f32 %v192, %v374
  %376 = vmatmul.f32.gmra.mxu0 %v241
  %v377 = vpop.f32.mrf.mxu0
  %v378 = vadd.f32 %v192, %v377
  %379 = vmatmul.f32.gmra.mxu0 %v244
  %v380 = vpop.f32.mrf.mxu0
  %v381 = vadd.f32 %v192, %v380
  %382 = vmatmul.f32.gmra.mxu0 %v247
  %v383 = vpop.f32.mrf.mxu0
  %v384 = vadd.f32 %v192, %v383
  %385 = vmatmul.f32.gmra.mxu0 %v250
  %v386 = vpop.f32.mrf.mxu0
  %v387 = vadd.f32 %v192, %v386
  %388 = vmatmul.f32.gmra.mxu0 %v253
  %v389 = vpop.f32.mrf.mxu0
  %v390 = vadd.f32 %v192, %v389
  %391 = vmatmul.f32.gmra.mxu0 %v256
  %v392 = vpop.f32.mrf.mxu0
  %v393 = vadd.f32 %v192, %v392
  %394 = vmatmul.f32.gmra.mxu0 %v259
  %v395 = vpop.f32.mrf.mxu0
  %v396 = vadd.f32 %v192, %v395
  %397 = vmatmul.f32.gmra.mxu0 %v262
  %v398 = vpop.f32.mrf.mxu0
  %v399 = vadd.f32 %v192, %v398
  %400 = vmatmul.f32.gmra.mxu0 %v265
  %v401 = vpop.f32.mrf.mxu0
  %v402 = vadd.f32 %v192, %v401
  %403 = vmatmul.f32.gmra.mxu0 %v268
  %v404 = vpop.f32.mrf.mxu0
  %v405 = vadd.f32 %v192, %v404
  %406 = vmatmul.f32.gmra.mxu0 %v271
  %v407 = vpop.f32.mrf.mxu0
  %v408 = vadd.f32 %v192, %v407
  %409 = vmatmul.f32.gmra.mxu0 %v274
  %v410 = vpop.f32.mrf.mxu0
  %v411 = vadd.f32 %v192, %v410
  %412 = vmatmul.f32.gmra.mxu0 %v277
  %v413 = vpop.f32.mrf.mxu0
  %v414 = vadd.f32 %v192, %v413
  %415 = vmatmul.f32.gmra.mxu0 %v280
  %v416 = vpop.f32.mrf.mxu0
  %v417 = vadd.f32 %v192, %v416
  %418 = vmatmul.f32.gmra.mxu0 %v283
  %v419 = vpop.f32.mrf.mxu0
  %v420 = vadd.f32 %v192, %v419
  %421 = vmatmul.f32.gmra.mxu0 %v286
  %v422 = vpop.f32.mrf.mxu0
  %v423 = vadd.f32 %v192, %v422
  %424 = vmatmul.f32.gmra.mxu0 %v289
  %v425 = vpop.f32.mrf.mxu0
  %v426 = vadd.f32 %v192, %v425
  %427 = vmatmul.f32.gmra.mxu0 %v292
  %v428 = vpop.f32.mrf.mxu0
  %v429 = vadd.f32 %v192, %v428
  %430 = vmatmul.f32.gmra.mxu0 %v295
  %v431 = vpop.f32.mrf.mxu0
  %v432 = vadd.f32 %v192, %v431
  %433 = vmatmul.f32.gmra.mxu0 %v298
  %v434 = vpop.f32.mrf.mxu0
  %v435 = vadd.f32 %v192, %v434
  %436 = vmatmul.f32.gmra.mxu0 %v301
  %v437 = vpop.f32.mrf.mxu0
  %v438 = vadd.f32 %v192, %v437
  %439 = vmatmul.f32.gmra.mxu0 %v304
  %v440 = vpop.f32.mrf.mxu0
  %v441 = vadd.f32 %v192, %v440
  %442 = vmatmul.f32.gmra.mxu0 %v307
  %v443 = vpop.f32.mrf.mxu0
  %v444 = vadd.f32 %v192, %v443
  %445 = vmatmul.f32.gmra.mxu0 %v310
  %v446 = vpop.f32.mrf.mxu0
  %v447 = vadd.f32 %v192, %v446
  %448 = vmatmul.f32.gmra.mxu0 %v313
  %v449 = vpop.f32.mrf.mxu0
  %v450 = vadd.f32 %v192, %v449
  %451 = vdwg.mxu0
  %vm452 = vcmask 130048
  %v454 = vsel %vm452, 0.0, 0
  %456 = vmatpush.msra.mxu0 0.0
  %457 = vmatpush.msra.mxu0 0.0
  %458 = vmatpush.msra.mxu0 0.0
  %459 = vmatpush.msra.mxu0 0.0
  %460 = vmatpush.msra.mxu0 0.0
  %461 = vmatpush.msra.mxu0 0.0
  %462 = vmatpush.msra.mxu0 0.0
  %463 = vmatpush.msra.mxu0 0.0
  %464 = vmatpush.msra.mxu0 0.0
  %465 = vmatpush.msra.mxu0 0.0
  %466 = vmatpush.msra.mxu0 0.0
  %467 = vmatpush.msra.mxu0 0.0
  %468 = vmatpush.msra.mxu0 0.0
  %469 = vmatpush.msra.mxu0 0.0
  %470 = vmatpush.msra.mxu0 %v149
  %471 = vmatpush.msra.mxu0 %v148
  %472 = vmatmul.f32.gmra.mxu0 %v454
  %v473 = vpop.f32.mrf.mxu0
  %v474 = vadd.f32 0.0, %v473
  %475 = vmatmul.f32.gmra.mxu0 %v454
  %v476 = vpop.f32.mrf.mxu0
  %v477 = vadd.f32 0.0, %v476
  %478 = vmatmul.f32.gmra.mxu0 %v454
  %v479 = vpop.f32.mrf.mxu0
  %v480 = vadd.f32 0.0, %v479
  %481 = vmatmul.f32.gmra.mxu0 %v454
  %v482 = vpop.f32.mrf.mxu0
  %v483 = vadd.f32 0.0, %v482
  %484 = vmatmul.f32.gmra.mxu0 %v454
  %v485 = vpop.f32.mrf.mxu0
  %v486 = vadd.f32 0.0, %v485
  %487 = vdwg.mxu0
  %v488 = vadd.f32 %v333, %v474
  %v489 = vadd.f32 %v336, %v477
  %v490 = vadd.f32 %v339, %v480
  %v491 = vadd.f32 %v342, %v483
  %v492 = vadd.f32 %v345, %v486
  %v493 = vxor.u32 %v488, 2147483648
  %v494 = vxor.u32 %v489, 2147483648
  %v495 = vxor.u32 %v490, 2147483648
  %v496 = vxor.u32 %v491, 2147483648
  %v497 = vxor.u32 %v492, 2147483648
  %v498 = vmul.f32 %v493, 1.442695
  %v499 = vpow.pop %v498
  %v500 = vmul.f32 %v494, 1.442695
  %v501 = vpow.pop %v500
  %v502 = vmul.f32 %v495, 1.442695
  %v503 = vpow.pop %v502
  %v504 = vmul.f32 %v496, 1.442695
  %v505 = vpow.pop %v504
  %v506 = vmul.f32 %v497, 1.442695
  %v507 = vpow.pop %v506
  %v508 = vadd.f32 %v499, 1.0
  %v509 = vadd.f32 %v501, 1.0
  %v510 = vadd.f32 %v503, 1.0
  %v511 = vadd.f32 %v505, 1.0
  %v512 = vadd.f32 %v507, 1.0
  %v513 = vrcp.pop %v508
  %v514 = vmul.f32 %v508, %v513
  %v515 = vsub.f32 1.0, %v514
  %v516 = vmul.f32 %v513, %v515
  %v517 = vadd.f32 %v513, %v516
  %vm518 = vweird.f32 %v508
  %vm519 = vweird.f32 %v513
  %vm520 = vmor %vm518, %vm519
  %v521 = vsel %vm520, %v513, %v517
  %v522 = vand.u32 2147483647, %v508
  %vm523 = vcmp.eq.f32.partialorder %v522, 8.507059e+37
  %v524 = vand.u32 %v508, 2147483648
  %v525 = vor.u32 1.1754944e-38, %v524
  %v526 = vsel %vm523, %v525, %v521
  %v527 = vmul.f32 1.0, %v526
  %v528 = vrcp.pop %v509
  %v529 = vmul.f32 %v509, %v528
  %v530 = vsub.f32 1.0, %v529
  %v531 = vmul.f32 %v528, %v530
  %v532 = vadd.f32 %v528, %v531
  %vm533 = vweird.f32 %v509
  %vm534 = vweird.f32 %v528
  %vm535 = vmor %vm533, %vm534
  %v536 = vsel %vm535, %v528, %v532
  %v537 = vand.u32 2147483647, %v509
  %vm538 = vcmp.eq.f32.partialorder %v537, 8.507059e+37
  %v539 = vand.u32 %v509, 2147483648
  %v540 = vor.u32 1.1754944e-38, %v539
  %v541 = vsel %vm538, %v540, %v536
  %v542 = vmul.f32 1.0, %v541
  %v543 = vrcp.pop %v510
  %v544 = vmul.f32 %v510, %v543
  %v545 = vsub.f32 1.0, %v544
  %v546 = vmul.f32 %v543, %v545
  %v547 = vadd.f32 %v543, %v546
  %vm548 = vweird.f32 %v510
  %vm549 = vweird.f32 %v543
  %vm550 = vmor %vm548, %vm549
  %v551 = vsel %vm550, %v543, %v547
  %v552 = vand.u32 2147483647, %v510
  %vm553 = vcmp.eq.f32.partialorder %v552, 8.507059e+37
  %v554 = vand.u32 %v510, 2147483648
  %v555 = vor.u32 1.1754944e-38, %v554
  %v556 = vsel %vm553, %v555, %v551
  %v557 = vmul.f32 1.0, %v556
  %v558 = vrcp.pop %v511
  %v559 = vmul.f32 %v511, %v558
  %v560 = vsub.f32 1.0, %v559
  %v561 = vmul.f32 %v558, %v560
  %v562 = vadd.f32 %v558, %v561
  %vm563 = vweird.f32 %v511
  %vm564 = vweird.f32 %v558
  %vm565 = vmor %vm563, %vm564
  %v566 = vsel %vm565, %v558, %v562
  %v567 = vand.u32 2147483647, %v511
  %vm568 = vcmp.eq.f32.partialorder %v567, 8.507059e+37
  %v569 = vand.u32 %v511, 2147483648
  %v570 = vor.u32 1.1754944e-38, %v569
  %v571 = vsel %vm568, %v570, %v566
  %v572 = vmul.f32 1.0, %v571
  %v573 = vrcp.pop %v512
  %v574 = vmul.f32 %v512, %v573
  %v575 = vsub.f32 1.0, %v574
  %v576 = vmul.f32 %v573, %v575
  %v577 = vadd.f32 %v573, %v576
  %vm578 = vweird.f32 %v512
  %vm579 = vweird.f32 %v573
  %vm580 = vmor %vm578, %vm579
  %v581 = vsel %vm580, %v573, %v577
  %v582 = vand.u32 2147483647, %v512
  %vm583 = vcmp.eq.f32.partialorder %v582, 8.507059e+37
  %v584 = vand.u32 %v512, 2147483648
  %v585 = vor.u32 1.1754944e-38, %v584
  %v586 = vsel %vm583, %v585, %v581
  %v587 = vmul.f32 1.0, %v586
  %v588 = vtanh.pop %v488
  %v589 = vtanh.pop %v489
  %v590 = vtanh.pop %v490
  %v591 = vtanh.pop %v491
  %v592 = vtanh.pop %v492
  %v593 = vmul.f32 %v527, 0.0
  %v594 = vmul.f32 %v542, 0.0
  %v595 = vmul.f32 %v557, 0.0
  %v596 = vmul.f32 %v572, 0.0
  %v597 = vmul.f32 %v587, 0.0
  %603 = vrot.lane.b32.xlu0 %v588, 96
  %v604 = vpop.permute.xlu0 %603
  %605 = vrot.lane.b32.xlu0 %v589, 96
  %v606 = vpop.permute.xlu0 %605
  %607 = vrot.lane.b32.xlu0 %v590, 96
  %v608 = vpop.permute.xlu0 %607
  %609 = vrot.lane.b32.xlu0 %v591, 96
  %v610 = vpop.permute.xlu0 %609
  %611 = vrot.lane.b32.xlu0 %v592, 96
  %v612 = vpop.permute.xlu0 %611
  %v618 = vmul.f32 %v527, %v604
  %v619 = vmul.f32 %v542, %v606
  %v620 = vmul.f32 %v557, %v608
  %v621 = vmul.f32 %v572, %v610
  %v622 = vmul.f32 %v587, %v612
  %628 = vrot.lane.b32.xlu0 %v618, 16
  %v629 = vpop.permute.xlu0 %628
  %630 = vrot.lane.b32.xlu0 %v619, 16
  %v631 = vpop.permute.xlu0 %630
  %632 = vrot.lane.b32.xlu0 %v620, 16
  %v633 = vpop.permute.xlu0 %632
  %634 = vrot.lane.b32.xlu0 %v621, 16
  %v635 = vpop.permute.xlu0 %634
  %636 = vrot.lane.b32.xlu0 %v622, 16
  %v637 = vpop.permute.xlu0 %636
  %v643 = vadd.f32 %v593, %v629
  %v644 = vadd.f32 %v594, %v631
  %v645 = vadd.f32 %v595, %v633
  %v646 = vadd.f32 %v596, %v635
  %v647 = vadd.f32 %v597, %v637
  %v648 = vtanh.pop %v643
  %v649 = vtanh.pop %v644
  %v650 = vtanh.pop %v645
  %v651 = vtanh.pop %v646
  %v652 = vtanh.pop %v647
  %658 = vrot.lane.b32.xlu0 %v648, 32
  %v659 = vpop.permute.xlu0 %658
  %660 = vrot.lane.b32.xlu0 %v649, 32
  %v661 = vpop.permute.xlu0 %660
  %662 = vrot.lane.b32.xlu0 %v650, 32
  %v663 = vpop.permute.xlu0 %662
  %664 = vrot.lane.b32.xlu0 %v651, 32
  %v665 = vpop.permute.xlu0 %664
  %666 = vrot.lane.b32.xlu0 %v652, 32
  %v667 = vpop.permute.xlu0 %666
  %v673 = vmul.f32 %v527, %v659
  %v674 = vmul.f32 %v542, %v661
  %v675 = vmul.f32 %v557, %v663
  %v676 = vmul.f32 %v572, %v665
  %v677 = vmul.f32 %v587, %v667
  %683 = vrot.lane.b32.xlu0 %v673, 80
  %v684 = vpop.permute.xlu0 %683
  %685 = vrot.lane.b32.xlu0 %v674, 80
  %v686 = vpop.permute.xlu0 %685
  %687 = vrot.lane.b32.xlu0 %v675, 80
  %v688 = vpop.permute.xlu0 %687
  %689 = vrot.lane.b32.xlu0 %v676, 80
  %v690 = vpop.permute.xlu0 %689
  %691 = vrot.lane.b32.xlu0 %v677, 80
  %v692 = vpop.permute.xlu0 %691
  %v693 = vsel %vm452, %v684, 0
  %v695 = vsel %vm452, %v686, 0
  %v697 = vsel %vm452, %v688, 0
  %v699 = vsel %vm452, %v690, 0
  %v701 = vsel %vm452, %v692, 0
  %703 = vmatpush.msra.mxu0 0.0
  %704 = vmatpush.msra.mxu0 0.0
  %705 = vmatpush.msra.mxu0 0.0
  %706 = vmatpush.msra.mxu0 0.0
  %707 = vmatpush.msra.mxu0 0.0
  %708 = vmatpush.msra.mxu0 0.0
  %709 = vmatpush.msra.mxu0 0.0
  %710 = vmatpush.msra.mxu0 0.0
  %711 = vmatpush.msra.mxu0 0.0
  %712 = vmatpush.msra.mxu0 0.0
  %713 = vmatpush.msra.mxu0 0.0
  %714 = vmatpush.msra.mxu0 0.0
  %715 = vmatpush.msra.mxu0 0.0
  %716 = vmatpush.msra.mxu0 0.0
  %717 = vmatpush.msra.mxu0 %v149
  %718 = vmatpush.msra.mxu0 %v148
  %719 = vmatmul.f32.gmra.mxu0 %v693
  %v720 = vpop.f32.mrf.mxu0
  %v721 = vadd.f32 0.0, %v720
  %722 = vmatmul.f32.gmra.mxu0 %v695
  %v723 = vpop.f32.mrf.mxu0
  %v724 = vadd.f32 0.0, %v723
  %725 = vmatmul.f32.gmra.mxu0 %v697
  %v726 = vpop.f32.mrf.mxu0
  %v727 = vadd.f32 0.0, %v726
  %728 = vmatmul.f32.gmra.mxu0 %v699
  %v729 = vpop.f32.mrf.mxu0
  %v730 = vadd.f32 0.0, %v729
  %731 = vmatmul.f32.gmra.mxu0 %v701
  %v732 = vpop.f32.mrf.mxu0
  %v733 = vadd.f32 0.0, %v732
  %734 = vdwg.mxu0
  %v735 = vadd.f32 %v348, %v721
  %v736 = vadd.f32 %v351, %v724
  %v737 = vadd.f32 %v354, %v727
  %v738 = vadd.f32 %v357, %v730
  %v739 = vadd.f32 %v360, %v733
  %v740 = vxor.u32 %v735, 2147483648
  %v741 = vxor.u32 %v736, 2147483648
  %v742 = vxor.u32 %v737, 2147483648
  %v743 = vxor.u32 %v738, 2147483648
  %v744 = vxor.u32 %v739, 2147483648
  %v745 = vmul.f32 %v740, 1.442695
  %v746 = vpow.pop %v745
  %v747 = vmul.f32 %v741, 1.442695
  %v748 = vpow.pop %v747
  %v749 = vmul.f32 %v742, 1.442695
  %v750 = vpow.pop %v749
  %v751 = vmul.f32 %v743, 1.442695
  %v752 = vpow.pop %v751
  %v753 = vmul.f32 %v744, 1.442695
  %v754 = vpow.pop %v753
  %v755 = vadd.f32 %v746, 1.0
  %v756 = vadd.f32 %v748, 1.0
  %v757 = vadd.f32 %v750, 1.0
  %v758 = vadd.f32 %v752, 1.0
  %v759 = vadd.f32 %v754, 1.0
  %v760 = vrcp.pop %v755
  %v761 = vmul.f32 %v755, %v760
  %v762 = vsub.f32 1.0, %v761
  %v763 = vmul.f32 %v760, %v762
  %v764 = vadd.f32 %v760, %v763
  %vm765 = vweird.f32 %v755
  %vm766 = vweird.f32 %v760
  %vm767 = vmor %vm765, %vm766
  %v768 = vsel %vm767, %v760, %v764
  %v769 = vand.u32 2147483647, %v755
  %vm770 = vcmp.eq.f32.partialorder %v769, 8.507059e+37
  %v771 = vand.u32 %v755, 2147483648
  %v772 = vor.u32 1.1754944e-38, %v771
  %v773 = vsel %vm770, %v772, %v768
  %v774 = vmul.f32 1.0, %v773
  %v775 = vrcp.pop %v756
  %v776 = vmul.f32 %v756, %v775
  %v777 = vsub.f32 1.0, %v776
  %v778 = vmul.f32 %v775, %v777
  %v779 = vadd.f32 %v775, %v778
  %vm780 = vweird.f32 %v756
  %vm781 = vweird.f32 %v775
  %vm782 = vmor %vm780, %vm781
  %v783 = vsel %vm782, %v775, %v779
  %v784 = vand.u32 2147483647, %v756
  %vm785 = vcmp.eq.f32.partialorder %v784, 8.507059e+37
  %v786 = vand.u32 %v756, 2147483648
  %v787 = vor.u32 1.1754944e-38, %v786
  %v788 = vsel %vm785, %v787, %v783
  %v789 = vmul.f32 1.0, %v788
  %v790 = vrcp.pop %v757
  %v791 = vmul.f32 %v757, %v790
  %v792 = vsub.f32 1.0, %v791
  %v793 = vmul.f32 %v790, %v792
  %v794 = vadd.f32 %v790, %v793
  %vm795 = vweird.f32 %v757
  %vm796 = vweird.f32 %v790
  %vm797 = vmor %vm795, %vm796
  %v798 = vsel %vm797, %v790, %v794
  %v799 = vand.u32 2147483647, %v757
  %vm800 = vcmp.eq.f32.partialorder %v799, 8.507059e+37
  %v801 = vand.u32 %v757, 2147483648
  %v802 = vor.u32 1.1754944e-38, %v801
  %v803 = vsel %vm800, %v802, %v798
  %v804 = vmul.f32 1.0, %v803
  %v805 = vrcp.pop %v758
  %v806 = vmul.f32 %v758, %v805
  %v807 = vsub.f32 1.0, %v806
  %v808 = vmul.f32 %v805, %v807
  %v809 = vadd.f32 %v805, %v808
  %vm810 = vweird.f32 %v758
  %vm811 = vweird.f32 %v805
  %vm812 = vmor %vm810, %vm811
  %v813 = vsel %vm812, %v805, %v809
  %v814 = vand.u32 2147483647, %v758
  %vm815 = vcmp.eq.f32.partialorder %v814, 8.507059e+37
  %v816 = vand.u32 %v758, 2147483648
  %v817 = vor.u32 1.1754944e-38, %v816
  %v818 = vsel %vm815, %v817, %v813
  %v819 = vmul.f32 1.0, %v818
  %v820 = vrcp.pop %v759
  %v821 = vmul.f32 %v759, %v820
  %v822 = vsub.f32 1.0, %v821
  %v823 = vmul.f32 %v820, %v822
  %v824 = vadd.f32 %v820, %v823
  %vm825 = vweird.f32 %v759
  %vm826 = vweird.f32 %v820
  %vm827 = vmor %vm825, %vm826
  %v828 = vsel %vm827, %v820, %v824
  %v829 = vand.u32 2147483647, %v759
  %vm830 = vcmp.eq.f32.partialorder %v829, 8.507059e+37
  %v831 = vand.u32 %v759, 2147483648
  %v832 = vor.u32 1.1754944e-38, %v831
  %v833 = vsel %vm830, %v832, %v828
  %v834 = vmul.f32 1.0, %v833
  %v835 = vtanh.pop %v735
  %v836 = vtanh.pop %v736
  %v837 = vtanh.pop %v737
  %v838 = vtanh.pop %v738
  %v839 = vtanh.pop %v739
  %v840 = vmul.f32 %v774, %v643
  %v841 = vmul.f32 %v789, %v644
  %v842 = vmul.f32 %v804, %v645
  %v843 = vmul.f32 %v819, %v646
  %v844 = vmul.f32 %v834, %v647
  %850 = vrot.lane.b32.xlu0 %v835, 96
  %v851 = vpop.permute.xlu0 %850
  %852 = vrot.lane.b32.xlu0 %v836, 96
  %v853 = vpop.permute.xlu0 %852
  %854 = vrot.lane.b32.xlu0 %v837, 96
  %v855 = vpop.permute.xlu0 %854
  %856 = vrot.lane.b32.xlu0 %v838, 96
  %v857 = vpop.permute.xlu0 %856
  %858 = vrot.lane.b32.xlu0 %v839, 96
  %v859 = vpop.permute.xlu0 %858
  %v865 = vmul.f32 %v774, %v851
  %v866 = vmul.f32 %v789, %v853
  %v867 = vmul.f32 %v804, %v855
  %v868 = vmul.f32 %v819, %v857
  %v869 = vmul.f32 %v834, %v859
  %875 = vrot.lane.b32.xlu0 %v865, 16
  %v876 = vpop.permute.xlu0 %875
  %877 = vrot.lane.b32.xlu0 %v866, 16
  %v878 = vpop.permute.xlu0 %877
  %879 = vrot.lane.b32.xlu0 %v867, 16
  %v880 = vpop.permute.xlu0 %879
  %881 = vrot.lane.b32.xlu0 %v868, 16
  %v882 = vpop.permute.xlu0 %881
  %883 = vrot.lane.b32.xlu0 %v869, 16
  %v884 = vpop.permute.xlu0 %883
  %v890 = vadd.f32 %v840, %v876
  %v891 = vadd.f32 %v841, %v878
  %v892 = vadd.f32 %v842, %v880
  %v893 = vadd.f32 %v843, %v882
  %v894 = vadd.f32 %v844, %v884
  %v895 = vtanh.pop %v890
  %v896 = vtanh.pop %v891
  %v897 = vtanh.pop %v892
  %v898 = vtanh.pop %v893
  %v899 = vtanh.pop %v894
  %905 = vrot.lane.b32.xlu0 %v895, 32
  %v906 = vpop.permute.xlu0 %905
  %907 = vrot.lane.b32.xlu0 %v896, 32
  %v908 = vpop.permute.xlu0 %907
  %909 = vrot.lane.b32.xlu0 %v897, 32
  %v910 = vpop.permute.xlu0 %909
  %911 = vrot.lane.b32.xlu0 %v898, 32
  %v912 = vpop.permute.xlu0 %911
  %913 = vrot.lane.b32.xlu0 %v899, 32
  %v914 = vpop.permute.xlu0 %913
  %v920 = vmul.f32 %v774, %v906
  %v921 = vmul.f32 %v789, %v908
  %v922 = vmul.f32 %v804, %v910
  %v923 = vmul.f32 %v819, %v912
  %v924 = vmul.f32 %v834, %v914
  %930 = vrot.lane.b32.xlu0 %v920, 80
  %v931 = vpop.permute.xlu0 %930
  %932 = vrot.lane.b32.xlu0 %v921, 80
  %v933 = vpop.permute.xlu0 %932
  %934 = vrot.lane.b32.xlu0 %v922, 80
  %v935 = vpop.permute.xlu0 %934
  %936 = vrot.lane.b32.xlu0 %v923, 80
  %v937 = vpop.permute.xlu0 %936
  %938 = vrot.lane.b32.xlu0 %v924, 80
  %v939 = vpop.permute.xlu0 %938
  %v940 = vsel %vm452, %v931, 0
  %v942 = vsel %vm452, %v933, 0
  %v944 = vsel %vm452, %v935, 0
  %v946 = vsel %vm452, %v937, 0
  %v948 = vsel %vm452, %v939, 0
  %950 = vmatpush.msra.mxu0 0.0
  %951 = vmatpush.msra.mxu0 0.0
  %952 = vmatpush.msra.mxu0 0.0
  %953 = vmatpush.msra.mxu0 0.0
  %954 = vmatpush.msra.mxu0 0.0
  %955 = vmatpush.msra.mxu0 0.0
  %956 = vmatpush.msra.mxu0 0.0
  %957 = vmatpush.msra.mxu0 0.0
  %958 = vmatpush.msra.mxu0 0.0
  %959 = vmatpush.msra.mxu0 0.0
  %960 = vmatpush.msra.mxu0 0.0
  %961 = vmatpush.msra.mxu0 0.0
  %962 = vmatpush.msra.mxu0 0.0
  %963 = vmatpush.msra.mxu0 0.0
  %964 = vmatpush.msra.mxu0 %v149
  %965 = vmatpush.msra.mxu0 %v148
  %966 = vmatmul.f32.gmra.mxu0 %v940
  %v967 = vpop.f32.mrf.mxu0
  %v968 = vadd.f32 0.0, %v967
  %969 = vmatmul.f32.gmra.mxu0 %v942
  %v970 = vpop.f32.mrf.mxu0
  %v971 = vadd.f32 0.0, %v970
  %972 = vmatmul.f32.gmra.mxu0 %v944
  %v973 = vpop.f32.mrf.mxu0
  %v974 = vadd.f32 0.0, %v973
  %975 = vmatmul.f32.gmra.mxu0 %v946
  %v976 = vpop.f32.mrf.mxu0
  %v977 = vadd.f32 0.0, %v976
  %978 = vmatmul.f32.gmra.mxu0 %v948
  %v979 = vpop.f32.mrf.mxu0
  %v980 = vadd.f32 0.0, %v979
  %981 = vdwg.mxu0
  %v982 = vadd.f32 %v363, %v968
  %v983 = vadd.f32 %v366, %v971
  %v984 = vadd.f32 %v369, %v974
  %v985 = vadd.f32 %v372, %v977
  %v986 = vadd.f32 %v375, %v980
  %v987 = vxor.u32 %v982, 2147483648
  %v988 = vxor.u32 %v983, 2147483648
  %v989 = vxor.u32 %v984, 2147483648
  %v990 = vxor.u32 %v985, 2147483648
  %v991 = vxor.u32 %v986, 2147483648
  %v992 = vmul.f32 %v987, 1.442695
  %v993 = vpow.pop %v992
  %v994 = vmul.f32 %v988, 1.442695
  %v995 = vpow.pop %v994
  %v996 = vmul.f32 %v989, 1.442695
  %v997 = vpow.pop %v996
  %v998 = vmul.f32 %v990, 1.442695
  %v999 = vpow.pop %v998
  %v1000 = vmul.f32 %v991, 1.442695
  %v1001 = vpow.pop %v1000
  %v1002 = vadd.f32 %v993, 1.0
  %v1003 = vadd.f32 %v995, 1.0
  %v1004 = vadd.f32 %v997, 1.0
  %v1005 = vadd.f32 %v999, 1.0
  %v1006 = vadd.f32 %v1001, 1.0
  %v1007 = vrcp.pop %v1002
  %v1008 = vmul.f32 %v1002, %v1007
  %v1009 = vsub.f32 1.0, %v1008
  %v1010 = vmul.f32 %v1007, %v1009
  %v1011 = vadd.f32 %v1007, %v1010
  %vm1012 = vweird.f32 %v1002
  %vm1013 = vweird.f32 %v1007
  %vm1014 = vmor %vm1012, %vm1013
  %v1015 = vsel %vm1014, %v1007, %v1011
  %v1016 = vand.u32 2147483647, %v1002
  %vm1017 = vcmp.eq.f32.partialorder %v1016, 8.507059e+37
  %v1018 = vand.u32 %v1002, 2147483648
  %v1019 = vor.u32 1.1754944e-38, %v1018
  %v1020 = vsel %vm1017, %v1019, %v1015
  %v1021 = vmul.f32 1.0, %v1020
  %v1022 = vrcp.pop %v1003
  %v1023 = vmul.f32 %v1003, %v1022
  %v1024 = vsub.f32 1.0, %v1023
  %v1025 = vmul.f32 %v1022, %v1024
  %v1026 = vadd.f32 %v1022, %v1025
  %vm1027 = vweird.f32 %v1003
  %vm1028 = vweird.f32 %v1022
  %vm1029 = vmor %vm1027, %vm1028
  %v1030 = vsel %vm1029, %v1022, %v1026
  %v1031 = vand.u32 2147483647, %v1003
  %vm1032 = vcmp.eq.f32.partialorder %v1031, 8.507059e+37
  %v1033 = vand.u32 %v1003, 2147483648
  %v1034 = vor.u32 1.1754944e-38, %v1033
  %v1035 = vsel %vm1032, %v1034, %v1030
  %v1036 = vmul.f32 1.0, %v1035
  %v1037 = vrcp.pop %v1004
  %v1038 = vmul.f32 %v1004, %v1037
  %v1039 = vsub.f32 1.0, %v1038
  %v1040 = vmul.f32 %v1037, %v1039
  %v1041 = vadd.f32 %v1037, %v1040
  %vm1042 = vweird.f32 %v1004
  %vm1043 = vweird.f32 %v1037
  %vm1044 = vmor %vm1042, %vm1043
  %v1045 = vsel %vm1044, %v1037, %v1041
  %v1046 = vand.u32 2147483647, %v1004
  %vm1047 = vcmp.eq.f32.partialorder %v1046, 8.507059e+37
  %v1048 = vand.u32 %v1004, 2147483648
  %v1049 = vor.u32 1.1754944e-38, %v1048
  %v1050 = vsel %vm1047, %v1049, %v1045
  %v1051 = vmul.f32 1.0, %v1050
  %v1052 = vrcp.pop %v1005
  %v1053 = vmul.f32 %v1005, %v1052
  %v1054 = vsub.f32 1.0, %v1053
  %v1055 = vmul.f32 %v1052, %v1054
  %v1056 = vadd.f32 %v1052, %v1055
  %vm1057 = vweird.f32 %v1005
  %vm1058 = vweird.f32 %v1052
  %vm1059 = vmor %vm1057, %vm1058
  %v1060 = vsel %vm1059, %v1052, %v1056
  %v1061 = vand.u32 2147483647, %v1005
  %vm1062 = vcmp.eq.f32.partialorder %v1061, 8.507059e+37
  %v1063 = vand.u32 %v1005, 2147483648
  %v1064 = vor.u32 1.1754944e-38, %v1063
  %v1065 = vsel %vm1062, %v1064, %v1060
  %v1066 = vmul.f32 1.0, %v1065
  %v1067 = vrcp.pop %v1006
  %v1068 = vmul.f32 %v1006, %v1067
  %v1069 = vsub.f32 1.0, %v1068
  %v1070 = vmul.f32 %v1067, %v1069
  %v1071 = vadd.f32 %v1067, %v1070
  %vm1072 = vweird.f32 %v1006
  %vm1073 = vweird.f32 %v1067
  %vm1074 = vmor %vm1072, %vm1073
  %v1075 = vsel %vm1074, %v1067, %v1071
  %v1076 = vand.u32 2147483647, %v1006
  %vm1077 = vcmp.eq.f32.partialorder %v1076, 8.507059e+37
  %v1078 = vand.u32 %v1006, 2147483648
  %v1079 = vor.u32 1.1754944e-38, %v1078
  %v1080 = vsel %vm1077, %v1079, %v1075
  %v1081 = vmul.f32 1.0, %v1080
  %v1082 = vtanh.pop %v982
  %v1083 = vtanh.pop %v983
  %v1084 = vtanh.pop %v984
  %v1085 = vtanh.pop %v985
  %v1086 = vtanh.pop %v986
  %v1087 = vmul.f32 %v1021, %v890
  %v1088 = vmul.f32 %v1036, %v891
  %v1089 = vmul.f32 %v1051, %v892
  %v1090 = vmul.f32 %v1066, %v893
  %v1091 = vmul.f32 %v1081, %v894
  %1097 = vrot.lane.b32.xlu0 %v1082, 96
  %v1098 = vpop.permute.xlu0 %1097
  %1099 = vrot.lane.b32.xlu0 %v1083, 96
  %v1100 = vpop.permute.xlu0 %1099
  %1101 = vrot.lane.b32.xlu0 %v1084, 96
  %v1102 = vpop.permute.xlu0 %1101
  %1103 = vrot.lane.b32.xlu0 %v1085, 96
  %v1104 = vpop.permute.xlu0 %1103
  %1105 = vrot.lane.b32.xlu0 %v1086, 96
  %v1106 = vpop.permute.xlu0 %1105
  %v1112 = vmul.f32 %v1021, %v1098
  %v1113 = vmul.f32 %v1036, %v1100
  %v1114 = vmul.f32 %v1051, %v1102
  %v1115 = vmul.f32 %v1066, %v1104
  %v1116 = vmul.f32 %v1081, %v1106
  %1122 = vrot.lane.b32.xlu0 %v1112, 16
  %v1123 = vpop.permute.xlu0 %1122
  %1124 = vrot.lane.b32.xlu0 %v1113, 16
  %v1125 = vpop.permute.xlu0 %1124
  %1126 = vrot.lane.b32.xlu0 %v1114, 16
  %v1127 = vpop.permute.xlu0 %1126
  %1128 = vrot.lane.b32.xlu0 %v1115, 16
  %v1129 = vpop.permute.xlu0 %1128
  %1130 = vrot.lane.b32.xlu0 %v1116, 16
  %v1131 = vpop.permute.xlu0 %1130
  %v1137 = vadd.f32 %v1087, %v1123
  %v1138 = vadd.f32 %v1088, %v1125
  %v1139 = vadd.f32 %v1089, %v1127
  %v1140 = vadd.f32 %v1090, %v1129
  %v1141 = vadd.f32 %v1091, %v1131
  %v1142 = vtanh.pop %v1137
  %v1143 = vtanh.pop %v1138
  %v1144 = vtanh.pop %v1139
  %v1145 = vtanh.pop %v1140
  %v1146 = vtanh.pop %v1141
  %1152 = vrot.lane.b32.xlu0 %v1142, 32
  %v1153 = vpop.permute.xlu0 %1152
  %1154 = vrot.lane.b32.xlu0 %v1143, 32
  %v1155 = vpop.permute.xlu0 %1154
  %1156 = vrot.lane.b32.xlu0 %v1144, 32
  %v1157 = vpop.permute.xlu0 %1156
  %1158 = vrot.lane.b32.xlu0 %v1145, 32
  %v1159 = vpop.permute.xlu0 %1158
  %1160 = vrot.lane.b32.xlu0 %v1146, 32
  %v1161 = vpop.permute.xlu0 %1160
  %v1167 = vmul.f32 %v1021, %v1153
  %v1168 = vmul.f32 %v1036, %v1155
  %v1169 = vmul.f32 %v1051, %v1157
  %v1170 = vmul.f32 %v1066, %v1159
  %v1171 = vmul.f32 %v1081, %v1161
  %1177 = vrot.lane.b32.xlu0 %v1167, 80
  %v1178 = vpop.permute.xlu0 %1177
  %1179 = vrot.lane.b32.xlu0 %v1168, 80
  %v1180 = vpop.permute.xlu0 %1179
  %1181 = vrot.lane.b32.xlu0 %v1169, 80
  %v1182 = vpop.permute.xlu0 %1181
  %1183 = vrot.lane.b32.xlu0 %v1170, 80
  %v1184 = vpop.permute.xlu0 %1183
  %1185 = vrot.lane.b32.xlu0 %v1171, 80
  %v1186 = vpop.permute.xlu0 %1185
  %v1187 = vsel %vm452, %v1178, 0
  %v1189 = vsel %vm452, %v1180, 0
  %v1191 = vsel %vm452, %v1182, 0
  %v1193 = vsel %vm452, %v1184, 0
  %v1195 = vsel %vm452, %v1186, 0
  %1197 = vmatpush.msra.mxu0 0.0
  %1198 = vmatpush.msra.mxu0 0.0
  %1199 = vmatpush.msra.mxu0 0.0
  %1200 = vmatpush.msra.mxu0 0.0
  %1201 = vmatpush.msra.mxu0 0.0
  %1202 = vmatpush.msra.mxu0 0.0
  %1203 = vmatpush.msra.mxu0 0.0
  %1204 = vmatpush.msra.mxu0 0.0
  %1205 = vmatpush.msra.mxu0 0.0
  %1206 = vmatpush.msra.mxu0 0.0
  %1207 = vmatpush.msra.mxu0 0.0
  %1208 = vmatpush.msra.mxu0 0.0
  %1209 = vmatpush.msra.mxu0 0.0
  %1210 = vmatpush.msra.mxu0 0.0
  %1211 = vmatpush.msra.mxu0 %v149
  %1212 = vmatpush.msra.mxu0 %v148
  %1213 = vmatmul.f32.gmra.mxu0 %v1187
  %v1214 = vpop.f32.mrf.mxu0
  %v1215 = vadd.f32 0.0, %v1214
  %1216 = vmatmul.f32.gmra.mxu0 %v1189
  %v1217 = vpop.f32.mrf.mxu0
  %v1218 = vadd.f32 0.0, %v1217
  %1219 = vmatmul.f32.gmra.mxu0 %v1191
  %v1220 = vpop.f32.mrf.mxu0
  %v1221 = vadd.f32 0.0, %v1220
  %1222 = vmatmul.f32.gmra.mxu0 %v1193
  %v1223 = vpop.f32.mrf.mxu0
  %v1224 = vadd.f32 0.0, %v1223
  %1225 = vmatmul.f32.gmra.mxu0 %v1195
  %v1226 = vpop.f32.mrf.mxu0
  %v1227 = vadd.f32 0.0, %v1226
  %1228 = vdwg.mxu0
  %v1229 = vadd.f32 %v378, %v1215
  %v1230 = vadd.f32 %v381, %v1218
  %v1231 = vadd.f32 %v384, %v1221
  %v1232 = vadd.f32 %v387, %v1224
  %v1233 = vadd.f32 %v390, %v1227
  %v1234 = vxor.u32 %v1229, 2147483648
  %v1235 = vxor.u32 %v1230, 2147483648
  %v1236 = vxor.u32 %v1231, 2147483648
  %v1237 = vxor.u32 %v1232, 2147483648
  %v1238 = vxor.u32 %v1233, 2147483648
  %v1239 = vmul.f32 %v1234, 1.442695
  %v1240 = vpow.pop %v1239
  %v1241 = vmul.f32 %v1235, 1.442695
  %v1242 = vpow.pop %v1241
  %v1243 = vmul.f32 %v1236, 1.442695
  %v1244 = vpow.pop %v1243
  %v1245 = vmul.f32 %v1237, 1.442695
  %v1246 = vpow.pop %v1245
  %v1247 = vmul.f32 %v1238, 1.442695
  %v1248 = vpow.pop %v1247
  %v1249 = vadd.f32 %v1240, 1.0
  %v1250 = vadd.f32 %v1242, 1.0
  %v1251 = vadd.f32 %v1244, 1.0
  %v1252 = vadd.f32 %v1246, 1.0
  %v1253 = vadd.f32 %v1248, 1.0
  %v1254 = vrcp.pop %v1249
  %v1255 = vmul.f32 %v1249, %v1254
  %v1256 = vsub.f32 1.0, %v1255
  %v1257 = vmul.f32 %v1254, %v1256
  %v1258 = vadd.f32 %v1254, %v1257
  %vm1259 = vweird.f32 %v1249
  %vm1260 = vweird.f32 %v1254
  %vm1261 = vmor %vm1259, %vm1260
  %v1262 = vsel %vm1261, %v1254, %v1258
  %v1263 = vand.u32 2147483647, %v1249
  %vm1264 = vcmp.eq.f32.partialorder %v1263, 8.507059e+37
  %v1265 = vand.u32 %v1249, 2147483648
  %v1266 = vor.u32 1.1754944e-38, %v1265
  %v1267 = vsel %vm1264, %v1266, %v1262
  %v1268 = vmul.f32 1.0, %v1267
  %v1269 = vrcp.pop %v1250
  %v1270 = vmul.f32 %v1250, %v1269
  %v1271 = vsub.f32 1.0, %v1270
  %v1272 = vmul.f32 %v1269, %v1271
  %v1273 = vadd.f32 %v1269, %v1272
  %vm1274 = vweird.f32 %v1250
  %vm1275 = vweird.f32 %v1269
  %vm1276 = vmor %vm1274, %vm1275
  %v1277 = vsel %vm1276, %v1269, %v1273
  %v1278 = vand.u32 2147483647, %v1250
  %vm1279 = vcmp.eq.f32.partialorder %v1278, 8.507059e+37
  %v1280 = vand.u32 %v1250, 2147483648
  %v1281 = vor.u32 1.1754944e-38, %v1280
  %v1282 = vsel %vm1279, %v1281, %v1277
  %v1283 = vmul.f32 1.0, %v1282
  %v1284 = vrcp.pop %v1251
  %v1285 = vmul.f32 %v1251, %v1284
  %v1286 = vsub.f32 1.0, %v1285
  %v1287 = vmul.f32 %v1284, %v1286
  %v1288 = vadd.f32 %v1284, %v1287
  %vm1289 = vweird.f32 %v1251
  %vm1290 = vweird.f32 %v1284
  %vm1291 = vmor %vm1289, %vm1290
  %v1292 = vsel %vm1291, %v1284, %v1288
  %v1293 = vand.u32 2147483647, %v1251
  %vm1294 = vcmp.eq.f32.partialorder %v1293, 8.507059e+37
  %v1295 = vand.u32 %v1251, 2147483648
  %v1296 = vor.u32 1.1754944e-38, %v1295
  %v1297 = vsel %vm1294, %v1296, %v1292
  %v1298 = vmul.f32 1.0, %v1297
  %v1299 = vrcp.pop %v1252
  %v1300 = vmul.f32 %v1252, %v1299
  %v1301 = vsub.f32 1.0, %v1300
  %v1302 = vmul.f32 %v1299, %v1301
  %v1303 = vadd.f32 %v1299, %v1302
  %vm1304 = vweird.f32 %v1252
  %vm1305 = vweird.f32 %v1299
  %vm1306 = vmor %vm1304, %vm1305
  %v1307 = vsel %vm1306, %v1299, %v1303
  %v1308 = vand.u32 2147483647, %v1252
  %vm1309 = vcmp.eq.f32.partialorder %v1308, 8.507059e+37
  %v1310 = vand.u32 %v1252, 2147483648
  %v1311 = vor.u32 1.1754944e-38, %v1310
  %v1312 = vsel %vm1309, %v1311, %v1307
  %v1313 = vmul.f32 1.0, %v1312
  %v1314 = vrcp.pop %v1253
  %v1315 = vmul.f32 %v1253, %v1314
  %v1316 = vsub.f32 1.0, %v1315
  %v1317 = vmul.f32 %v1314, %v1316
  %v1318 = vadd.f32 %v1314, %v1317
  %vm1319 = vweird.f32 %v1253
  %vm1320 = vweird.f32 %v1314
  %vm1321 = vmor %vm1319, %vm1320
  %v1322 = vsel %vm1321, %v1314, %v1318
  %v1323 = vand.u32 2147483647, %v1253
  %vm1324 = vcmp.eq.f32.partialorder %v1323, 8.507059e+37
  %v1325 = vand.u32 %v1253, 2147483648
  %v1326 = vor.u32 1.1754944e-38, %v1325
  %v1327 = vsel %vm1324, %v1326, %v1322
  %v1328 = vmul.f32 1.0, %v1327
  %v1329 = vtanh.pop %v1229
  %v1330 = vtanh.pop %v1230
  %v1331 = vtanh.pop %v1231
  %v1332 = vtanh.pop %v1232
  %v1333 = vtanh.pop %v1233
  %v1334 = vmul.f32 %v1268, %v1137
  %v1335 = vmul.f32 %v1283, %v1138
  %v1336 = vmul.f32 %v1298, %v1139
  %v1337 = vmul.f32 %v1313, %v1140
  %v1338 = vmul.f32 %v1328, %v1141
  %1344 = vrot.lane.b32.xlu0 %v1329, 96
  %v1345 = vpop.permute.xlu0 %1344
  %1346 = vrot.lane.b32.xlu0 %v1330, 96
  %v1347 = vpop.permute.xlu0 %1346
  %1348 = vrot.lane.b32.xlu0 %v1331, 96
  %v1349 = vpop.permute.xlu0 %1348
  %1350 = vrot.lane.b32.xlu0 %v1332, 96
  %v1351 = vpop.permute.xlu0 %1350
  %1352 = vrot.lane.b32.xlu0 %v1333, 96
  %v1353 = vpop.permute.xlu0 %1352
  %v1359 = vmul.f32 %v1268, %v1345
  %v1360 = vmul.f32 %v1283, %v1347
  %v1361 = vmul.f32 %v1298, %v1349
  %v1362 = vmul.f32 %v1313, %v1351
  %v1363 = vmul.f32 %v1328, %v1353
  %1369 = vrot.lane.b32.xlu0 %v1359, 16
  %v1370 = vpop.permute.xlu0 %1369
  %1371 = vrot.lane.b32.xlu0 %v1360, 16
  %v1372 = vpop.permute.xlu0 %1371
  %1373 = vrot.lane.b32.xlu0 %v1361, 16
  %v1374 = vpop.permute.xlu0 %1373
  %1375 = vrot.lane.b32.xlu0 %v1362, 16
  %v1376 = vpop.permute.xlu0 %1375
  %1377 = vrot.lane.b32.xlu0 %v1363, 16
  %v1378 = vpop.permute.xlu0 %1377
  %v1384 = vadd.f32 %v1334, %v1370
  %v1385 = vadd.f32 %v1335, %v1372
  %v1386 = vadd.f32 %v1336, %v1374
  %v1387 = vadd.f32 %v1337, %v1376
  %v1388 = vadd.f32 %v1338, %v1378
  %v1389 = vtanh.pop %v1384
  %v1390 = vtanh.pop %v1385
  %v1391 = vtanh.pop %v1386
  %v1392 = vtanh.pop %v1387
  %v1393 = vtanh.pop %v1388
  %1399 = vrot.lane.b32.xlu0 %v1389, 32
  %v1400 = vpop.permute.xlu0 %1399
  %1401 = vrot.lane.b32.xlu0 %v1390, 32
  %v1402 = vpop.permute.xlu0 %1401
  %1403 = vrot.lane.b32.xlu0 %v1391, 32
  %v1404 = vpop.permute.xlu0 %1403
  %1405 = vrot.lane.b32.xlu0 %v1392, 32
  %v1406 = vpop.permute.xlu0 %1405
  %1407 = vrot.lane.b32.xlu0 %v1393, 32
  %v1408 = vpop.permute.xlu0 %1407
  %v1414 = vmul.f32 %v1268, %v1400
  %v1415 = vmul.f32 %v1283, %v1402
  %v1416 = vmul.f32 %v1298, %v1404
  %v1417 = vmul.f32 %v1313, %v1406
  %v1418 = vmul.f32 %v1328, %v1408
  %1424 = vrot.lane.b32.xlu0 %v1414, 80
  %v1425 = vpop.permute.xlu0 %1424
  %1426 = vrot.lane.b32.xlu0 %v1415, 80
  %v1427 = vpop.permute.xlu0 %1426
  %1428 = vrot.lane.b32.xlu0 %v1416, 80
  %v1429 = vpop.permute.xlu0 %1428
  %1430 = vrot.lane.b32.xlu0 %v1417, 80
  %v1431 = vpop.permute.xlu0 %1430
  %1432 = vrot.lane.b32.xlu0 %v1418, 80
  %v1433 = vpop.permute.xlu0 %1432
  %v1434 = vsel %vm452, %v1425, 0
  %v1436 = vsel %vm452, %v1427, 0
  %v1438 = vsel %vm452, %v1429, 0
  %v1440 = vsel %vm452, %v1431, 0
  %v1442 = vsel %vm452, %v1433, 0
  %1444 = vmatpush.msra.mxu0 0.0
  %1445 = vmatpush.msra.mxu0 0.0
  %1446 = vmatpush.msra.mxu0 0.0
  %1447 = vmatpush.msra.mxu0 0.0
  %1448 = vmatpush.msra.mxu0 0.0
  %1449 = vmatpush.msra.mxu0 0.0
  %1450 = vmatpush.msra.mxu0 0.0
  %1451 = vmatpush.msra.mxu0 0.0
  %1452 = vmatpush.msra.mxu0 0.0
  %1453 = vmatpush.msra.mxu0 0.0
  %1454 = vmatpush.msra.mxu0 0.0
  %1455 = vmatpush.msra.mxu0 0.0
  %1456 = vmatpush.msra.mxu0 0.0
  %1457 = vmatpush.msra.mxu0 0.0
  %1458 = vmatpush.msra.mxu0 %v149
  %1459 = vmatpush.msra.mxu0 %v148
  %1460 = vmatmul.f32.gmra.mxu0 %v1434
  %v1461 = vpop.f32.mrf.mxu0
  %v1462 = vadd.f32 0.0, %v1461
  %1463 = vmatmul.f32.gmra.mxu0 %v1436
  %v1464 = vpop.f32.mrf.mxu0
  %v1465 = vadd.f32 0.0, %v1464
  %1466 = vmatmul.f32.gmra.mxu0 %v1438
  %v1467 = vpop.f32.mrf.mxu0
  %v1468 = vadd.f32 0.0, %v1467
  %1469 = vmatmul.f32.gmra.mxu0 %v1440
  %v1470 = vpop.f32.mrf.mxu0
  %v1471 = vadd.f32 0.0, %v1470
  %1472 = vmatmul.f32.gmra.mxu0 %v1442
  %v1473 = vpop.f32.mrf.mxu0
  %v1474 = vadd.f32 0.0, %v1473
  %1475 = vdwg.mxu0
  %v1476 = vadd.f32 %v393, %v1462
  %v1477 = vadd.f32 %v396, %v1465
  %v1478 = vadd.f32 %v399, %v1468
  %v1479 = vadd.f32 %v402, %v1471
  %v1480 = vadd.f32 %v405, %v1474
  %v1481 = vxor.u32 %v1476, 2147483648
  %v1482 = vxor.u32 %v1477, 2147483648
  %v1483 = vxor.u32 %v1478, 2147483648
  %v1484 = vxor.u32 %v1479, 2147483648
  %v1485 = vxor.u32 %v1480, 2147483648
  %v1486 = vmul.f32 %v1481, 1.442695
  %v1487 = vpow.pop %v1486
  %v1488 = vmul.f32 %v1482, 1.442695
  %v1489 = vpow.pop %v1488
  %v1490 = vmul.f32 %v1483, 1.442695
  %v1491 = vpow.pop %v1490
  %v1492 = vmul.f32 %v1484, 1.442695
  %v1493 = vpow.pop %v1492
  %v1494 = vmul.f32 %v1485, 1.442695
  %v1495 = vpow.pop %v1494
  %v1496 = vadd.f32 %v1487, 1.0
  %v1497 = vadd.f32 %v1489, 1.0
  %v1498 = vadd.f32 %v1491, 1.0
  %v1499 = vadd.f32 %v1493, 1.0
  %v1500 = vadd.f32 %v1495, 1.0
  %v1501 = vrcp.pop %v1496
  %v1502 = vmul.f32 %v1496, %v1501
  %v1503 = vsub.f32 1.0, %v1502
  %v1504 = vmul.f32 %v1501, %v1503
  %v1505 = vadd.f32 %v1501, %v1504
  %vm1506 = vweird.f32 %v1496
  %vm1507 = vweird.f32 %v1501
  %vm1508 = vmor %vm1506, %vm1507
  %v1509 = vsel %vm1508, %v1501, %v1505
  %v1510 = vand.u32 2147483647, %v1496
  %vm1511 = vcmp.eq.f32.partialorder %v1510, 8.507059e+37
  %v1512 = vand.u32 %v1496, 2147483648
  %v1513 = vor.u32 1.1754944e-38, %v1512
  %v1514 = vsel %vm1511, %v1513, %v1509
  %v1515 = vmul.f32 1.0, %v1514
  %v1516 = vrcp.pop %v1497
  %v1517 = vmul.f32 %v1497, %v1516
  %v1518 = vsub.f32 1.0, %v1517
  %v1519 = vmul.f32 %v1516, %v1518
  %v1520 = vadd.f32 %v1516, %v1519
  %vm1521 = vweird.f32 %v1497
  %vm1522 = vweird.f32 %v1516
  %vm1523 = vmor %vm1521, %vm1522
  %v1524 = vsel %vm1523, %v1516, %v1520
  %v1525 = vand.u32 2147483647, %v1497
  %vm1526 = vcmp.eq.f32.partialorder %v1525, 8.507059e+37
  %v1527 = vand.u32 %v1497, 2147483648
  %v1528 = vor.u32 1.1754944e-38, %v1527
  %v1529 = vsel %vm1526, %v1528, %v1524
  %v1530 = vmul.f32 1.0, %v1529
  %v1531 = vrcp.pop %v1498
  %v1532 = vmul.f32 %v1498, %v1531
  %v1533 = vsub.f32 1.0, %v1532
  %v1534 = vmul.f32 %v1531, %v1533
  %v1535 = vadd.f32 %v1531, %v1534
  %vm1536 = vweird.f32 %v1498
  %vm1537 = vweird.f32 %v1531
  %vm1538 = vmor %vm1536, %vm1537
  %v1539 = vsel %vm1538, %v1531, %v1535
  %v1540 = vand.u32 2147483647, %v1498
  %vm1541 = vcmp.eq.f32.partialorder %v1540, 8.507059e+37
  %v1542 = vand.u32 %v1498, 2147483648
  %v1543 = vor.u32 1.1754944e-38, %v1542
  %v1544 = vsel %vm1541, %v1543, %v1539
  %v1545 = vmul.f32 1.0, %v1544
  %v1546 = vrcp.pop %v1499
  %v1547 = vmul.f32 %v1499, %v1546
  %v1548 = vsub.f32 1.0, %v1547
  %v1549 = vmul.f32 %v1546, %v1548
  %v1550 = vadd.f32 %v1546, %v1549
  %vm1551 = vweird.f32 %v1499
  %vm1552 = vweird.f32 %v1546
  %vm1553 = vmor %vm1551, %vm1552
  %v1554 = vsel %vm1553, %v1546, %v1550
  %v1555 = vand.u32 2147483647, %v1499
  %vm1556 = vcmp.eq.f32.partialorder %v1555, 8.507059e+37
  %v1557 = vand.u32 %v1499, 2147483648
  %v1558 = vor.u32 1.1754944e-38, %v1557
  %v1559 = vsel %vm1556, %v1558, %v1554
  %v1560 = vmul.f32 1.0, %v1559
  %v1561 = vrcp.pop %v1500
  %v1562 = vmul.f32 %v1500, %v1561
  %v1563 = vsub.f32 1.0, %v1562
  %v1564 = vmul.f32 %v1561, %v1563
  %v1565 = vadd.f32 %v1561, %v1564
  %vm1566 = vweird.f32 %v1500
  %vm1567 = vweird.f32 %v1561
  %vm1568 = vmor %vm1566, %vm1567
  %v1569 = vsel %vm1568, %v1561, %v1565
  %v1570 = vand.u32 2147483647, %v1500
  %vm1571 = vcmp.eq.f32.partialorder %v1570, 8.507059e+37
  %v1572 = vand.u32 %v1500, 2147483648
  %v1573 = vor.u32 1.1754944e-38, %v1572
  %v1574 = vsel %vm1571, %v1573, %v1569
  %v1575 = vmul.f32 1.0, %v1574
  %v1576 = vtanh.pop %v1476
  %v1577 = vtanh.pop %v1477
  %v1578 = vtanh.pop %v1478
  %v1579 = vtanh.pop %v1479
  %v1580 = vtanh.pop %v1480
  %v1581 = vmul.f32 %v1515, %v1384
  %v1582 = vmul.f32 %v1530, %v1385
  %v1583 = vmul.f32 %v1545, %v1386
  %v1584 = vmul.f32 %v1560, %v1387
  %v1585 = vmul.f32 %v1575, %v1388
  %1591 = vrot.lane.b32.xlu0 %v1576, 96
  %v1592 = vpop.permute.xlu0 %1591
  %1593 = vrot.lane.b32.xlu0 %v1577, 96
  %v1594 = vpop.permute.xlu0 %1593
  %1595 = vrot.lane.b32.xlu0 %v1578, 96
  %v1596 = vpop.permute.xlu0 %1595
  %1597 = vrot.lane.b32.xlu0 %v1579, 96
  %v1598 = vpop.permute.xlu0 %1597
  %1599 = vrot.lane.b32.xlu0 %v1580, 96
  %v1600 = vpop.permute.xlu0 %1599
  %v1606 = vmul.f32 %v1515, %v1592
  %v1607 = vmul.f32 %v1530, %v1594
  %v1608 = vmul.f32 %v1545, %v1596
  %v1609 = vmul.f32 %v1560, %v1598
  %v1610 = vmul.f32 %v1575, %v1600
  %1616 = vrot.lane.b32.xlu0 %v1606, 16
  %v1617 = vpop.permute.xlu0 %1616
  %1618 = vrot.lane.b32.xlu0 %v1607, 16
  %v1619 = vpop.permute.xlu0 %1618
  %1620 = vrot.lane.b32.xlu0 %v1608, 16
  %v1621 = vpop.permute.xlu0 %1620
  %1622 = vrot.lane.b32.xlu0 %v1609, 16
  %v1623 = vpop.permute.xlu0 %1622
  %1624 = vrot.lane.b32.xlu0 %v1610, 16
  %v1625 = vpop.permute.xlu0 %1624
  %v1631 = vadd.f32 %v1581, %v1617
  %v1632 = vadd.f32 %v1582, %v1619
  %v1633 = vadd.f32 %v1583, %v1621
  %v1634 = vadd.f32 %v1584, %v1623
  %v1635 = vadd.f32 %v1585, %v1625
  %v1636 = vtanh.pop %v1631
  %v1637 = vtanh.pop %v1632
  %v1638 = vtanh.pop %v1633
  %v1639 = vtanh.pop %v1634
  %v1640 = vtanh.pop %v1635
  %1646 = vrot.lane.b32.xlu0 %v1636, 32
  %v1647 = vpop.permute.xlu0 %1646
  %1648 = vrot.lane.b32.xlu0 %v1637, 32
  %v1649 = vpop.permute.xlu0 %1648
  %1650 = vrot.lane.b32.xlu0 %v1638, 32
  %v1651 = vpop.permute.xlu0 %1650
  %1652 = vrot.lane.b32.xlu0 %v1639, 32
  %v1653 = vpop.permute.xlu0 %1652
  %1654 = vrot.lane.b32.xlu0 %v1640, 32
  %v1655 = vpop.permute.xlu0 %1654
  %v1661 = vmul.f32 %v1515, %v1647
  %v1662 = vmul.f32 %v1530, %v1649
  %v1663 = vmul.f32 %v1545, %v1651
  %v1664 = vmul.f32 %v1560, %v1653
  %v1665 = vmul.f32 %v1575, %v1655
  %1671 = vrot.lane.b32.xlu0 %v1661, 80
  %v1672 = vpop.permute.xlu0 %1671
  %1673 = vrot.lane.b32.xlu0 %v1662, 80
  %v1674 = vpop.permute.xlu0 %1673
  %1675 = vrot.lane.b32.xlu0 %v1663, 80
  %v1676 = vpop.permute.xlu0 %1675
  %1677 = vrot.lane.b32.xlu0 %v1664, 80
  %v1678 = vpop.permute.xlu0 %1677
  %1679 = vrot.lane.b32.xlu0 %v1665, 80
  %v1680 = vpop.permute.xlu0 %1679
  %v1681 = vsel %vm452, %v1672, 0
  %v1683 = vsel %vm452, %v1674, 0
  %v1685 = vsel %vm452, %v1676, 0
  %v1687 = vsel %vm452, %v1678, 0
  %v1689 = vsel %vm452, %v1680, 0
  %1691 = vmatpush.msra.mxu0 0.0
  %1692 = vmatpush.msra.mxu0 0.0
  %1693 = vmatpush.msra.mxu0 0.0
  %1694 = vmatpush.msra.mxu0 0.0
  %1695 = vmatpush.msra.mxu0 0.0
  %1696 = vmatpush.msra.mxu0 0.0
  %1697 = vmatpush.msra.mxu0 0.0
  %1698 = vmatpush.msra.mxu0 0.0
  %1699 = vmatpush.msra.mxu0 0.0
  %1700 = vmatpush.msra.mxu0 0.0
  %1701 = vmatpush.msra.mxu0 0.0
  %1702 = vmatpush.msra.mxu0 0.0
  %1703 = vmatpush.msra.mxu0 0.0
  %1704 = vmatpush.msra.mxu0 0.0
  %1705 = vmatpush.msra.mxu0 %v149
  %1706 = vmatpush.msra.mxu0 %v148
  %1707 = vmatmul.f32.gmra.mxu0 %v1681
  %v1708 = vpop.f32.mrf.mxu0
  %v1709 = vadd.f32 0.0, %v1708
  %1710 = vmatmul.f32.gmra.mxu0 %v1683
  %v1711 = vpop.f32.mrf.mxu0
  %v1712 = vadd.f32 0.0, %v1711
  %1713 = vmatmul.f32.gmra.mxu0 %v1685
  %v1714 = vpop.f32.mrf.mxu0
  %v1715 = vadd.f32 0.0, %v1714
  %1716 = vmatmul.f32.gmra.mxu0 %v1687
  %v1717 = vpop.f32.mrf.mxu0
  %v1718 = vadd.f32 0.0, %v1717
  %1719 = vmatmul.f32.gmra.mxu0 %v1689
  %v1720 = vpop.f32.mrf.mxu0
  %v1721 = vadd.f32 0.0, %v1720
  %1722 = vdwg.mxu0
  %v1723 = vadd.f32 %v408, %v1709
  %v1724 = vadd.f32 %v411, %v1712
  %v1725 = vadd.f32 %v414, %v1715
  %v1726 = vadd.f32 %v417, %v1718
  %v1727 = vadd.f32 %v420, %v1721
  %v1728 = vxor.u32 %v1723, 2147483648
  %v1729 = vxor.u32 %v1724, 2147483648
  %v1730 = vxor.u32 %v1725, 2147483648
  %v1731 = vxor.u32 %v1726, 2147483648
  %v1732 = vxor.u32 %v1727, 2147483648
  %v1733 = vmul.f32 %v1728, 1.442695
  %v1734 = vpow.pop %v1733
  %v1735 = vmul.f32 %v1729, 1.442695
  %v1736 = vpow.pop %v1735
  %v1737 = vmul.f32 %v1730, 1.442695
  %v1738 = vpow.pop %v1737
  %v1739 = vmul.f32 %v1731, 1.442695
  %v1740 = vpow.pop %v1739
  %v1741 = vmul.f32 %v1732, 1.442695
  %v1742 = vpow.pop %v1741
  %v1743 = vadd.f32 %v1734, 1.0
  %v1744 = vadd.f32 %v1736, 1.0
  %v1745 = vadd.f32 %v1738, 1.0
  %v1746 = vadd.f32 %v1740, 1.0
  %v1747 = vadd.f32 %v1742, 1.0
  %v1748 = vrcp.pop %v1743
  %v1749 = vmul.f32 %v1743, %v1748
  %v1750 = vsub.f32 1.0, %v1749
  %v1751 = vmul.f32 %v1748, %v1750
  %v1752 = vadd.f32 %v1748, %v1751
  %vm1753 = vweird.f32 %v1743
  %vm1754 = vweird.f32 %v1748
  %vm1755 = vmor %vm1753, %vm1754
  %v1756 = vsel %vm1755, %v1748, %v1752
  %v1757 = vand.u32 2147483647, %v1743
  %vm1758 = vcmp.eq.f32.partialorder %v1757, 8.507059e+37
  %v1759 = vand.u32 %v1743, 2147483648
  %v1760 = vor.u32 1.1754944e-38, %v1759
  %v1761 = vsel %vm1758, %v1760, %v1756
  %v1762 = vmul.f32 1.0, %v1761
  %v1763 = vrcp.pop %v1744
  %v1764 = vmul.f32 %v1744, %v1763
  %v1765 = vsub.f32 1.0, %v1764
  %v1766 = vmul.f32 %v1763, %v1765
  %v1767 = vadd.f32 %v1763, %v1766
  %vm1768 = vweird.f32 %v1744
  %vm1769 = vweird.f32 %v1763
  %vm1770 = vmor %vm1768, %vm1769
  %v1771 = vsel %vm1770, %v1763, %v1767
  %v1772 = vand.u32 2147483647, %v1744
  %vm1773 = vcmp.eq.f32.partialorder %v1772, 8.507059e+37
  %v1774 = vand.u32 %v1744, 2147483648
  %v1775 = vor.u32 1.1754944e-38, %v1774
  %v1776 = vsel %vm1773, %v1775, %v1771
  %v1777 = vmul.f32 1.0, %v1776
  %v1778 = vrcp.pop %v1745
  %v1779 = vmul.f32 %v1745, %v1778
  %v1780 = vsub.f32 1.0, %v1779
  %v1781 = vmul.f32 %v1778, %v1780
  %v1782 = vadd.f32 %v1778, %v1781
  %vm1783 = vweird.f32 %v1745
  %vm1784 = vweird.f32 %v1778
  %vm1785 = vmor %vm1783, %vm1784
  %v1786 = vsel %vm1785, %v1778, %v1782
  %v1787 = vand.u32 2147483647, %v1745
  %vm1788 = vcmp.eq.f32.partialorder %v1787, 8.507059e+37
  %v1789 = vand.u32 %v1745, 2147483648
  %v1790 = vor.u32 1.1754944e-38, %v1789
  %v1791 = vsel %vm1788, %v1790, %v1786
  %v1792 = vmul.f32 1.0, %v1791
  %v1793 = vrcp.pop %v1746
  %v1794 = vmul.f32 %v1746, %v1793
  %v1795 = vsub.f32 1.0, %v1794
  %v1796 = vmul.f32 %v1793, %v1795
  %v1797 = vadd.f32 %v1793, %v1796
  %vm1798 = vweird.f32 %v1746
  %vm1799 = vweird.f32 %v1793
  %vm1800 = vmor %vm1798, %vm1799
  %v1801 = vsel %vm1800, %v1793, %v1797
  %v1802 = vand.u32 2147483647, %v1746
  %vm1803 = vcmp.eq.f32.partialorder %v1802, 8.507059e+37
  %v1804 = vand.u32 %v1746, 2147483648
  %v1805 = vor.u32 1.1754944e-38, %v1804
  %v1806 = vsel %vm1803, %v1805, %v1801
  %v1807 = vmul.f32 1.0, %v1806
  %v1808 = vrcp.pop %v1747
  %v1809 = vmul.f32 %v1747, %v1808
  %v1810 = vsub.f32 1.0, %v1809
  %v1811 = vmul.f32 %v1808, %v1810
  %v1812 = vadd.f32 %v1808, %v1811
  %vm1813 = vweird.f32 %v1747
  %vm1814 = vweird.f32 %v1808
  %vm1815 = vmor %vm1813, %vm1814
  %v1816 = vsel %vm1815, %v1808, %v1812
  %v1817 = vand.u32 2147483647, %v1747
  %vm1818 = vcmp.eq.f32.partialorder %v1817, 8.507059e+37
  %v1819 = vand.u32 %v1747, 2147483648
  %v1820 = vor.u32 1.1754944e-38, %v1819
  %v1821 = vsel %vm1818, %v1820, %v1816
  %v1822 = vmul.f32 1.0, %v1821
  %v1823 = vtanh.pop %v1723
  %v1824 = vtanh.pop %v1724
  %v1825 = vtanh.pop %v1725
  %v1826 = vtanh.pop %v1726
  %v1827 = vtanh.pop %v1727
  %v1828 = vmul.f32 %v1762, %v1631
  %v1829 = vmul.f32 %v1777, %v1632
  %v1830 = vmul.f32 %v1792, %v1633
  %v1831 = vmul.f32 %v1807, %v1634
  %v1832 = vmul.f32 %v1822, %v1635
  %1838 = vrot.lane.b32.xlu0 %v1823, 96
  %v1839 = vpop.permute.xlu0 %1838
  %1840 = vrot.lane.b32.xlu0 %v1824, 96
  %v1841 = vpop.permute.xlu0 %1840
  %1842 = vrot.lane.b32.xlu0 %v1825, 96
  %v1843 = vpop.permute.xlu0 %1842
  %1844 = vrot.lane.b32.xlu0 %v1826, 96
  %v1845 = vpop.permute.xlu0 %1844
  %1846 = vrot.lane.b32.xlu0 %v1827, 96
  %v1847 = vpop.permute.xlu0 %1846
  %v1853 = vmul.f32 %v1762, %v1839
  %v1854 = vmul.f32 %v1777, %v1841
  %v1855 = vmul.f32 %v1792, %v1843
  %v1856 = vmul.f32 %v1807, %v1845
  %v1857 = vmul.f32 %v1822, %v1847
  %1863 = vrot.lane.b32.xlu0 %v1853, 16
  %v1864 = vpop.permute.xlu0 %1863
  %1865 = vrot.lane.b32.xlu0 %v1854, 16
  %v1866 = vpop.permute.xlu0 %1865
  %1867 = vrot.lane.b32.xlu0 %v1855, 16
  %v1868 = vpop.permute.xlu0 %1867
  %1869 = vrot.lane.b32.xlu0 %v1856, 16
  %v1870 = vpop.permute.xlu0 %1869
  %1871 = vrot.lane.b32.xlu0 %v1857, 16
  %v1872 = vpop.permute.xlu0 %1871
  %v1878 = vadd.f32 %v1828, %v1864
  %v1879 = vadd.f32 %v1829, %v1866
  %v1880 = vadd.f32 %v1830, %v1868
  %v1881 = vadd.f32 %v1831, %v1870
  %v1882 = vadd.f32 %v1832, %v1872
  %v1883 = vtanh.pop %v1878
  %v1884 = vtanh.pop %v1879
  %v1885 = vtanh.pop %v1880
  %v1886 = vtanh.pop %v1881
  %v1887 = vtanh.pop %v1882
  %1893 = vrot.lane.b32.xlu0 %v1883, 32
  %v1894 = vpop.permute.xlu0 %1893
  %1895 = vrot.lane.b32.xlu0 %v1884, 32
  %v1896 = vpop.permute.xlu0 %1895
  %1897 = vrot.lane.b32.xlu0 %v1885, 32
  %v1898 = vpop.permute.xlu0 %1897
  %1899 = vrot.lane.b32.xlu0 %v1886, 32
  %v1900 = vpop.permute.xlu0 %1899
  %1901 = vrot.lane.b32.xlu0 %v1887, 32
  %v1902 = vpop.permute.xlu0 %1901
  %v1908 = vmul.f32 %v1762, %v1894
  %v1909 = vmul.f32 %v1777, %v1896
  %v1910 = vmul.f32 %v1792, %v1898
  %v1911 = vmul.f32 %v1807, %v1900
  %v1912 = vmul.f32 %v1822, %v1902
  %1918 = vrot.lane.b32.xlu0 %v1908, 80
  %v1919 = vpop.permute.xlu0 %1918
  %1920 = vrot.lane.b32.xlu0 %v1909, 80
  %v1921 = vpop.permute.xlu0 %1920
  %1922 = vrot.lane.b32.xlu0 %v1910, 80
  %v1923 = vpop.permute.xlu0 %1922
  %1924 = vrot.lane.b32.xlu0 %v1911, 80
  %v1925 = vpop.permute.xlu0 %1924
  %1926 = vrot.lane.b32.xlu0 %v1912, 80
  %v1927 = vpop.permute.xlu0 %1926
  %v1928 = vsel %vm452, %v1919, 0
  %v1930 = vsel %vm452, %v1921, 0
  %v1932 = vsel %vm452, %v1923, 0
  %v1934 = vsel %vm452, %v1925, 0
  %v1936 = vsel %vm452, %v1927, 0
  %1938 = vmatpush.msra.mxu0 0.0
  %1939 = vmatpush.msra.mxu0 0.0
  %1940 = vmatpush.msra.mxu0 0.0
  %1941 = vmatpush.msra.mxu0 0.0
  %1942 = vmatpush.msra.mxu0 0.0
  %1943 = vmatpush.msra.mxu0 0.0
  %1944 = vmatpush.msra.mxu0 0.0
  %1945 = vmatpush.msra.mxu0 0.0
  %1946 = vmatpush.msra.mxu0 0.0
  %1947 = vmatpush.msra.mxu0 0.0
  %1948 = vmatpush.msra.mxu0 0.0
  %1949 = vmatpush.msra.mxu0 0.0
  %1950 = vmatpush.msra.mxu0 0.0
  %1951 = vmatpush.msra.mxu0 0.0
  %1952 = vmatpush.msra.mxu0 %v149
  %1953 = vmatpush.msra.mxu0 %v148
  %1954 = vmatmul.f32.gmra.mxu0 %v1928
  %v1955 = vpop.f32.mrf.mxu0
  %v1956 = vadd.f32 0.0, %v1955
  %1957 = vmatmul.f32.gmra.mxu0 %v1930
  %v1958 = vpop.f32.mrf.mxu0
  %v1959 = vadd.f32 0.0, %v1958
  %1960 = vmatmul.f32.gmra.mxu0 %v1932
  %v1961 = vpop.f32.mrf.mxu0
  %v1962 = vadd.f32 0.0, %v1961
  %1963 = vmatmul.f32.gmra.mxu0 %v1934
  %v1964 = vpop.f32.mrf.mxu0
  %v1965 = vadd.f32 0.0, %v1964
  %1966 = vmatmul.f32.gmra.mxu0 %v1936
  %v1967 = vpop.f32.mrf.mxu0
  %v1968 = vadd.f32 0.0, %v1967
  %1969 = vdwg.mxu0
  %v1970 = vadd.f32 %v423, %v1956
  %v1971 = vadd.f32 %v426, %v1959
  %v1972 = vadd.f32 %v429, %v1962
  %v1973 = vadd.f32 %v432, %v1965
  %v1974 = vadd.f32 %v435, %v1968
  %v1975 = vxor.u32 %v1970, 2147483648
  %v1976 = vxor.u32 %v1971, 2147483648
  %v1977 = vxor.u32 %v1972, 2147483648
  %v1978 = vxor.u32 %v1973, 2147483648
  %v1979 = vxor.u32 %v1974, 2147483648
  %v1980 = vmul.f32 %v1975, 1.442695
  %v1981 = vpow.pop %v1980
  %v1982 = vmul.f32 %v1976, 1.442695
  %v1983 = vpow.pop %v1982
  %v1984 = vmul.f32 %v1977, 1.442695
  %v1985 = vpow.pop %v1984
  %v1986 = vmul.f32 %v1978, 1.442695
  %v1987 = vpow.pop %v1986
  %v1988 = vmul.f32 %v1979, 1.442695
  %v1989 = vpow.pop %v1988
  %v1990 = vadd.f32 %v1981, 1.0
  %v1991 = vadd.f32 %v1983, 1.0
  %v1992 = vadd.f32 %v1985, 1.0
  %v1993 = vadd.f32 %v1987, 1.0
  %v1994 = vadd.f32 %v1989, 1.0
  %v1995 = vrcp.pop %v1990
  %v1996 = vmul.f32 %v1990, %v1995
  %v1997 = vsub.f32 1.0, %v1996
  %v1998 = vmul.f32 %v1995, %v1997
  %v1999 = vadd.f32 %v1995, %v1998
  %vm2000 = vweird.f32 %v1990
  %vm2001 = vweird.f32 %v1995
  %vm2002 = vmor %vm2000, %vm2001
  %v2003 = vsel %vm2002, %v1995, %v1999
  %v2004 = vand.u32 2147483647, %v1990
  %vm2005 = vcmp.eq.f32.partialorder %v2004, 8.507059e+37
  %v2006 = vand.u32 %v1990, 2147483648
  %v2007 = vor.u32 1.1754944e-38, %v2006
  %v2008 = vsel %vm2005, %v2007, %v2003
  %v2009 = vmul.f32 1.0, %v2008
  %v2010 = vrcp.pop %v1991
  %v2011 = vmul.f32 %v1991, %v2010
  %v2012 = vsub.f32 1.0, %v2011
  %v2013 = vmul.f32 %v2010, %v2012
  %v2014 = vadd.f32 %v2010, %v2013
  %vm2015 = vweird.f32 %v1991
  %vm2016 = vweird.f32 %v2010
  %vm2017 = vmor %vm2015, %vm2016
  %v2018 = vsel %vm2017, %v2010, %v2014
  %v2019 = vand.u32 2147483647, %v1991
  %vm2020 = vcmp.eq.f32.partialorder %v2019, 8.507059e+37
  %v2021 = vand.u32 %v1991, 2147483648
  %v2022 = vor.u32 1.1754944e-38, %v2021
  %v2023 = vsel %vm2020, %v2022, %v2018
  %v2024 = vmul.f32 1.0, %v2023
  %v2025 = vrcp.pop %v1992
  %v2026 = vmul.f32 %v1992, %v2025
  %v2027 = vsub.f32 1.0, %v2026
  %v2028 = vmul.f32 %v2025, %v2027
  %v2029 = vadd.f32 %v2025, %v2028
  %vm2030 = vweird.f32 %v1992
  %vm2031 = vweird.f32 %v2025
  %vm2032 = vmor %vm2030, %vm2031
  %v2033 = vsel %vm2032, %v2025, %v2029
  %v2034 = vand.u32 2147483647, %v1992
  %vm2035 = vcmp.eq.f32.partialorder %v2034, 8.507059e+37
  %v2036 = vand.u32 %v1992, 2147483648
  %v2037 = vor.u32 1.1754944e-38, %v2036
  %v2038 = vsel %vm2035, %v2037, %v2033
  %v2039 = vmul.f32 1.0, %v2038
  %v2040 = vrcp.pop %v1993
  %v2041 = vmul.f32 %v1993, %v2040
  %v2042 = vsub.f32 1.0, %v2041
  %v2043 = vmul.f32 %v2040, %v2042
  %v2044 = vadd.f32 %v2040, %v2043
  %vm2045 = vweird.f32 %v1993
  %vm2046 = vweird.f32 %v2040
  %vm2047 = vmor %vm2045, %vm2046
  %v2048 = vsel %vm2047, %v2040, %v2044
  %v2049 = vand.u32 2147483647, %v1993
  %vm2050 = vcmp.eq.f32.partialorder %v2049, 8.507059e+37
  %v2051 = vand.u32 %v1993, 2147483648
  %v2052 = vor.u32 1.1754944e-38, %v2051
  %v2053 = vsel %vm2050, %v2052, %v2048
  %v2054 = vmul.f32 1.0, %v2053
  %v2055 = vrcp.pop %v1994
  %v2056 = vmul.f32 %v1994, %v2055
  %v2057 = vsub.f32 1.0, %v2056
  %v2058 = vmul.f32 %v2055, %v2057
  %v2059 = vadd.f32 %v2055, %v2058
  %vm2060 = vweird.f32 %v1994
  %vm2061 = vweird.f32 %v2055
  %vm2062 = vmor %vm2060, %vm2061
  %v2063 = vsel %vm2062, %v2055, %v2059
  %v2064 = vand.u32 2147483647, %v1994
  %vm2065 = vcmp.eq.f32.partialorder %v2064, 8.507059e+37
  %v2066 = vand.u32 %v1994, 2147483648
  %v2067 = vor.u32 1.1754944e-38, %v2066
  %v2068 = vsel %vm2065, %v2067, %v2063
  %v2069 = vmul.f32 1.0, %v2068
  %v2070 = vtanh.pop %v1970
  %v2071 = vtanh.pop %v1971
  %v2072 = vtanh.pop %v1972
  %v2073 = vtanh.pop %v1973
  %v2074 = vtanh.pop %v1974
  %v2075 = vmul.f32 %v2009, %v1878
  %v2076 = vmul.f32 %v2024, %v1879
  %v2077 = vmul.f32 %v2039, %v1880
  %v2078 = vmul.f32 %v2054, %v1881
  %v2079 = vmul.f32 %v2069, %v1882
  %2085 = vrot.lane.b32.xlu0 %v2070, 96
  %v2086 = vpop.permute.xlu0 %2085
  %2087 = vrot.lane.b32.xlu0 %v2071, 96
  %v2088 = vpop.permute.xlu0 %2087
  %2089 = vrot.lane.b32.xlu0 %v2072, 96
  %v2090 = vpop.permute.xlu0 %2089
  %2091 = vrot.lane.b32.xlu0 %v2073, 96
  %v2092 = vpop.permute.xlu0 %2091
  %2093 = vrot.lane.b32.xlu0 %v2074, 96
  %v2094 = vpop.permute.xlu0 %2093
  %v2100 = vmul.f32 %v2009, %v2086
  %v2101 = vmul.f32 %v2024, %v2088
  %v2102 = vmul.f32 %v2039, %v2090
  %v2103 = vmul.f32 %v2054, %v2092
  %v2104 = vmul.f32 %v2069, %v2094
  %2110 = vrot.lane.b32.xlu0 %v2100, 16
  %v2111 = vpop.permute.xlu0 %2110
  %2112 = vrot.lane.b32.xlu0 %v2101, 16
  %v2113 = vpop.permute.xlu0 %2112
  %2114 = vrot.lane.b32.xlu0 %v2102, 16
  %v2115 = vpop.permute.xlu0 %2114
  %2116 = vrot.lane.b32.xlu0 %v2103, 16
  %v2117 = vpop.permute.xlu0 %2116
  %2118 = vrot.lane.b32.xlu0 %v2104, 16
  %v2119 = vpop.permute.xlu0 %2118
  %v2125 = vadd.f32 %v2075, %v2111
  %v2126 = vadd.f32 %v2076, %v2113
  %v2127 = vadd.f32 %v2077, %v2115
  %v2128 = vadd.f32 %v2078, %v2117
  %v2129 = vadd.f32 %v2079, %v2119
  %v2130 = vtanh.pop %v2125
  %v2131 = vtanh.pop %v2126
  %v2132 = vtanh.pop %v2127
  %v2133 = vtanh.pop %v2128
  %v2134 = vtanh.pop %v2129
  %2140 = vrot.lane.b32.xlu0 %v2130, 32
  %v2141 = vpop.permute.xlu0 %2140
  %2142 = vrot.lane.b32.xlu0 %v2131, 32
  %v2143 = vpop.permute.xlu0 %2142
  %2144 = vrot.lane.b32.xlu0 %v2132, 32
  %v2145 = vpop.permute.xlu0 %2144
  %2146 = vrot.lane.b32.xlu0 %v2133, 32
  %v2147 = vpop.permute.xlu0 %2146
  %2148 = vrot.lane.b32.xlu0 %v2134, 32
  %v2149 = vpop.permute.xlu0 %2148
  %v2155 = vmul.f32 %v2009, %v2141
  %v2156 = vmul.f32 %v2024, %v2143
  %v2157 = vmul.f32 %v2039, %v2145
  %v2158 = vmul.f32 %v2054, %v2147
  %v2159 = vmul.f32 %v2069, %v2149
  %2165 = vrot.lane.b32.xlu0 %v2155, 80
  %v2166 = vpop.permute.xlu0 %2165
  %2167 = vrot.lane.b32.xlu0 %v2156, 80
  %v2168 = vpop.permute.xlu0 %2167
  %2169 = vrot.lane.b32.xlu0 %v2157, 80
  %v2170 = vpop.permute.xlu0 %2169
  %2171 = vrot.lane.b32.xlu0 %v2158, 80
  %v2172 = vpop.permute.xlu0 %2171
  %2173 = vrot.lane.b32.xlu0 %v2159, 80
  %v2174 = vpop.permute.xlu0 %2173
  %v2175 = vsel %vm452, %v2166, 0
  %v2177 = vsel %vm452, %v2168, 0
  %v2179 = vsel %vm452, %v2170, 0
  %v2181 = vsel %vm452, %v2172, 0
  %v2183 = vsel %vm452, %v2174, 0
  %2185 = vmatpush.msra.mxu0 0.0
  %2186 = vmatpush.msra.mxu0 0.0
  %2187 = vmatpush.msra.mxu0 0.0
  %2188 = vmatpush.msra.mxu0 0.0
  %2189 = vmatpush.msra.mxu0 0.0
  %2190 = vmatpush.msra.mxu0 0.0
  %2191 = vmatpush.msra.mxu0 0.0
  %2192 = vmatpush.msra.mxu0 0.0
  %2193 = vmatpush.msra.mxu0 0.0
  %2194 = vmatpush.msra.mxu0 0.0
  %2195 = vmatpush.msra.mxu0 0.0
  %2196 = vmatpush.msra.mxu0 0.0
  %2197 = vmatpush.msra.mxu0 0.0
  %2198 = vmatpush.msra.mxu0 0.0
  %2199 = vmatpush.msra.mxu0 %v149
  %2200 = vmatpush.msra.mxu0 %v148
  %2201 = vmatmul.f32.gmra.mxu0 %v2175
  %v2202 = vpop.f32.mrf.mxu0
  %v2203 = vadd.f32 0.0, %v2202
  %2204 = vmatmul.f32.gmra.mxu0 %v2177
  %v2205 = vpop.f32.mrf.mxu0
  %v2206 = vadd.f32 0.0, %v2205
  %2207 = vmatmul.f32.gmra.mxu0 %v2179
  %v2208 = vpop.f32.mrf.mxu0
  %v2209 = vadd.f32 0.0, %v2208
  %2210 = vmatmul.f32.gmra.mxu0 %v2181
  %v2211 = vpop.f32.mrf.mxu0
  %v2212 = vadd.f32 0.0, %v2211
  %2213 = vmatmul.f32.gmra.mxu0 %v2183
  %v2214 = vpop.f32.mrf.mxu0
  %v2215 = vadd.f32 0.0, %v2214
  %2216 = vdwg.mxu0
  %v2217 = vadd.f32 %v438, %v2203
  %v2218 = vadd.f32 %v441, %v2206
  %v2219 = vadd.f32 %v444, %v2209
  %v2220 = vadd.f32 %v447, %v2212
  %v2221 = vadd.f32 %v450, %v2215
  %v2222 = vxor.u32 %v2217, 2147483648
  %v2223 = vxor.u32 %v2218, 2147483648
  %v2224 = vxor.u32 %v2219, 2147483648
  %v2225 = vxor.u32 %v2220, 2147483648
  %v2226 = vxor.u32 %v2221, 2147483648
  %v2227 = vmul.f32 %v2222, 1.442695
  %v2228 = vpow.pop %v2227
  %v2229 = vmul.f32 %v2223, 1.442695
  %v2230 = vpow.pop %v2229
  %v2231 = vmul.f32 %v2224, 1.442695
  %v2232 = vpow.pop %v2231
  %v2233 = vmul.f32 %v2225, 1.442695
  %v2234 = vpow.pop %v2233
  %v2235 = vmul.f32 %v2226, 1.442695
  %v2236 = vpow.pop %v2235
  %v2237 = vadd.f32 %v2228, 1.0
  %v2238 = vadd.f32 %v2230, 1.0
  %v2239 = vadd.f32 %v2232, 1.0
  %v2240 = vadd.f32 %v2234, 1.0
  %v2241 = vadd.f32 %v2236, 1.0
  %v2242 = vrcp.pop %v2237
  %v2243 = vmul.f32 %v2237, %v2242
  %v2244 = vsub.f32 1.0, %v2243
  %v2245 = vmul.f32 %v2242, %v2244
  %v2246 = vadd.f32 %v2242, %v2245
  %vm2247 = vweird.f32 %v2237
  %vm2248 = vweird.f32 %v2242
  %vm2249 = vmor %vm2247, %vm2248
  %v2250 = vsel %vm2249, %v2242, %v2246
  %v2251 = vand.u32 2147483647, %v2237
  %vm2252 = vcmp.eq.f32.partialorder %v2251, 8.507059e+37
  %v2253 = vand.u32 %v2237, 2147483648
  %v2254 = vor.u32 1.1754944e-38, %v2253
  %v2255 = vsel %vm2252, %v2254, %v2250
  %v2256 = vmul.f32 1.0, %v2255
  %v2257 = vrcp.pop %v2238
  %v2258 = vmul.f32 %v2238, %v2257
  %v2259 = vsub.f32 1.0, %v2258
  %v2260 = vmul.f32 %v2257, %v2259
  %v2261 = vadd.f32 %v2257, %v2260
  %vm2262 = vweird.f32 %v2238
  %vm2263 = vweird.f32 %v2257
  %vm2264 = vmor %vm2262, %vm2263
  %v2265 = vsel %vm2264, %v2257, %v2261
  %v2266 = vand.u32 2147483647, %v2238
  %vm2267 = vcmp.eq.f32.partialorder %v2266, 8.507059e+37
  %v2268 = vand.u32 %v2238, 2147483648
  %v2269 = vor.u32 1.1754944e-38, %v2268
  %v2270 = vsel %vm2267, %v2269, %v2265
  %v2271 = vmul.f32 1.0, %v2270
  %v2272 = vrcp.pop %v2239
  %v2273 = vmul.f32 %v2239, %v2272
  %v2274 = vsub.f32 1.0, %v2273
  %v2275 = vmul.f32 %v2272, %v2274
  %v2276 = vadd.f32 %v2272, %v2275
  %vm2277 = vweird.f32 %v2239
  %vm2278 = vweird.f32 %v2272
  %vm2279 = vmor %vm2277, %vm2278
  %v2280 = vsel %vm2279, %v2272, %v2276
  %v2281 = vand.u32 2147483647, %v2239
  %vm2282 = vcmp.eq.f32.partialorder %v2281, 8.507059e+37
  %v2283 = vand.u32 %v2239, 2147483648
  %v2284 = vor.u32 1.1754944e-38, %v2283
  %v2285 = vsel %vm2282, %v2284, %v2280
  %v2286 = vmul.f32 1.0, %v2285
  %v2287 = vrcp.pop %v2240
  %v2288 = vmul.f32 %v2240, %v2287
  %v2289 = vsub.f32 1.0, %v2288
  %v2290 = vmul.f32 %v2287, %v2289
  %v2291 = vadd.f32 %v2287, %v2290
  %vm2292 = vweird.f32 %v2240
  %vm2293 = vweird.f32 %v2287
  %vm2294 = vmor %vm2292, %vm2293
  %v2295 = vsel %vm2294, %v2287, %v2291
  %v2296 = vand.u32 2147483647, %v2240
  %vm2297 = vcmp.eq.f32.partialorder %v2296, 8.507059e+37
  %v2298 = vand.u32 %v2240, 2147483648
  %v2299 = vor.u32 1.1754944e-38, %v2298
  %v2300 = vsel %vm2297, %v2299, %v2295
  %v2301 = vmul.f32 1.0, %v2300
  %v2302 = vrcp.pop %v2241
  %v2303 = vmul.f32 %v2241, %v2302
  %v2304 = vsub.f32 1.0, %v2303
  %v2305 = vmul.f32 %v2302, %v2304
  %v2306 = vadd.f32 %v2302, %v2305
  %vm2307 = vweird.f32 %v2241
  %vm2308 = vweird.f32 %v2302
  %vm2309 = vmor %vm2307, %vm2308
  %v2310 = vsel %vm2309, %v2302, %v2306
  %v2311 = vand.u32 2147483647, %v2241
  %vm2312 = vcmp.eq.f32.partialorder %v2311, 8.507059e+37
  %v2313 = vand.u32 %v2241, 2147483648
  %v2314 = vor.u32 1.1754944e-38, %v2313
  %v2315 = vsel %vm2312, %v2314, %v2310
  %v2316 = vmul.f32 1.0, %v2315
  %v2317 = vtanh.pop %v2217
  %v2318 = vtanh.pop %v2218
  %v2319 = vtanh.pop %v2219
  %v2320 = vtanh.pop %v2220
  %v2321 = vtanh.pop %v2221
  %v2322 = vmul.f32 %v2256, %v2125
  %v2323 = vmul.f32 %v2271, %v2126
  %v2324 = vmul.f32 %v2286, %v2127
  %v2325 = vmul.f32 %v2301, %v2128
  %v2326 = vmul.f32 %v2316, %v2129
  %2332 = vrot.lane.b32.xlu0 %v2317, 96
  %v2333 = vpop.permute.xlu0 %2332
  %2334 = vrot.lane.b32.xlu0 %v2318, 96
  %v2335 = vpop.permute.xlu0 %2334
  %2336 = vrot.lane.b32.xlu0 %v2319, 96
  %v2337 = vpop.permute.xlu0 %2336
  %2338 = vrot.lane.b32.xlu0 %v2320, 96
  %v2339 = vpop.permute.xlu0 %2338
  %2340 = vrot.lane.b32.xlu0 %v2321, 96
  %v2341 = vpop.permute.xlu0 %2340
  %v2347 = vmul.f32 %v2256, %v2333
  %v2348 = vmul.f32 %v2271, %v2335
  %v2349 = vmul.f32 %v2286, %v2337
  %v2350 = vmul.f32 %v2301, %v2339
  %v2351 = vmul.f32 %v2316, %v2341
  %2357 = vrot.lane.b32.xlu0 %v2347, 16
  %v2358 = vpop.permute.xlu0 %2357
  %2359 = vrot.lane.b32.xlu0 %v2348, 16
  %v2360 = vpop.permute.xlu0 %2359
  %2361 = vrot.lane.b32.xlu0 %v2349, 16
  %v2362 = vpop.permute.xlu0 %2361
  %2363 = vrot.lane.b32.xlu0 %v2350, 16
  %v2364 = vpop.permute.xlu0 %2363
  %2365 = vrot.lane.b32.xlu0 %v2351, 16
  %v2366 = vpop.permute.xlu0 %2365
  %v2372 = vadd.f32 %v2322, %v2358
  %v2373 = vadd.f32 %v2323, %v2360
  %v2374 = vadd.f32 %v2324, %v2362
  %v2375 = vadd.f32 %v2325, %v2364
  %v2376 = vadd.f32 %v2326, %v2366
  %v2377 = vtanh.pop %v2372
  %v2378 = vtanh.pop %v2373
  %v2379 = vtanh.pop %v2374
  %v2380 = vtanh.pop %v2375
  %v2381 = vtanh.pop %v2376
  %2387 = vrot.lane.b32.xlu0 %v2377, 32
  %v2388 = vpop.permute.xlu0 %2387
  %2389 = vrot.lane.b32.xlu0 %v2378, 32
  %v2390 = vpop.permute.xlu0 %2389
  %2391 = vrot.lane.b32.xlu0 %v2379, 32
  %v2392 = vpop.permute.xlu0 %2391
  %2393 = vrot.lane.b32.xlu0 %v2380, 32
  %v2394 = vpop.permute.xlu0 %2393
  %2395 = vrot.lane.b32.xlu0 %v2381, 32
  %v2396 = vpop.permute.xlu0 %2395
  %v2402 = vmul.f32 %v2256, %v2388
  %v2403 = vmul.f32 %v2271, %v2390
  %v2404 = vmul.f32 %v2286, %v2392
  %v2405 = vmul.f32 %v2301, %v2394
  %v2406 = vmul.f32 %v2316, %v2396
  %v2407 = vld [vmem:[%s21] sm:$0xff]
  %v2408 = vld [vmem:[%s21 + $0x8] sm:$0xff]
  %2414 = vrot.lane.b32.xlu0 %v2402, 80
  %v2415 = vpop.permute.xlu0 %2414
  %2416 = vrot.lane.b32.xlu0 %v2403, 80
  %v2417 = vpop.permute.xlu0 %2416
  %2418 = vrot.lane.b32.xlu0 %v2404, 80
  %v2419 = vpop.permute.xlu0 %2418
  %2420 = vrot.lane.b32.xlu0 %v2405, 80
  %v2421 = vpop.permute.xlu0 %2420
  %2422 = vrot.lane.b32.xlu0 %v2406, 80
  %v2423 = vpop.permute.xlu0 %2422
  %v2424 = vsel %vm452, %v2415, 0
  %v2426 = vsel %vm452, %v2417, 0
  %v2428 = vsel %vm452, %v2419, 0
  %v2430 = vsel %vm452, %v2421, 0
  %v2432 = vsel %vm452, %v2423, 0
  %2434 = vmatpush.msra.mxu0 0.0
  %2435 = vmatpush.msra.mxu0 0.0
  %2436 = vmatpush.msra.mxu0 0.0
  %2437 = vmatpush.msra.mxu0 0.0
  %2438 = vmatpush.msra.mxu0 0.0
  %2439 = vmatpush.msra.mxu0 0.0
  %2440 = vmatpush.msra.mxu0 0.0
  %2441 = vmatpush.msra.mxu0 0.0
  %2442 = vmatpush.msra.mxu0 0.0
  %2443 = vmatpush.msra.mxu0 0.0
  %2444 = vmatpush.msra.mxu0 0.0
  %2445 = vmatpush.msra.mxu0 0.0
  %2446 = vmatpush.msra.mxu0 0.0
  %2447 = vmatpush.msra.mxu0 0.0
  %2448 = vmatpush.msra.mxu0 %v2408
  %2449 = vmatpush.msra.mxu0 %v2407
  %2450 = vmatmul.f32.gmra.mxu0 %v2424
  %v2451 = vpop.f32.mrf.mxu0
  %v2452 = vadd.f32 0.0, %v2451
  %2453 = vmatmul.f32.gmra.mxu0 %v2426
  %v2454 = vpop.f32.mrf.mxu0
  %v2455 = vadd.f32 0.0, %v2454
  %2456 = vmatmul.f32.gmra.mxu0 %v2428
  %v2457 = vpop.f32.mrf.mxu0
  %v2458 = vadd.f32 0.0, %v2457
  %2459 = vmatmul.f32.gmra.mxu0 %v2430
  %v2460 = vpop.f32.mrf.mxu0
  %v2461 = vadd.f32 0.0, %v2460
  %2462 = vmatmul.f32.gmra.mxu0 %v2432
  %v2463 = vpop.f32.mrf.mxu0
  %v2464 = vadd.f32 0.0, %v2463
  %2465 = vdwg.mxu0
  %v2466 = vtanh.pop %v2452
  %v2467 = vtanh.pop %v2455
  %v2468 = vtanh.pop %v2458
  %v2469 = vtanh.pop %v2461
  %v2470 = vtanh.pop %v2464
  %v2471 = vld [vmem:[%s23] sm:$0xff]
  %v2472 = vld [vmem:[%s23 + $0x8] sm:$0xff]
  %v2474 = vsel %vm452, %v2466, 0
  %v2477 = vsel %vm452, %v2467, 0
  %v2480 = vsel %vm452, %v2468, 0
  %v2483 = vsel %vm452, %v2469, 0
  %v2486 = vsel %vm452, %v2470, 0
  %2488 = vmatpush.msra.mxu0 0.0
  %2489 = vmatpush.msra.mxu0 0.0
  %2490 = vmatpush.msra.mxu0 0.0
  %2491 = vmatpush.msra.mxu0 0.0
  %2492 = vmatpush.msra.mxu0 0.0
  %2493 = vmatpush.msra.mxu0 0.0
  %2494 = vmatpush.msra.mxu0 0.0
  %2495 = vmatpush.msra.mxu0 0.0
  %2496 = vmatpush.msra.mxu0 0.0
  %2497 = vmatpush.msra.mxu0 0.0
  %2498 = vmatpush.msra.mxu0 0.0
  %2499 = vmatpush.msra.mxu0 0.0
  %2500 = vmatpush.msra.mxu0 0.0
  %2501 = vmatpush.msra.mxu0 0.0
  %2502 = vmatpush.msra.mxu0 %v2472
  %2503 = vmatpush.msra.mxu0 %v2471
  %2504 = vmatmul.f32.gmra.mxu0 %v2474
  %v2505 = vpop.f32.mrf.mxu0
  %v2506 = vadd.f32 0.0, %v2505
  %2507 = vmatmul.f32.gmra.mxu0 %v2477
  %v2508 = vpop.f32.mrf.mxu0
  %v2509 = vadd.f32 0.0, %v2508
  %2510 = vmatmul.f32.gmra.mxu0 %v2480
  %v2511 = vpop.f32.mrf.mxu0
  %v2512 = vadd.f32 0.0, %v2511
  %2513 = vmatmul.f32.gmra.mxu0 %v2483
  %v2514 = vpop.f32.mrf.mxu0
  %v2515 = vadd.f32 0.0, %v2514
  %2516 = vmatmul.f32.gmra.mxu0 %v2486
  %v2517 = vpop.f32.mrf.mxu0
  %v2518 = vadd.f32 0.0, %v2517
  %2519 = vdwg.mxu0
  %vm2520 = vcmask 7168
  %v2521 = vsel %vm2520, %v2506, -inf
  %v2522 = vsel %vm2520, %v2509, -inf
  %v2523 = vsel %vm2520, %v2512, -inf
  %v2524 = vsel %vm2520, %v2515, -inf
  %v2525 = vsel %vm2520, %v2518, -inf
  %v2526 = vmax.f32 %v2521, %v2525
  %v2527 = vmax.f32 %v2526, %v2522
  %v2528 = vmax.f32 %v2523, %v2524
  %v2529 = vmax.f32 %v2527, %v2528
  %v2530 = vrot.slane %v2529, 4
  %v2531 = vmax.f32 %v2529, %v2530
  %v2532 = vrot.slane %v2531, 2
  %v2533 = vmax.f32 %v2531, %v2532
  %v2534 = vrot.slane %v2533, 1
  %v2535 = vmax.f32 %v2533, %v2534
  %v2536 = vsub.f32 %v2506, %v2535
  %v2537 = vsub.f32 %v2509, %v2535
  %v2538 = vsub.f32 %v2512, %v2535
  %v2539 = vsub.f32 %v2515, %v2535
  %v2540 = vsub.f32 %v2518, %v2535
  %v2541 = vmul.f32 %v2536, 1.442695
  %v2542 = vpow.pop %v2541
  %v2543 = vmul.f32 %v2537, 1.442695
  %v2544 = vpow.pop %v2543
  %v2545 = vmul.f32 %v2538, 1.442695
  %v2546 = vpow.pop %v2545
  %v2547 = vmul.f32 %v2539, 1.442695
  %v2548 = vpow.pop %v2547
  %v2549 = vmul.f32 %v2540, 1.442695
  %v2550 = vpow.pop %v2549
  %v2551 = vlaneseq
  %v2552 = vshrl.u32 %v2551, 7
  %v2553 = vadd.s32 %v2552, 8
  %v2554 = vadd.s32 %v2552, 16
  %v2555 = vadd.s32 %v2552, 24
  %v2556 = vadd.s32 %v2552, 32
  %vm2557 = vcmp.ge.s32.totalorder %v2552, 0
  %vm2558 = vcmp.ge.s32.totalorder %v2553, 0
  %vm2559 = vcmp.ge.s32.totalorder %v2554, 0
  %vm2560 = vcmp.ge.s32.totalorder %v2555, 0
  %vm2561 = vcmp.ge.s32.totalorder %v2556, 0
  %vm2562 = vcmp.lt.s32.totalorder %v2552, 18
  %vm2563 = vcmp.lt.s32.totalorder %v2553, 18
  %vm2564 = vcmp.lt.s32.totalorder %v2554, 18
  %vm2565 = vcmp.lt.s32.totalorder %v2555, 18
  %vm2566 = vcmp.lt.s32.totalorder %v2556, 18
  %vm2567 = vmand %vm2557, %vm2562
  %vm2568 = vmand %vm2558, %vm2563
  %vm2569 = vmand %vm2559, %vm2564
  %vm2570 = vmand %vm2560, %vm2565
  %vm2571 = vmand %vm2561, %vm2566
  %v2572 = vsel %vm2567, %v2542, 0.0
  %v2573 = vsel %vm2568, %v2544, 0.0
  %v2574 = vsel %vm2569, %v2546, 0.0
  %v2575 = vsel %vm2570, %v2548, 0.0
  %v2576 = vsel %vm2571, %v2550, 0.0
  %v2577 = vsel %vm2520, %v2572, 0.0
  %v2578 = vsel %vm2520, %v2573, 0.0
  %v2579 = vadd.f32 %v2577, %v2578
  %v2580 = vsel %vm2520, %v2574, 0.0
  %v2581 = vadd.f32 %v2579, %v2580
  %v2582 = vsel %vm2520, %v2575, 0.0
  %v2583 = vadd.f32 %v2581, %v2582
  %v2584 = vsel %vm2520, %v2576, 0.0
  %v2585 = vadd.f32 %v2583, %v2584
  %v2586 = vrot.slane %v2585, 4
  %v2587 = vadd.f32 %v2585, %v2586
  %v2588 = vrot.slane %v2587, 2
  %v2589 = vadd.f32 %v2587, %v2588
  %v2590 = vrot.slane %v2589, 1
  %v2591 = vadd.f32 %v2589, %v2590
  %v2592 = vsel %vm2567, %v2591, 1.0
  %v2593 = vsel %vm2568, %v2591, 1.0
  %v2594 = vsel %vm2569, %v2591, 1.0
  %v2595 = vsel %vm2570, %v2591, 1.0
  %v2596 = vsel %vm2571, %v2591, 1.0
  %vm2597 = vcmp.ge.s32.totalorder %v2552, 18
  %vm2598 = vcmp.ge.s32.totalorder %v2553, 18
  %vm2599 = vcmp.ge.s32.totalorder %v2554, 18
  %vm2600 = vcmp.ge.s32.totalorder %v2555, 18
  %vm2601 = vcmp.ge.s32.totalorder %v2556, 18
  %vm2602 = vcmp.lt.s32.totalorder %v2552, 36
  %vm2603 = vcmp.lt.s32.totalorder %v2553, 36
  %vm2604 = vcmp.lt.s32.totalorder %v2554, 36
  %vm2605 = vcmp.lt.s32.totalorder %v2555, 36
  %vm2606 = vcmp.lt.s32.totalorder %v2556, 36
  %vm2607 = vmand %vm2597, %vm2602
  %vm2608 = vmand %vm2598, %vm2603
  %vm2609 = vmand %vm2599, %vm2604
  %vm2610 = vmand %vm2600, %vm2605
  %vm2611 = vmand %vm2601, %vm2606
  %v2612 = vsel %vm2607, %v2542, 0.0
  %v2613 = vsel %vm2608, %v2544, 0.0
  %v2614 = vsel %vm2609, %v2546, 0.0
  %v2615 = vsel %vm2610, %v2548, 0.0
  %v2616 = vsel %vm2611, %v2550, 0.0
  %v2617 = vsel %vm2520, %v2612, 0.0
  %v2618 = vsel %vm2520, %v2613, 0.0
  %v2619 = vadd.f32 %v2617, %v2618
  %v2620 = vsel %vm2520, %v2614, 0.0
  %v2621 = vadd.f32 %v2619, %v2620
  %v2622 = vsel %vm2520, %v2615, 0.0
  %v2623 = vadd.f32 %v2621, %v2622
  %v2624 = vsel %vm2520, %v2616, 0.0
  %v2625 = vadd.f32 %v2623, %v2624
  %v2626 = vrot.slane %v2625, 4
  %v2627 = vadd.f32 %v2625, %v2626
  %v2628 = vrot.slane %v2627, 2
  %v2629 = vadd.f32 %v2627, %v2628
  %v2630 = vrot.slane %v2629, 1
  %v2631 = vadd.f32 %v2629, %v2630
  %v2632 = vsel %vm2607, %v2631, %v2592
  %v2633 = vsel %vm2608, %v2631, %v2593
  %v2634 = vsel %vm2609, %v2631, %v2594
  %v2635 = vsel %vm2610, %v2631, %v2595
  %v2636 = vsel %vm2611, %v2631, %v2596
  %v2637 = vrcp.pop %v2632
  %v2638 = vmul.f32 %v2632, %v2637
  %v2639 = vsub.f32 1.0, %v2638
  %v2640 = vmul.f32 %v2637, %v2639
  %v2641 = vadd.f32 %v2637, %v2640
  %vm2642 = vweird.f32 %v2632
  %vm2643 = vweird.f32 %v2637
  %vm2644 = vmor %vm2642, %vm2643
  %v2645 = vsel %vm2644, %v2637, %v2641
  %v2646 = vand.u32 2147483647, %v2632
  %vm2647 = vcmp.eq.f32.partialorder %v2646, 8.507059e+37
  %v2648 = vand.u32 %v2632, 2147483648
  %v2649 = vor.u32 1.1754944e-38, %v2648
  %v2650 = vsel %vm2647, %v2649, %v2645
  %v2651 = vmul.f32 %v2542, %v2650
  %v2652 = vrcp.pop %v2633
  %v2653 = vmul.f32 %v2633, %v2652
  %v2654 = vsub.f32 1.0, %v2653
  %v2655 = vmul.f32 %v2652, %v2654
  %v2656 = vadd.f32 %v2652, %v2655
  %vm2657 = vweird.f32 %v2633
  %vm2658 = vweird.f32 %v2652
  %vm2659 = vmor %vm2657, %vm2658
  %v2660 = vsel %vm2659, %v2652, %v2656
  %v2661 = vand.u32 2147483647, %v2633
  %vm2662 = vcmp.eq.f32.partialorder %v2661, 8.507059e+37
  %v2663 = vand.u32 %v2633, 2147483648
  %v2664 = vor.u32 1.1754944e-38, %v2663
  %v2665 = vsel %vm2662, %v2664, %v2660
  %v2666 = vmul.f32 %v2544, %v2665
  %v2667 = vrcp.pop %v2634
  %v2668 = vmul.f32 %v2634, %v2667
  %v2669 = vsub.f32 1.0, %v2668
  %v2670 = vmul.f32 %v2667, %v2669
  %v2671 = vadd.f32 %v2667, %v2670
  %vm2672 = vweird.f32 %v2634
  %vm2673 = vweird.f32 %v2667
  %vm2674 = vmor %vm2672, %vm2673
  %v2675 = vsel %vm2674, %v2667, %v2671
  %v2676 = vand.u32 2147483647, %v2634
  %vm2677 = vcmp.eq.f32.partialorder %v2676, 8.507059e+37
  %v2678 = vand.u32 %v2634, 2147483648
  %v2679 = vor.u32 1.1754944e-38, %v2678
  %v2680 = vsel %vm2677, %v2679, %v2675
  %v2681 = vmul.f32 %v2546, %v2680
  %v2682 = vrcp.pop %v2635
  %v2683 = vmul.f32 %v2635, %v2682
  %v2684 = vsub.f32 1.0, %v2683
  %v2685 = vmul.f32 %v2682, %v2684
  %v2686 = vadd.f32 %v2682, %v2685
  %vm2687 = vweird.f32 %v2635
  %vm2688 = vweird.f32 %v2682
  %vm2689 = vmor %vm2687, %vm2688
  %v2690 = vsel %vm2689, %v2682, %v2686
  %v2691 = vand.u32 2147483647, %v2635
  %vm2692 = vcmp.eq.f32.partialorder %v2691, 8.507059e+37
  %v2693 = vand.u32 %v2635, 2147483648
  %v2694 = vor.u32 1.1754944e-38, %v2693
  %v2695 = vsel %vm2692, %v2694, %v2690
  %v2696 = vmul.f32 %v2548, %v2695
  %v2697 = vrcp.pop %v2636
  %v2698 = vmul.f32 %v2636, %v2697
  %v2699 = vsub.f32 1.0, %v2698
  %v2700 = vmul.f32 %v2697, %v2699
  %v2701 = vadd.f32 %v2697, %v2700
  %vm2702 = vweird.f32 %v2636
  %vm2703 = vweird.f32 %v2697
  %vm2704 = vmor %vm2702, %vm2703
  %v2705 = vsel %vm2704, %v2697, %v2701
  %v2706 = vand.u32 2147483647, %v2636
  %vm2707 = vcmp.eq.f32.partialorder %v2706, 8.507059e+37
  %v2708 = vand.u32 %v2636, 2147483648
  %v2709 = vor.u32 1.1754944e-38, %v2708
  %v2710 = vsel %vm2707, %v2709, %v2705
  %v2711 = vmul.f32 %v2550, %v2710
  %v2712 = vld [vmem:[%s9] sm:$0xff]
  %v2713 = vld [vmem:[%s9 + $0x8] sm:$0xff]
  %v2714 = vld [vmem:[%s9 + $0x10] sm:$0xff]
  %v2715 = vld [vmem:[%s9 + $0x18] sm:$0xff]
  %v2716 = vld [vmem:[%s9 + $0x20] sm:$0xff]
  %v2717 = vld [vmem:[%s9 + $0x28] sm:$0xff]
  %2718 = vmatpush.msra.mxu0 0.0
  %2719 = vmatpush.msra.mxu0 0.0
  %2720 = vmatpush.msra.mxu0 0.0
  %2721 = vmatpush.msra.mxu0 0.0
  %2722 = vmatpush.msra.mxu0 0.0
  %2723 = vmatpush.msra.mxu0 0.0
  %2724 = vmatpush.msra.mxu0 0.0
  %2725 = vmatpush.msra.mxu0 0.0
  %2726 = vmatpush.msra.mxu0 0.0
  %2727 = vmatpush.msra.mxu0 0.0
  %2728 = vmatpush.msra.mxu0 0.0
  %2729 = vmatpush.msra.mxu0 0.0
  %2730 = vmatpush.msra.mxu0 0.0
  %2731 = vmatpush.msra.mxu0 0.0
  %2732 = vmatpush.msra.mxu0 %v2715
  %2733 = vmatpush.msra.mxu0 %v2712
  %2734 = vmatmul.f32.gmra.mxu0 %v2424
  %v2735 = vpop.f32.mrf.mxu0
  %v2736 = vadd.f32 0.0, %v2735
  %2737 = vmatmul.f32.gmra.mxu0 %v2426
  %v2738 = vpop.f32.mrf.mxu0
  %v2739 = vadd.f32 0.0, %v2738
  %2740 = vmatmul.f32.gmra.mxu0 %v2428
  %v2741 = vpop.f32.mrf.mxu0
  %v2742 = vadd.f32 0.0, %v2741
  %2743 = vmatmul.f32.gmra.mxu0 %v2430
  %v2744 = vpop.f32.mrf.mxu0
  %v2745 = vadd.f32 0.0, %v2744
  %2746 = vmatmul.f32.gmra.mxu0 %v2432
  %v2747 = vpop.f32.mrf.mxu0
  %v2748 = vadd.f32 0.0, %v2747
  %2749 = vdwg.mxu0
  %2750 = vmatpush.msra.mxu0 0.0
  %2751 = vmatpush.msra.mxu0 0.0
  %2752 = vmatpush.msra.mxu0 0.0
  %2753 = vmatpush.msra.mxu0 0.0
  %2754 = vmatpush.msra.mxu0 0.0
  %2755 = vmatpush.msra.mxu0 0.0
  %2756 = vmatpush.msra.mxu0 0.0
  %2757 = vmatpush.msra.mxu0 0.0
  %2758 = vmatpush.msra.mxu0 0.0
  %2759 = vmatpush.msra.mxu0 0.0
  %2760 = vmatpush.msra.mxu0 0.0
  %2761 = vmatpush.msra.mxu0 0.0
  %2762 = vmatpush.msra.mxu0 0.0
  %2763 = vmatpush.msra.mxu0 0.0
  %2764 = vmatpush.msra.mxu0 %v2716
  %2765 = vmatpush.msra.mxu0 %v2713
  %2766 = vmatmul.f32.gmra.mxu0 %v2424
  %v2767 = vpop.f32.mrf.mxu0
  %v2768 = vadd.f32 0.0, %v2767
  %2769 = vmatmul.f32.gmra.mxu0 %v2426
  %v2770 = vpop.f32.mrf.mxu0
  %v2771 = vadd.f32 0.0, %v2770
  %2772 = vmatmul.f32.gmra.mxu0 %v2428
  %v2773 = vpop.f32.mrf.mxu0
  %v2774 = vadd.f32 0.0, %v2773
  %2775 = vmatmul.f32.gmra.mxu0 %v2430
  %v2776 = vpop.f32.mrf.mxu0
  %v2777 = vadd.f32 0.0, %v2776
  %2778 = vmatmul.f32.gmra.mxu0 %v2432
  %v2779 = vpop.f32.mrf.mxu0
  %v2780 = vadd.f32 0.0, %v2779
  %2781 = vdwg.mxu0
  %2782 = vmatpush.msra.mxu0 0.0
  %2783 = vmatpush.msra.mxu0 0.0
  %2784 = vmatpush.msra.mxu0 0.0
  %2785 = vmatpush.msra.mxu0 0.0
  %2786 = vmatpush.msra.mxu0 0.0
  %2787 = vmatpush.msra.mxu0 0.0
  %2788 = vmatpush.msra.mxu0 0.0
  %2789 = vmatpush.msra.mxu0 0.0
  %2790 = vmatpush.msra.mxu0 0.0
  %2791 = vmatpush.msra.mxu0 0.0
  %2792 = vmatpush.msra.mxu0 0.0
  %2793 = vmatpush.msra.mxu0 0.0
  %2794 = vmatpush.msra.mxu0 0.0
  %2795 = vmatpush.msra.mxu0 0.0
  %2796 = vmatpush.msra.mxu0 %v2717
  %2797 = vmatpush.msra.mxu0 %v2714
  %2798 = vmatmul.f32.gmra.mxu0 %v2424
  %v2799 = vpop.f32.mrf.mxu0
  %v2800 = vadd.f32 0.0, %v2799
  %2801 = vmatmul.f32.gmra.mxu0 %v2426
  %v2802 = vpop.f32.mrf.mxu0
  %v2803 = vadd.f32 0.0, %v2802
  %2804 = vmatmul.f32.gmra.mxu0 %v2428
  %v2805 = vpop.f32.mrf.mxu0
  %v2806 = vadd.f32 0.0, %v2805
  %2807 = vmatmul.f32.gmra.mxu0 %v2430
  %v2808 = vpop.f32.mrf.mxu0
  %v2809 = vadd.f32 0.0, %v2808
  %2810 = vmatmul.f32.gmra.mxu0 %v2432
  %v2811 = vpop.f32.mrf.mxu0
  %v2812 = vadd.f32 0.0, %v2811
  %2813 = vdwg.mxu0
  %v2814 = vld [vmem:[%s11] sm:$0xff]
  %v2815 = vld [vmem:[%s11 + $0x8] sm:$0xff]
  %v2816 = vld [vmem:[%s11 + $0x10] sm:$0xff]
  %v2817 = vld [vmem:[%s11 + $0x18] sm:$0xff]
  %v2818 = vld [vmem:[%s11 + $0x20] sm:$0xff]
  %v2819 = vld [vmem:[%s11 + $0x28] sm:$0xff]
  %v2820 = vld [vmem:[%s11 + $0x30] sm:$0xff]
  %v2821 = vld [vmem:[%s11 + $0x38] sm:$0xff]
  %v2822 = vld [vmem:[%s11 + $0x40] sm:$0xff]
  %v2823 = vld [vmem:[%s11 + $0x48] sm:$0xff]
  %v2824 = vld [vmem:[%s11 + $0x50] sm:$0xff]
  %v2825 = vld [vmem:[%s11 + $0x58] sm:$0xff]
  %v2826 = vld [vmem:[%s11 + $0x60] sm:$0xff]
  %v2827 = vld [vmem:[%s11 + $0x68] sm:$0xff]
  %v2828 = vld [vmem:[%s11 + $0x70] sm:$0xff]
  %v2829 = vmul.f32 %v2736, %v2814
  %v2830 = vmul.f32 %v2768, %v2815
  %v2831 = vmul.f32 %v2800, %v2816
  %v2832 = vmul.f32 %v2739, %v2817
  %v2833 = vmul.f32 %v2771, %v2818
  %v2834 = vmul.f32 %v2803, %v2819
  %v2835 = vmul.f32 %v2742, %v2820
  %v2836 = vmul.f32 %v2774, %v2821
  %v2837 = vmul.f32 %v2806, %v2822
  %v2838 = vmul.f32 %v2745, %v2823
  %v2839 = vmul.f32 %v2777, %v2824
  %v2840 = vmul.f32 %v2809, %v2825
  %v2841 = vmul.f32 %v2748, %v2826
  %v2842 = vmul.f32 %v2780, %v2827
  %v2843 = vmul.f32 %v2812, %v2828
  %v2844 = vld [vmem:[%s13] sm:$0x3]
  %vm2845 = vcmask 326656
  %v2847 = vsel %vm2845, %v2844, 0
  %2849 = vmatpush.msra.mxu0 0.0
  %2850 = vmatpush.msra.mxu0 0.0
  %2851 = vmatpush.msra.mxu0 0.0
  %2852 = vmatpush.msra.mxu0 0.0
  %2853 = vmatpush.msra.mxu0 0.0
  %2854 = vmatpush.msra.mxu0 0.0
  %2855 = vmatpush.msra.mxu0 0.0
  %2856 = vmatpush.msra.mxu0 0.0
  %2857 = vmatpush.msra.mxu0 0.0
  %2858 = vmatpush.msra.mxu0 0.0
  %2859 = vmatpush.msra.mxu0 0.0
  %2860 = vmatpush.msra.mxu0 %v2841
  %2861 = vmatpush.msra.mxu0 %v2838
  %2862 = vmatpush.msra.mxu0 %v2835
  %2863 = vmatpush.msra.mxu0 %v2832
  %2864 = vmatpush.msra.mxu0 %v2829
  %2865 = vmatmul.f32.gmra.mxu0 %v2847
  %v2866 = vpop.f32.mrf.mxu0
  %v2867 = vadd.f32 0.0, %v2866
  %2868 = vdwg.mxu0
  %2869 = vmatpush.msra.mxu0 0.0
  %2870 = vmatpush.msra.mxu0 0.0
  %2871 = vmatpush.msra.mxu0 0.0
  %2872 = vmatpush.msra.mxu0 0.0
  %2873 = vmatpush.msra.mxu0 0.0
  %2874 = vmatpush.msra.mxu0 0.0
  %2875 = vmatpush.msra.mxu0 0.0
  %2876 = vmatpush.msra.mxu0 0.0
  %2877 = vmatpush.msra.mxu0 0.0
  %2878 = vmatpush.msra.mxu0 0.0
  %2879 = vmatpush.msra.mxu0 0.0
  %2880 = vmatpush.msra.mxu0 %v2842
  %2881 = vmatpush.msra.mxu0 %v2839
  %2882 = vmatpush.msra.mxu0 %v2836
  %2883 = vmatpush.msra.mxu0 %v2833
  %2884 = vmatpush.msra.mxu0 %v2830
  %2885 = vmatmul.f32.gmra.mxu0 %v2847
  %v2886 = vpop.f32.mrf.mxu0
  %v2887 = vadd.f32 0.0, %v2886
  %2888 = vdwg.mxu0
  %2889 = vmatpush.msra.mxu0 0.0
  %2890 = vmatpush.msra.mxu0 0.0
  %2891 = vmatpush.msra.mxu0 0.0
  %2892 = vmatpush.msra.mxu0 0.0
  %2893 = vmatpush.msra.mxu0 0.0
  %2894 = vmatpush.msra.mxu0 0.0
  %2895 = vmatpush.msra.mxu0 0.0
  %2896 = vmatpush.msra.mxu0 0.0
  %2897 = vmatpush.msra.mxu0 0.0
  %2898 = vmatpush.msra.mxu0 0.0
  %2899 = vmatpush.msra.mxu0 0.0
  %2900 = vmatpush.msra.mxu0 %v2843
  %2901 = vmatpush.msra.mxu0 %v2840
  %2902 = vmatpush.msra.mxu0 %v2837
  %2903 = vmatpush.msra.mxu0 %v2834
  %2904 = vmatpush.msra.mxu0 %v2831
  %2905 = vmatmul.f32.gmra.mxu0 %v2847
  %v2906 = vpop.f32.mrf.mxu0
  %v2907 = vadd.f32 0.0, %v2906
  %2908 = vdwg.mxu0
  %2910 = vset.pattern.permute.xlu0 0
  %2911 = vperm.xlu0 %2910, %v2651
  %v2912 = vpop.permute.xlu0 %2911
  %2915 = vset.pattern.permute.xlu0 0
  %2916 = vperm.xlu0 %2915, %v2666
  %v2917 = vpop.permute.xlu0 %2916
  %2920 = vset.pattern.permute.xlu0 0
  %2921 = vperm.xlu0 %2920, %v2681
  %v2922 = vpop.permute.xlu0 %2921
  %2925 = vset.pattern.permute.xlu0 0
  %2926 = vperm.xlu0 %2925, %v2696
  %v2927 = vpop.permute.xlu0 %2926
  %2930 = vset.pattern.permute.xlu0 0
  %2931 = vperm.xlu0 %2930, %v2711
  %v2932 = vpop.permute.xlu0 %2931
  %v2934 = vmul.f32 %v2829, %v2912
  %v2935 = vmul.f32 %v2830, %v2912
  %v2936 = vmul.f32 %v2831, %v2912
  %v2937 = vmul.f32 %v2832, %v2917
  %v2938 = vmul.f32 %v2833, %v2917
  %v2939 = vmul.f32 %v2834, %v2917
  %v2940 = vmul.f32 %v2835, %v2922
  %v2941 = vmul.f32 %v2836, %v2922
  %v2942 = vmul.f32 %v2837, %v2922
  %v2943 = vmul.f32 %v2838, %v2927
  %v2944 = vmul.f32 %v2839, %v2927
  %v2945 = vmul.f32 %v2840, %v2927
  %v2946 = vmul.f32 %v2841, %v2932
  %v2947 = vmul.f32 %v2842, %v2932
  %v2948 = vmul.f32 %v2843, %v2932
  %2949 = vmatpush.msra.mxu0 0.0
  %2950 = vmatpush.msra.mxu0 0.0
  %2951 = vmatpush.msra.mxu0 0.0
  %2952 = vmatpush.msra.mxu0 0.0
  %2953 = vmatpush.msra.mxu0 0.0
  %2954 = vmatpush.msra.mxu0 0.0
  %2955 = vmatpush.msra.mxu0 0.0
  %2956 = vmatpush.msra.mxu0 0.0
  %2957 = vmatpush.msra.mxu0 0.0
  %2958 = vmatpush.msra.mxu0 0.0
  %2959 = vmatpush.msra.mxu0 0.0
  %2960 = vmatpush.msra.mxu0 %v2946
  %2961 = vmatpush.msra.mxu0 %v2943
  %2962 = vmatpush.msra.mxu0 %v2940
  %2963 = vmatpush.msra.mxu0 %v2937
  %2964 = vmatpush.msra.mxu0 %v2934
  %2965 = vmatmul.f32.gmra.mxu0 %v2847
  %v2966 = vpop.f32.mrf.mxu0
  %v2967 = vadd.f32 0.0, %v2966
  %2968 = vdwg.mxu0
  %2969 = vmatpush.msra.mxu0 0.0
  %2970 = vmatpush.msra.mxu0 0.0
  %2971 = vmatpush.msra.mxu0 0.0
  %2972 = vmatpush.msra.mxu0 0.0
  %2973 = vmatpush.msra.mxu0 0.0
  %2974 = vmatpush.msra.mxu0 0.0
  %2975 = vmatpush.msra.mxu0 0.0
  %2976 = vmatpush.msra.mxu0 0.0
  %2977 = vmatpush.msra.mxu0 0.0
  %2978 = vmatpush.msra.mxu0 0.0
  %2979 = vmatpush.msra.mxu0 0.0
  %2980 = vmatpush.msra.mxu0 %v2947
  %2981 = vmatpush.msra.mxu0 %v2944
  %2982 = vmatpush.msra.mxu0 %v2941
  %2983 = vmatpush.msra.mxu0 %v2938
  %2984 = vmatpush.msra.mxu0 %v2935
  %2985 = vmatmul.f32.gmra.mxu0 %v2847
  %v2986 = vpop.f32.mrf.mxu0
  %v2987 = vadd.f32 0.0, %v2986
  %2988 = vdwg.mxu0
  %2989 = vmatpush.msra.mxu0 0.0
  %2990 = vmatpush.msra.mxu0 0.0
  %2991 = vmatpush.msra.mxu0 0.0
  %2992 = vmatpush.msra.mxu0 0.0
  %2993 = vmatpush.msra.mxu0 0.0
  %2994 = vmatpush.msra.mxu0 0.0
  %2995 = vmatpush.msra.mxu0 0.0
  %2996 = vmatpush.msra.mxu0 0.0
  %2997 = vmatpush.msra.mxu0 0.0
  %2998 = vmatpush.msra.mxu0 0.0
  %2999 = vmatpush.msra.mxu0 0.0
  %3000 = vmatpush.msra.mxu0 %v2948
  %3001 = vmatpush.msra.mxu0 %v2945
  %3002 = vmatpush.msra.mxu0 %v2942
  %3003 = vmatpush.msra.mxu0 %v2939
  %3004 = vmatpush.msra.mxu0 %v2936
  %3005 = vmatmul.f32.gmra.mxu0 %v2847
  %v3006 = vpop.f32.mrf.mxu0
  %v3007 = vadd.f32 0.0, %v3006
  %3008 = vdwg.mxu0
  %v3009 = vld [vmem:[%s7] sm:$0x3]
  %v3010 = vld [vmem:[%s25] sm:$0xff]
  %v3011 = vld [vmem:[%s25 + $0x8] sm:$0xff]
  %v3012 = vld [vmem:[%s25 + $0x10] sm:$0xff]
  %v3013 = vld [vmem:[%s25 + $0x18] sm:$0xf]
  %vm3014 = vcmask 228352
  %v3016 = vsel %vm3014, %v3009, 0
  %vm3018 = vcmask 1043456
  %v3020 = vsel %vm3018, %v3013, 0
  %3022 = vmatpush.msra.mxu0 0.0
  %3023 = vmatpush.msra.mxu0 0.0
  %3024 = vmatpush.msra.mxu0 0.0
  %3025 = vmatpush.msra.mxu0 0.0
  %3026 = vmatpush.msra.mxu0 0.0
  %3027 = vmatpush.msra.mxu0 0.0
  %3028 = vmatpush.msra.mxu0 0.0
  %3029 = vmatpush.msra.mxu0 0.0
  %3030 = vmatpush.msra.mxu0 0.0
  %3031 = vmatpush.msra.mxu0 0.0
  %3032 = vmatpush.msra.mxu0 0.0
  %3033 = vmatpush.msra.mxu0 0.0
  %3034 = vmatpush.msra.mxu0 %v3020
  %3035 = vmatpush.msra.mxu0 %v3012
  %3036 = vmatpush.msra.mxu0 %v3011
  %3037 = vmatpush.msra.mxu0 %v3010
  %3038 = vmatmul.f32.gmra.mxu0 %v3016
  %v3039 = vpop.f32.mrf.mxu0
  %v3040 = vadd.f32 0.0, %v3039
  %3041 = vdwg.mxu0
  %v3042 = vtanh.pop %v3040
  %v3043 = vld [vmem:[%s27] sm:$0xff]
  %v3044 = vld [vmem:[%s27 + $0x8] sm:$0xff]
  %v3045 = vld [vmem:[%s27 + $0x10] sm:$0xff]
  %v3046 = vld [vmem:[%s27 + $0x18] sm:$0xf]
  %v3048 = vsel %vm3014, %v3042, 0
  %v3051 = vsel %vm3018, %v3046, 0
  %3053 = vmatpush.msra.mxu0 0.0
  %3054 = vmatpush.msra.mxu0 0.0
  %3055 = vmatpush.msra.mxu0 0.0
  %3056 = vmatpush.msra.mxu0 0.0
  %3057 = vmatpush.msra.mxu0 0.0
  %3058 = vmatpush.msra.mxu0 0.0
  %3059 = vmatpush.msra.mxu0 0.0
  %3060 = vmatpush.msra.mxu0 0.0
  %3061 = vmatpush.msra.mxu0 0.0
  %3062 = vmatpush.msra.mxu0 0.0
  %3063 = vmatpush.msra.mxu0 0.0
  %3064 = vmatpush.msra.mxu0 0.0
  %3065 = vmatpush.msra.mxu0 %v3051
  %3066 = vmatpush.msra.mxu0 %v3045
  %3067 = vmatpush.msra.mxu0 %v3044
  %3068 = vmatpush.msra.mxu0 %v3043
  %3069 = vmatmul.f32.gmra.mxu0 %v3048
  %v3070 = vpop.f32.mrf.mxu0
  %v3071 = vadd.f32 0.0, %v3070
  %3072 = vdwg.mxu0
  %v3073 = vsub.f32 %v3071, %v3071
  %v3074 = vmul.f32 %v3073, 1.442695
  %v3075 = vpow.pop %v3074
  %v3076 = vadd.f32 %v3075, 0.0
  %v3077 = vrcp.pop %v3076
  %v3078 = vmul.f32 %v3076, %v3077
  %v3079 = vsub.f32 1.0, %v3078
  %v3080 = vmul.f32 %v3077, %v3079
  %v3081 = vadd.f32 %v3077, %v3080
  %vm3082 = vweird.f32 %v3076
  %vm3083 = vweird.f32 %v3077
  %vm3084 = vmor %vm3082, %vm3083
  %v3085 = vsel %vm3084, %v3077, %v3081
  %v3086 = vand.u32 2147483647, %v3076
  %vm3087 = vcmp.eq.f32.partialorder %v3086, 8.507059e+37
  %v3088 = vand.u32 %v3076, 2147483648
  %v3089 = vor.u32 1.1754944e-38, %v3088
  %v3090 = vsel %vm3087, %v3089, %v3085
  %v3091 = vmul.f32 %v3075, %v3090
  %3093 = vset.pattern.permute.xlu0 0
  %3094 = vperm.xlu0 %3093, %v3091
  %v3095 = vpop.permute.xlu0 %3094
  %v3097 = vmul.f32 %v3009, %v3095
  %v3098 = vld [vmem:[%s29] sm:$0xff]
  %v3099 = vld [vmem:[%s29 + $0x8] sm:$0xff]
  %v3100 = vld [vmem:[%s29 + $0x10] sm:$0xff]
  %v3101 = vld [vmem:[%s29 + $0x18] sm:$0xff]
  %v3102 = vld [vmem:[%s29 + $0x20] sm:$0xff]
  %v3103 = vld [vmem:[%s29 + $0x28] sm:$0xff]
  %v3104 = vld [vmem:[%s29 + $0x30] sm:$0xff]
  %v3105 = vld [vmem:[%s29 + $0x38] sm:$0xff]
  %v3106 = vld [vmem:[%s29 + $0x40] sm:$0xff]
  %v3107 = vld [vmem:[%s29 + $0x48] sm:$0xff]
  %v3108 = vld [vmem:[%s29 + $0x50] sm:$0xff]
  %v3109 = vld [vmem:[%s29 + $0x58] sm:$0xff]
  %v3110 = vld [vmem:[%s29 + $0x60] sm:$0xff]
  %v3111 = vld [vmem:[%s29 + $0x68] sm:$0xff]
  %v3112 = vld [vmem:[%s29 + $0x70] sm:$0xff]
  %v3113 = vld [vmem:[%s29 + $0x78] sm:$0xff]
  %v3114 = vld [vmem:[%s29 + $0x80] sm:$0xff]
  %v3115 = vld [vmem:[%s29 + $0x88] sm:$0xff]
  %v3116 = vld [vmem:[%s29 + $0x90] sm:$0xff]
  %v3117 = vld [vmem:[%s29 + $0x98] sm:$0xff]
  %v3118 = vld [vmem:[%s29 + $0xa0] sm:$0xff]
  %v3119 = vld [vmem:[%s29 + $0xa8] sm:$0xff]
  %v3120 = vld [vmem:[%s29 + $0xb0] sm:$0xff]
  %v3121 = vld [vmem:[%s29 + $0xb8] sm:$0xff]
  %v3122 = vld [vmem:[%s29 + $0xc0] sm:$0xff]
  %v3123 = vld [vmem:[%s29 + $0xc8] sm:$0xff]
  %v3124 = vld [vmem:[%s29 + $0xd0] sm:$0xff]
  %v3125 = vld [vmem:[%s29 + $0xd8] sm:$0xff]
  %v3126 = vld [vmem:[%s29 + $0xe0] sm:$0xff]
  %v3127 = vld [vmem:[%s29 + $0xe8] sm:$0xff]
  %v3128 = vld [vmem:[%s29 + $0xf0] sm:$0xff]
  %v3129 = vld [vmem:[%s29 + $0xf8] sm:$0xff]
  %v3130 = vld [vmem:[%s29 + $0x100] sm:$0xff]
  %v3131 = vld [vmem:[%s29 + $0x108] sm:$0xff]
  %v3132 = vld [vmem:[%s29 + $0x110] sm:$0xff]
  %v3133 = vld [vmem:[%s29 + $0x118] sm:$0xff]
  %v3134 = vld [vmem:[%s31] sm:$0x1]
  %v3136 = vperm.slane %v3134, 0
  %v3139 = vsel %vm194, %v2907, 0
  %3141 = vmatpush.msra.mxu0 %v3113
  %3142 = vmatpush.msra.mxu0 %v3112
  %3143 = vmatpush.msra.mxu0 %v3111
  %3144 = vmatpush.msra.mxu0 %v3110
  %3145 = vmatpush.msra.mxu0 %v3109
  %3146 = vmatpush.msra.mxu0 %v3108
  %3147 = vmatpush.msra.mxu0 %v3107
  %3148 = vmatpush.msra.mxu0 %v3106
  %3149 = vmatpush.msra.mxu0 %v3105
  %3150 = vmatpush.msra.mxu0 %v3104
  %3151 = vmatpush.msra.mxu0 %v3103
  %3152 = vmatpush.msra.mxu0 %v3102
  %3153 = vmatpush.msra.mxu0 %v3101
  %3154 = vmatpush.msra.mxu0 %v3100
  %3155 = vmatpush.msra.mxu0 %v3099
  %3156 = vmatpush.msra.mxu0 %v3098
  %3157 = vmatmul.f32.gmra.mxu0 %v2867
  %v3158 = vpop.f32.mrf.mxu0
  %v3159 = vadd.f32 %v3136, %v3158
  %3160 = vdwg.mxu0
  %3161 = vmatpush.msra.mxu0 %v3129
  %3162 = vmatpush.msra.mxu0 %v3128
  %3163 = vmatpush.msra.mxu0 %v3127
  %3164 = vmatpush.msra.mxu0 %v3126
  %3165 = vmatpush.msra.mxu0 %v3125
  %3166 = vmatpush.msra.mxu0 %v3124
  %3167 = vmatpush.msra.mxu0 %v3123
  %3168 = vmatpush.msra.mxu0 %v3122
  %3169 = vmatpush.msra.mxu0 %v3121
  %3170 = vmatpush.msra.mxu0 %v3120
  %3171 = vmatpush.msra.mxu0 %v3119
  %3172 = vmatpush.msra.mxu0 %v3118
  %3173 = vmatpush.msra.mxu0 %v3117
  %3174 = vmatpush.msra.mxu0 %v3116
  %3175 = vmatpush.msra.mxu0 %v3115
  %3176 = vmatpush.msra.mxu0 %v3114
  %3177 = vmatmul.f32.gmra.mxu0 %v2887
  %v3178 = vpop.f32.mrf.mxu0
  %v3179 = vadd.f32 %v3159, %v3178
  %3180 = vdwg.mxu0
  %3181 = vmatpush.msra.mxu0 0.0
  %3182 = vmatpush.msra.mxu0 0.0
  %3183 = vmatpush.msra.mxu0 0.0
  %3184 = vmatpush.msra.mxu0 0.0
  %3185 = vmatpush.msra.mxu0 0.0
  %3186 = vmatpush.msra.mxu0 0.0
  %3187 = vmatpush.msra.mxu0 0.0
  %3188 = vmatpush.msra.mxu0 0.0
  %3189 = vmatpush.msra.mxu0 0.0
  %3190 = vmatpush.msra.mxu0 0.0
  %3191 = vmatpush.msra.mxu0 0.0
  %3192 = vmatpush.msra.mxu0 0.0
  %3193 = vmatpush.msra.mxu0 %v3133
  %3194 = vmatpush.msra.mxu0 %v3132
  %3195 = vmatpush.msra.mxu0 %v3131
  %3196 = vmatpush.msra.mxu0 %v3130
  %3197 = vmatmul.f32.gmra.mxu0 %v3139
  %v3198 = vpop.f32.mrf.mxu0
  %v3199 = vadd.f32 %v3179, %v3198
  %3200 = vdwg.mxu0
  %v3201 = vld [vmem:[%s33] sm:$0x1]
  %v3202 = vld [vmem:[%s35] sm:$0x1]
  %vm3203 = vcmask 222208
  %v3204 = vsel %vm3203, %v3199, 0.0
  %v3205 = vrot.slane %v3204, 4
  %v3206 = vadd.f32 %v3204, %v3205
  %v3207 = vrot.slane %v3206, 2
  %v3208 = vadd.f32 %v3206, %v3207
  %v3209 = vrot.slane %v3208, 1
  %v3210 = vadd.f32 %v3208, %v3209
  %v3211 = vrcp.pop 2.0
  %v3212 = vmul.f32 2.0, %v3211
  %v3213 = vsub.f32 1.0, %v3212
  %v3214 = vmul.f32 %v3211, %v3213
  %v3215 = vadd.f32 %v3211, %v3214
  %vm3216 = vweird.f32 %v3211
  %v3217 = vsel %vm3216, %v3211, %v3215
  %v3218 = vmul.f32 %v3210, %v3217
  %v3219 = vsub.f32 %v3199, %v3218
  %v3220 = vmul.f32 %v3219, %v3219
  %v3221 = vsel %vm3203, %v3220, 0.0
  %v3222 = vrot.slane %v3221, 4
  %v3223 = vadd.f32 %v3221, %v3222
  %v3224 = vrot.slane %v3223, 2
  %v3225 = vadd.f32 %v3223, %v3224
  %v3226 = vrot.slane %v3225, 1
  %v3227 = vadd.f32 %v3225, %v3226
  %v3228 = vmul.f32 %v3227, %v3217
  %v3229 = vadd.f32 %v3228, 1e-05
  %v3230 = vrsqrt.pop %v3229
  %v3231 = vmul.f32 %v3230, %v3229
  %v3232 = vmul.f32 %v3231, %v3230
  %v3233 = vmul.f32 0.5, %v3232
  %v3234 = vsub.f32 1.5, %v3233
  %v3235 = vmul.f32 %v3230, %v3234
  %vm3236 = vweird.f32 %v3229
  %vm3237 = vweird.f32 %v3230
  %vm3238 = vmor %vm3236, %vm3237
  %v3239 = vsel %vm3238, %v3230, %v3235
  %v3240 = vmul.f32 %v3219, %v3239
  %v3242 = vperm.slane %v3201, 0
  %v3244 = vmul.f32 %v3240, %v3242
  %v3246 = vperm.slane %v3202, 0
  %v3248 = vadd.f32 %v3244, %v3246
  %vm3249 = vcmp.ge.f32.partialorder %v3248, 0.0
  %v3250 = vmul.f32 %v3248, 0.01
  %v3251 = vsel %vm3249, %v3248, %v3250
  %v3252 = vmul.f32 %v3251, %v3097
  %v3253 = vld [vmem:[%s3] sm:$0x3]
  %v3254 = vld [vmem:[%s37] sm:$0xff]
  %v3255 = vld [vmem:[%s37 + $0x8] sm:$0xff]
  %v3256 = vld [vmem:[%s37 + $0x10] sm:$0xff]
  %v3257 = vld [vmem:[%s37 + $0x18] sm:$0xff]
  %v3258 = vld [vmem:[%s37 + $0x20] sm:$0xff]
  %v3259 = vld [vmem:[%s37 + $0x28] sm:$0xff]
  %v3260 = vld [vmem:[%s37 + $0x30] sm:$0x3f]
  %v3261 = vld [vmem:[%s5] sm:$0x3]
  %v3262 = vld [vmem:[%s39] sm:$0xff]
  %v3263 = vld [vmem:[%s39 + $0x8] sm:$0xff]
  %v3264 = vld [vmem:[%s39 + $0x10] sm:$0x3]
  %vm3265 = vcmask 146432
  %v3267 = vsel %vm3265, %v3261, 0
  %vm3269 = vcmask 1041408
  %v3271 = vsel %vm3269, %v3264, 0
  %3273 = vmatpush.msra.mxu0 0.0
  %3274 = vmatpush.msra.mxu0 0.0
  %3275 = vmatpush.msra.mxu0 0.0
  %3276 = vmatpush.msra.mxu0 0.0
  %3277 = vmatpush.msra.mxu0 0.0
  %3278 = vmatpush.msra.mxu0 0.0
  %3279 = vmatpush.msra.mxu0 0.0
  %3280 = vmatpush.msra.mxu0 0.0
  %3281 = vmatpush.msra.mxu0 0.0
  %3282 = vmatpush.msra.mxu0 0.0
  %3283 = vmatpush.msra.mxu0 0.0
  %3284 = vmatpush.msra.mxu0 0.0
  %3285 = vmatpush.msra.mxu0 0.0
  %3286 = vmatpush.msra.mxu0 %v3271
  %3287 = vmatpush.msra.mxu0 %v3263
  %3288 = vmatpush.msra.mxu0 %v3262
  %3289 = vmatmul.f32.gmra.mxu0 %v3267
  %v3290 = vpop.f32.mrf.mxu0
  %v3291 = vadd.f32 0.0, %v3290
  %3292 = vdwg.mxu0
  %vm3293 = vcmask 441344
  %v3295 = vsel %vm3293, %v3253, 0
  %vm3297 = vcmask 1045504
  %v3299 = vsel %vm3297, %v3260, 0
  %3301 = vmatpush.msra.mxu0 0.0
  %3302 = vmatpush.msra.mxu0 0.0
  %3303 = vmatpush.msra.mxu0 0.0
  %3304 = vmatpush.msra.mxu0 0.0
  %3305 = vmatpush.msra.mxu0 0.0
  %3306 = vmatpush.msra.mxu0 0.0
  %3307 = vmatpush.msra.mxu0 0.0
  %3308 = vmatpush.msra.mxu0 0.0
  %3309 = vmatpush.msra.mxu0 0.0
  %3310 = vmatpush.msra.mxu0 %v3299
  %3311 = vmatpush.msra.mxu0 %v3259
  %3312 = vmatpush.msra.mxu0 %v3258
  %3313 = vmatpush.msra.mxu0 %v3257
  %3314 = vmatpush.msra.mxu0 %v3256
  %3315 = vmatpush.msra.mxu0 %v3255
  %3316 = vmatpush.msra.mxu0 %v3254
  %3317 = vmatmul.f32.gmra.mxu0 %v3295
  %v3318 = vpop.f32.mrf.mxu0
  %v3319 = vadd.f32 %v3291, %v3318
  %3320 = vdwg.mxu0
  %v3321 = vld [vmem:[%s41] sm:$0xff]
  %v3322 = vld [vmem:[%s41 + $0x8] sm:$0xff]
  %v3323 = vld [vmem:[%s41 + $0x10] sm:$0xff]
  %v3324 = vld [vmem:[%s41 + $0x18] sm:$0xff]
  %v3325 = vld [vmem:[%s41 + $0x20] sm:$0xff]
  %v3326 = vld [vmem:[%s41 + $0x28] sm:$0xff]
  %v3327 = vld [vmem:[%s41 + $0x30] sm:$0xff]
  %v3328 = vld [vmem:[%s41 + $0x38] sm:$0xff]
  %v3329 = vld [vmem:[%s41 + $0x40] sm:$0xff]
  %v3330 = vld [vmem:[%s41 + $0x48] sm:$0xff]
  %v3331 = vld [vmem:[%s41 + $0x50] sm:$0xff]
  %v3332 = vld [vmem:[%s41 + $0x58] sm:$0xff]
  %v3333 = vld [vmem:[%s41 + $0x60] sm:$0xff]
  %v3334 = vld [vmem:[%s41 + $0x68] sm:$0xff]
  %v3335 = vld [vmem:[%s41 + $0x70] sm:$0xff]
  %v3336 = vld [vmem:[%s41 + $0x78] sm:$0xff]
  %v3337 = vld [vmem:[%s41 + $0x80] sm:$0xff]
  %v3338 = vld [vmem:[%s41 + $0x88] sm:$0xff]
  %v3339 = vld [vmem:[%s41 + $0x90] sm:$0xff]
  %v3340 = vld [vmem:[%s41 + $0x98] sm:$0xff]
  %v3341 = vld [vmem:[%s41 + $0xa0] sm:$0xff]
  %v3342 = vld [vmem:[%s41 + $0xa8] sm:$0xff]
  %v3343 = vld [vmem:[%s41 + $0xb0] sm:$0xff]
  %v3344 = vld [vmem:[%s41 + $0xb8] sm:$0xff]
  %v3345 = vld [vmem:[%s41 + $0xc0] sm:$0xff]
  %v3346 = vld [vmem:[%s41 + $0xc8] sm:$0xff]
  %v3347 = vld [vmem:[%s41 + $0xd0] sm:$0xff]
  %v3348 = vld [vmem:[%s41 + $0xd8] sm:$0xff]
  %v3349 = vld [vmem:[%s41 + $0xe0] sm:$0xff]
  %v3350 = vld [vmem:[%s41 + $0xe8] sm:$0xff]
  %v3351 = vld [vmem:[%s41 + $0xf0] sm:$0xff]
  %v3352 = vld [vmem:[%s41 + $0xf8] sm:$0xff]
  %v3353 = vld [vmem:[%s41 + $0x100] sm:$0xff]
  %v3354 = vld [vmem:[%s41 + $0x108] sm:$0xff]
  %v3355 = vld [vmem:[%s41 + $0x110] sm:$0xff]
  %v3356 = vld [vmem:[%s41 + $0x118] sm:$0xff]
  %v3358 = vsel %vm194, %v3007, 0
  %3360 = vmatpush.msra.mxu0 %v3336
  %3361 = vmatpush.msra.mxu0 %v3335
  %3362 = vmatpush.msra.mxu0 %v3334
  %3363 = vmatpush.msra.mxu0 %v3333
  %3364 = vmatpush.msra.mxu0 %v3332
  %3365 = vmatpush.msra.mxu0 %v3331
  %3366 = vmatpush.msra.mxu0 %v3330
  %3367 = vmatpush.msra.mxu0 %v3329
  %3368 = vmatpush.msra.mxu0 %v3328
  %3369 = vmatpush.msra.mxu0 %v3327
  %3370 = vmatpush.msra.mxu0 %v3326
  %3371 = vmatpush.msra.mxu0 %v3325
  %3372 = vmatpush.msra.mxu0 %v3324
  %3373 = vmatpush.msra.mxu0 %v3323
  %3374 = vmatpush.msra.mxu0 %v3322
  %3375 = vmatpush.msra.mxu0 %v3321
  %3376 = vmatmul.f32.gmra.mxu0 %v2967
  %v3377 = vpop.f32.mrf.mxu0
  %v3378 = vadd.f32 0.0, %v3377
  %3379 = vdwg.mxu0
  %3380 = vmatpush.msra.mxu0 %v3352
  %3381 = vmatpush.msra.mxu0 %v3351
  %3382 = vmatpush.msra.mxu0 %v3350
  %3383 = vmatpush.msra.mxu0 %v3349
  %3384 = vmatpush.msra.mxu0 %v3348
  %3385 = vmatpush.msra.mxu0 %v3347
  %3386 = vmatpush.msra.mxu0 %v3346
  %3387 = vmatpush.msra.mxu0 %v3345
  %3388 = vmatpush.msra.mxu0 %v3344
  %3389 = vmatpush.msra.mxu0 %v3343
  %3390 = vmatpush.msra.mxu0 %v3342
  %3391 = vmatpush.msra.mxu0 %v3341
  %3392 = vmatpush.msra.mxu0 %v3340
  %3393 = vmatpush.msra.mxu0 %v3339
  %3394 = vmatpush.msra.mxu0 %v3338
  %3395 = vmatpush.msra.mxu0 %v3337
  %3396 = vmatmul.f32.gmra.mxu0 %v2987
  %v3397 = vpop.f32.mrf.mxu0
  %v3398 = vadd.f32 %v3378, %v3397
  %3399 = vdwg.mxu0
  %3400 = vmatpush.msra.mxu0 0.0
  %3401 = vmatpush.msra.mxu0 0.0
  %3402 = vmatpush.msra.mxu0 0.0
  %3403 = vmatpush.msra.mxu0 0.0
  %3404 = vmatpush.msra.mxu0 0.0
  %3405 = vmatpush.msra.mxu0 0.0
  %3406 = vmatpush.msra.mxu0 0.0
  %3407 = vmatpush.msra.mxu0 0.0
  %3408 = vmatpush.msra.mxu0 0.0
  %3409 = vmatpush.msra.mxu0 0.0
  %3410 = vmatpush.msra.mxu0 0.0
  %3411 = vmatpush.msra.mxu0 0.0
  %3412 = vmatpush.msra.mxu0 %v3356
  %3413 = vmatpush.msra.mxu0 %v3355
  %3414 = vmatpush.msra.mxu0 %v3354
  %3415 = vmatpush.msra.mxu0 %v3353
  %3416 = vmatmul.f32.gmra.mxu0 %v3358
  %v3417 = vpop.f32.mrf.mxu0
  %v3418 = vadd.f32 %v3398, %v3417
  %3419 = vdwg.mxu0
  %v3420 = vadd.f32 %v3319, %v3418
  %v3421 = vld [vmem:[%s43] sm:$0x1]
  %v3423 = vperm.slane %v3421, 0
  %v3425 = vadd.f32 %v3420, %v3423
  %v3426 = vld [vmem:[%s45] sm:$0x1]
  %v3427 = vld [vmem:[%s47] sm:$0x1]
  %vm3428 = vcmask 254976
  %v3429 = vsel %vm3428, %v3425, 0.0
  %v3430 = vrot.slane %v3429, 4
  %v3431 = vadd.f32 %v3429, %v3430
  %v3432 = vrot.slane %v3431, 2
  %v3433 = vadd.f32 %v3431, %v3432
  %v3434 = vrot.slane %v3433, 1
  %v3435 = vadd.f32 %v3433, %v3434
  %v3436 = vmul.f32 %v3435, %v3217
  %v3437 = vsub.f32 %v3425, %v3436
  %v3438 = vmul.f32 %v3437, %v3437
  %v3439 = vsel %vm3428, %v3438, 0.0
  %v3440 = vrot.slane %v3439, 4
  %v3441 = vadd.f32 %v3439, %v3440
  %v3442 = vrot.slane %v3441, 2
  %v3443 = vadd.f32 %v3441, %v3442
  %v3444 = vrot.slane %v3443, 1
  %v3445 = vadd.f32 %v3443, %v3444
  %v3446 = vmul.f32 %v3445, %v3217
  %v3447 = vadd.f32 %v3446, 1e-05
  %v3448 = vrsqrt.pop %v3447
  %v3449 = vmul.f32 %v3448, %v3447
  %v3450 = vmul.f32 %v3449, %v3448
  %v3451 = vmul.f32 0.5, %v3450
  %v3452 = vsub.f32 1.5, %v3451
  %v3453 = vmul.f32 %v3448, %v3452
  %vm3454 = vweird.f32 %v3447
  %vm3455 = vweird.f32 %v3448
  %vm3456 = vmor %vm3454, %vm3455
  %v3457 = vsel %vm3456, %v3448, %v3453
  %v3458 = vmul.f32 %v3437, %v3457
  %v3460 = vperm.slane %v3426, 0
  %v3462 = vmul.f32 %v3458, %v3460
  %v3464 = vperm.slane %v3427, 0
  %v3466 = vadd.f32 %v3462, %v3464
  %vm3467 = vcmp.ge.f32.partialorder %v3466, 0.0
  %v3468 = vmul.f32 %v3466, 0.01
  %v3469 = vsel %vm3467, %v3466, %v3468
  %v3470 = vld [vmem:[%s49] sm:$0xff]
  %v3471 = vld [vmem:[%s49 + $0x8] sm:$0xff]
  %v3472 = vld [vmem:[%s49 + $0x10] sm:$0xff]
  %v3473 = vld [vmem:[%s49 + $0x18] sm:$0xff]
  %v3474 = vld [vmem:[%s51] sm:$0xff]
  %v3475 = vld [vmem:[%s51 + $0x8] sm:$0xff]
  %v3476 = vld [vmem:[%s51 + $0x10] sm:$0xff]
  %v3477 = vld [vmem:[%s51 + $0x18] sm:$0xf]
  %v3479 = vsel %vm3014, %v3097, 0
  %v3482 = vsel %vm3018, %v3477, 0
  %3484 = vmatpush.msra.mxu0 0.0
  %3485 = vmatpush.msra.mxu0 0.0
  %3486 = vmatpush.msra.mxu0 0.0
  %3487 = vmatpush.msra.mxu0 0.0
  %3488 = vmatpush.msra.mxu0 0.0
  %3489 = vmatpush.msra.mxu0 0.0
  %3490 = vmatpush.msra.mxu0 0.0
  %3491 = vmatpush.msra.mxu0 0.0
  %3492 = vmatpush.msra.mxu0 0.0
  %3493 = vmatpush.msra.mxu0 0.0
  %3494 = vmatpush.msra.mxu0 0.0
  %3495 = vmatpush.msra.mxu0 0.0
  %3496 = vmatpush.msra.mxu0 %v3482
  %3497 = vmatpush.msra.mxu0 %v3476
  %3498 = vmatpush.msra.mxu0 %v3475
  %3499 = vmatpush.msra.mxu0 %v3474
  %3500 = vmatmul.f32.gmra.mxu0 %v3479
  %v3501 = vpop.f32.mrf.mxu0
  %v3502 = vadd.f32 0.0, %v3501
  %3503 = vdwg.mxu0
  %v3505 = vsel %vm194, %v3469, 0
  %3507 = vmatpush.msra.mxu0 0.0
  %3508 = vmatpush.msra.mxu0 0.0
  %3509 = vmatpush.msra.mxu0 0.0
  %3510 = vmatpush.msra.mxu0 0.0
  %3511 = vmatpush.msra.mxu0 0.0
  %3512 = vmatpush.msra.mxu0 0.0
  %3513 = vmatpush.msra.mxu0 0.0
  %3514 = vmatpush.msra.mxu0 0.0
  %3515 = vmatpush.msra.mxu0 0.0
  %3516 = vmatpush.msra.mxu0 0.0
  %3517 = vmatpush.msra.mxu0 0.0
  %3518 = vmatpush.msra.mxu0 0.0
  %3519 = vmatpush.msra.mxu0 %v3473
  %3520 = vmatpush.msra.mxu0 %v3472
  %3521 = vmatpush.msra.mxu0 %v3471
  %3522 = vmatpush.msra.mxu0 %v3470
  %3523 = vmatmul.f32.gmra.mxu0 %v3505
  %v3524 = vpop.f32.mrf.mxu0
  %v3525 = vadd.f32 %v3502, %v3524
  %3526 = vdwg.mxu0
  %v3527 = vld [vmem:[%s53] sm:$0xff]
  %v3528 = vld [vmem:[%s53 + $0x8] sm:$0xff]
  %v3529 = vld [vmem:[%s53 + $0x10] sm:$0xff]
  %v3530 = vld [vmem:[%s53 + $0x18] sm:$0xf]
  %v3532 = vsel %vm3014, %v3252, 0
  %v3535 = vsel %vm3018, %v3530, 0
  %3537 = vmatpush.msra.mxu0 0.0
  %3538 = vmatpush.msra.mxu0 0.0
  %3539 = vmatpush.msra.mxu0 0.0
  %3540 = vmatpush.msra.mxu0 0.0
  %3541 = vmatpush.msra.mxu0 0.0
  %3542 = vmatpush.msra.mxu0 0.0
  %3543 = vmatpush.msra.mxu0 0.0
  %3544 = vmatpush.msra.mxu0 0.0
  %3545 = vmatpush.msra.mxu0 0.0
  %3546 = vmatpush.msra.mxu0 0.0
  %3547 = vmatpush.msra.mxu0 0.0
  %3548 = vmatpush.msra.mxu0 0.0
  %3549 = vmatpush.msra.mxu0 %v3535
  %3550 = vmatpush.msra.mxu0 %v3529
  %3551 = vmatpush.msra.mxu0 %v3528
  %3552 = vmatpush.msra.mxu0 %v3527
  %3553 = vmatmul.f32.gmra.mxu0 %v3532
  %v3554 = vpop.f32.mrf.mxu0
  %v3555 = vadd.f32 0.0, %v3554
  %3556 = vdwg.mxu0
  %v3557 = vadd.f32 %v3525, %v3555
  %v3558 = vld [vmem:[%s55] sm:$0x1]
  %v3560 = vperm.slane %v3558, 0
  %v3562 = vadd.f32 %v3557, %v3560
  %v3563 = vld [vmem:[%s57] sm:$0x1]
  %v3564 = vld [vmem:[%s59] sm:$0x1]
  %vm3565 = vcmask 123904
  %v3566 = vsel %vm3565, %v3562, 0.0
  %v3567 = vrot.slane %v3566, 4
  %v3568 = vadd.f32 %v3566, %v3567
  %v3569 = vrot.slane %v3568, 2
  %v3570 = vadd.f32 %v3568, %v3569
  %v3571 = vrot.slane %v3570, 1
  %v3572 = vadd.f32 %v3570, %v3571
  %v3573 = vmul.f32 %v3572, %v3217
  %v3574 = vsub.f32 %v3562, %v3573
  %v3575 = vmul.f32 %v3574, %v3574
  %v3576 = vsel %vm3565, %v3575, 0.0
  %v3577 = vrot.slane %v3576, 4
  %v3578 = vadd.f32 %v3576, %v3577
  %v3579 = vrot.slane %v3578, 2
  %v3580 = vadd.f32 %v3578, %v3579
  %v3581 = vrot.slane %v3580, 1
  %v3582 = vadd.f32 %v3580, %v3581
  %v3583 = vmul.f32 %v3582, %v3217
  %v3584 = vadd.f32 %v3583, 1e-05
  %v3585 = vrsqrt.pop %v3584
  %v3586 = vmul.f32 %v3585, %v3584
  %v3587 = vmul.f32 %v3586, %v3585
  %v3588 = vmul.f32 0.5, %v3587
  %v3589 = vsub.f32 1.5, %v3588
  %v3590 = vmul.f32 %v3585, %v3589
  %vm3591 = vweird.f32 %v3584
  %vm3592 = vweird.f32 %v3585
  %vm3593 = vmor %vm3591, %vm3592
  %v3594 = vsel %vm3593, %v3585, %v3590
  %v3595 = vmul.f32 %v3574, %v3594
  %v3597 = vperm.slane %v3563, 0
  %v3599 = vmul.f32 %v3595, %v3597
  %v3601 = vperm.slane %v3564, 0
  %v3603 = vadd.f32 %v3599, %v3601
  %vm3604 = vcmp.ge.f32.partialorder %v3603, 0.0
  %v3605 = vmul.f32 %v3603, 0.01
  %v3606 = vsel %vm3604, %v3603, %v3605
  %v3607 = vld [vmem:[%s61] sm:$0xff]
  %v3608 = vld [vmem:[%s61 + $0x8] sm:$0xff]
  %v3609 = vld [vmem:[%s63] sm:$0x1]
  %v3611 = vperm.slane %v3609, 0
  %v3614 = vsel %vm452, %v3606, 0
  %3616 = vmatpush.msra.mxu0 0.0
  %3617 = vmatpush.msra.mxu0 0.0
  %3618 = vmatpush.msra.mxu0 0.0
  %3619 = vmatpush.msra.mxu0 0.0
  %3620 = vmatpush.msra.mxu0 0.0
  %3621 = vmatpush.msra.mxu0 0.0
  %3622 = vmatpush.msra.mxu0 0.0
  %3623 = vmatpush.msra.mxu0 0.0
  %3624 = vmatpush.msra.mxu0 0.0
  %3625 = vmatpush.msra.mxu0 0.0
  %3626 = vmatpush.msra.mxu0 0.0
  %3627 = vmatpush.msra.mxu0 0.0
  %3628 = vmatpush.msra.mxu0 0.0
  %3629 = vmatpush.msra.mxu0 0.0
  %3630 = vmatpush.msra.mxu0 %v3608
  %3631 = vmatpush.msra.mxu0 %v3607
  %3632 = vmatmul.f32.gmra.mxu0 %v3614
  %v3633 = vpop.f32.mrf.mxu0
  %v3634 = vadd.f32 %v3611, %v3633
  %3635 = vdwg.mxu0
  %vm3636 = vcmp.ge.f32.partialorder %v3634, 0.0
  %v3637 = vmul.f32 %v3634, 0.01
  %v3638 = vsel %vm3636, %v3634, %v3637
  %v3639 = vld [vmem:[%s65] sm:$0xff]
  %v3640 = vld [vmem:[%s65 + $0x8] sm:$0xff]
  %v3641 = vld [vmem:[#allocation2] sm:$0x1]
  %v3643 = vperm.slane %v3641, 0
  %v3646 = vsel %vm452, %v3638, 0
  %3648 = vmatpush.msra.mxu0 0.0
  %3649 = vmatpush.msra.mxu0 0.0
  %3650 = vmatpush.msra.mxu0 0.0
  %3651 = vmatpush.msra.mxu0 0.0
  %3652 = vmatpush.msra.mxu0 0.0
  %3653 = vmatpush.msra.mxu0 0.0
  %3654 = vmatpush.msra.mxu0 0.0
  %3655 = vmatpush.msra.mxu0 0.0
  %3656 = vmatpush.msra.mxu0 0.0
  %3657 = vmatpush.msra.mxu0 0.0
  %3658 = vmatpush.msra.mxu0 0.0
  %3659 = vmatpush.msra.mxu0 0.0
  %3660 = vmatpush.msra.mxu0 0.0
  %3661 = vmatpush.msra.mxu0 0.0
  %3662 = vmatpush.msra.mxu0 %v3640
  %3663 = vmatpush.msra.mxu0 %v3639
  %3664 = vmatmul.f32.gmra.mxu0 %v3646
  %v3665 = vpop.f32.mrf.mxu0
  %v3666 = vadd.f32 %v3643, %v3665
  %3667 = vdwg.mxu0
  %vm3668 = vcmask 1024
  %3669 = vst.msk [vmem:[%s69] sm:$0x3] %vm3668, %v3666
  // Predicated region
  $region138: #{raal_forward.1} parent=0 // pred_check
    _
  $region139: #{raal_forward.1} parent=0 // pred_check_branch
    %3671 = sbr.rel (0) target = $region141
  $region140: #{raal_forward.1} parent=0 // pred_region
    _
  $region141: #{raal_forward.1} parent=0 // pred_fallthru
    _
  // Predicated region
  $region142: #{raal_forward.1} parent=0 // pred_check
    _
  $region143: #{raal_forward.1} parent=0 // pred_check_branch
    %3673 = sbr.rel (0) target = $region145
  $region144: #{raal_forward.1} parent=0 // pred_region
    _
  $region145: #{raal_forward.1} parent=0 // pred_fallthru
    _

</llo_original>
